<compile_context>
chip_gen: v6e
topology: v6e:2x2x1
jax: 0.10.0
libtpu: 0.0.40
codegen_flags: <defaults>
</compile_context>

<pallas_src>
import functools
import math

import jax
import jax.numpy as jnp
from jax import lax
from jax.experimental import pallas as pl
from jax.experimental.pallas import tpu as pltpu  # noqa: F401  (see TODOs)

# ----------------------------- config ---------------------------------------
HIDDEN = 32
NUM_HEADS = 4
HEAD_DIM = HIDDEN // NUM_HEADS              # 8
RANK_K = 16
RANK_V = 16
NUM_GROUPS = 4
GROUP_SIZE = NUM_HEADS // NUM_GROUPS        # 1 (keeps torch broadcast valid)
FUSED_GROUP_DIM = RANK_V // NUM_GROUPS      # 4  ("dg": per-head q/k/v width)
FUSED_HIDDEN = FUSED_GROUP_DIM * NUM_HEADS  # 16
QKV_WIDTH = FUSED_HIDDEN + RANK_K + RANK_V  # 48
ATTENTION_DROPOUT = 0.0                     # eval mode -> dropout is a no-op

BATCH = 2
SEQ = 8

# v6e/v7x: flip to jnp.bfloat16 so both MXU dots run at the native bf16 rate
# and halve x / fused-weight bytes (fp32 accumulation via preferred_element_type
# and the fp32 softmax/mask are kept either way) -- the parity tolerance below
# loosens automatically.  v5e: leave all VPU/softmax math in fp32 (no bf16
# VPU/EUP path there); only the dots are affected by this constant.
# v7x note: the MXU has no int path -- int8-quantized PALU weights would have
# to be dequantized to bf16/fp8 before the dot.
MATMUL_DTYPE = jnp.float32
MASK_VALUE = -1e9                           # HF-style additive mask (keep fp32)


# ----------------------------- kernel ---------------------------------------
def palu_attn_kernel(x_ref, wqkv_ref, wo_ref, out_ref, *, batch, seq):
    # x_ref:    (B*S, HIDDEN)          all batches flattened (no grid)
    # wqkv_ref: (HIDDEN, QKV_WIDTH)    fused q|k|v projection weight
    # wo_ref:   (FUSED_HIDDEN, HIDDEN)
    # out_ref:  (B*S, HIDDEN)
    dg = FUSED_GROUP_DIM

    x = x_ref[...].astype(MATMUL_DTYPE)

    # (1) One fused q|k|v projection: a single MXU fill/drain.
    qkv = jnp.dot(x, wqkv_ref[...].astype(MATMUL_DTYPE),
                  preferred_element_type=jnp.float32)          # (B*S, 48) fp32
    qkv3 = qkv.reshape(batch, seq, QKV_WIDTH)                  # leading split only

    # (2) Stack the per-head blocks onto a LEADING axis once (static lane
    # slices + one leading-dim stack per tensor), so scores / softmax / PV
    # below run as ONE batched computation over all B*H heads.
    # TODO(synk): at realistic rank, pad each q/k/v section (and each dg block)
    # of the fused weight to a multiple of 128 lanes so these slices are
    # vreg-aligned free views instead of mid-vreg lane slices.
    def stack_heads(lane_base):
        return jnp.stack(
            [qkv3[:, :, lane_base + h * dg: lane_base + (h + 1) * dg]
             for h in range(NUM_HEADS)],
            axis=0)                                            # (H, B, S, dg)

    qh = stack_heads(0)
    kh = stack_heads(FUSED_HIDDEN)            # kv group g == h (GROUP_SIZE == 1)
    vh = stack_heads(FUSED_HIDDEN + RANK_K)

    scale = 1.0 / math.sqrt(HEAD_DIM)   # module scales by sqrt(head_dim), NOT dg

    # (3) Batched scores for every (h, b) pair at once: VPU broadcast-multiply
    # + lane reduce (a dg=4-wide contraction is MXU-hostile, keep it off MXU).
    # TODO(synk): at realistic SEQ hold K^T/V^T as (dg, S) lane-dense tiles so
    # the reduce, softmax max/sum and PV run on full 128-lane vregs; at S=8
    # that relayout costs more than it saves.
    s = jnp.sum(qh[:, :, :, None, :] * kh[:, :, None, :, :], axis=-1)  # (H,B,Sq,Skv)
    s = s * scale

    # (4) Causal additive mask generated in-kernel: no O(S^2) HBM mask DMA.
    rows = lax.broadcasted_iota(jnp.int32, (seq, seq), 0)
    cols = lax.broadcasted_iota(jnp.int32, (seq, seq), 1)
    mask = jnp.where(cols <= rows, jnp.float32(0.0), jnp.float32(MASK_VALUE))
    # TODO(synk): non-causal / padded HF attention masks would be fed as
    # per-row kv lengths via scalar prefetch instead of a (B, S, S) tensor.
    s = s + mask[None, None, :, :]

    # (5) fp32 softmax over the kv axis, batched over all heads and batches.
    m = jnp.max(s, axis=-1, keepdims=True)
    e = jnp.exp(s - m)
    # Exact reciprocal keeps the 1e-5 fp32 parity check below; flip to
    # approx=True (EUP vrcp, otherwise-idle slot) when not checking parity.
    p = e * pl.reciprocal(jnp.sum(e, axis=-1, keepdims=True), approx=False)

    # (6) Batched PV: VPU multiply + sublane reduce, all heads at once.
    o = jnp.sum(p[:, :, :, :, None] * vh[:, :, None, :, :], axis=3)   # (H,B,Sq,dg)

    # (7) Reassemble (B*S, FUSED_HIDDEN) as a register value (no VMEM scratch
    # round-trip, no masked partial stores): one lane concat of the H head
    # blocks, then a single output-projection MXU dot over every batch.
    o_cat = jnp.concatenate(
        [o[h].reshape(batch * seq, dg) for h in range(NUM_HEADS)], axis=-1)

    out = jnp.dot(o_cat.astype(MATMUL_DTYPE),
                  wo_ref[...].astype(MATMUL_DTYPE),
                  preferred_element_type=jnp.float32)          # (B*S, HIDDEN)
    out_ref[...] = out.astype(out_ref.dtype)


def palu_attention(hidden_states, wq, wk, wv, wo):
    """hidden_states (B, S, HIDDEN); weights stored (in_features, out_features).
    Causal additive mask is generated inside the kernel (eval-mode forward)."""
    B, S, H = hidden_states.shape
    assert H == HIDDEN
    # Correctness guard: the per-head slicing assumes group_size == 1 and
    # rank_k == rank_v; other configs would silently be wrong.
    assert GROUP_SIZE == 1 and RANK_K == RANK_V and NUM_GROUPS == NUM_HEADS
    assert RANK_K // NUM_GROUPS == FUSED_GROUP_DIM
    assert wq.shape == (H, FUSED_HIDDEN) and wk.shape == (H, RANK_K)
    assert wv.shape == (H, RANK_V) and wo.shape == (FUSED_HIDDEN, H)

    # Fuse q|k|v weights so the kernel does a single projection matmul.
    w_qkv = jnp.concatenate([wq, wk, wv], axis=1)              # (H, 48)
    x2 = hidden_states.reshape(B * S, H)

    kernel = functools.partial(palu_attn_kernel, batch=B, seq=S)
    out = pl.pallas_call(
        kernel,
        out_shape=jax.ShapeDtypeStruct((B * S, H), hidden_states.dtype),
        # Whole problem (a few KiB) fits in one VMEM block -> gridless call
        # with default whole-array BlockSpecs: zero per-grid-step overhead and
        # no scratch buffers.
        # TODO(synk): at realistic SEQ/rank, add a row-tile grid with
        #   compiler_params=pltpu.CompilerParams(
        #       dimension_semantics=("parallel",), vmem_limit_bytes=...)
        # -- "parallel" shards rows across v7x's 2 TensorCores; pick the
        # largest row tile that fits scoped VMEM (>=512 rows on v6e's 128 MiB;
        # re-derive for v7x's 64 MiB physical / 32 MiB default scoped and
        # v5e's 16 MiB default) and switch the attention core to a flash-style
        # online softmax over kv tiles.
    )(x2, w_qkv, wo)
    return out.reshape(B, S, H)


# ------------------------- pure-JAX reference --------------------------------
def palu_attention_ref(x, wq, wk, wv, wo):
    B, S, _ = x.shape
    q = x @ wq                                                 # (B, S, FUSED_HIDDEN)
    k = x @ wk                                                 # (B, S, RANK_K)
    v = x @ wv                                                 # (B, S, RANK_V)
    q = q.reshape(B, S, NUM_HEADS, FUSED_GROUP_DIM).transpose(0, 2, 1, 3)
    k = k.reshape(B, S, NUM_GROUPS, FUSED_GROUP_DIM).transpose(0, 2, 1, 3)
    v = v.reshape(B, S, NUM_GROUPS, FUSED_GROUP_DIM).transpose(0, 2, 1, 3)
    w = jnp.einsum("bhqd,bhkd->bhqk", q, k) / math.sqrt(HEAD_DIM)
    causal = jnp.tril(jnp.ones((S, S), jnp.float32))
    mask = jnp.where(causal == 1.0, 0.0, MASK_VALUE).astype(jnp.float32)
    w = w + mask[None, None, :, :]
    w = jax.nn.softmax(w.astype(jnp.float32), axis=-1)
    w = w.reshape(B, NUM_GROUPS, S * GROUP_SIZE, S)
    o = jnp.einsum("bgqk,bgkd->bgqd", w, v)
    o = o.transpose(0, 2, 1, 3).reshape(B, S, -1)
    return o @ wo


# ------------------------------- main ----------------------------------------
if __name__ == "__main__":
    key = jax.random.PRNGKey(0)
    kx, kq, kk, kv, ko = jax.random.split(key, 5)

    # Deterministic "Linear"-style init: U(-1/sqrt(fan_in), 1/sqrt(fan_in)),
    # stored in (in_features, out_features) layout.  attention_bias=False.
    def linear_w(k, fan_in, fan_out):
        bound = 1.0 / math.sqrt(fan_in)
        return jax.random.uniform(k, (fan_in, fan_out), jnp.float32, -bound, bound)

    wq = linear_w(kq, HIDDEN, FUSED_HIDDEN)
    wk = linear_w(kk, HIDDEN, RANK_K)
    wv = linear_w(kv, HIDDEN, RANK_V)
    wo = linear_w(ko, FUSED_HIDDEN, HIDDEN)

    hidden_states = jax.random.normal(kx, (BATCH, SEQ, HIDDEN), jnp.float32)

    out = palu_attention(hidden_states, wq, wk, wv, wo)
    out = jax.block_until_ready(out)

    ref = palu_attention_ref(hidden_states, wq, wk, wv, wo)
    assert out.shape == (BATCH, SEQ, HIDDEN)
    tol = 1e-5 if MATMUL_DTYPE == jnp.float32 else 2e-2   # bf16 MXU path on v6e/v7x
    err = jnp.max(jnp.abs(out - ref))
    assert jnp.allclose(out, ref, atol=tol, rtol=tol), f"max abs err {err}"

    # TODO(synk): past_key_value cache update and attention-dropout (training
    # mode) have no in-kernel equivalent here; eval-mode forward only.
    print("KERNEL_OK")
</pallas_src>

<mosaic_0001>
module attributes {stable_mosaic.version = 11 : i64} {
  func.func @palu_attn_kernel(%arg0: memref<16x32xf32, #tpu.memory_space<vmem>>, %arg1: memref<32x48xf32, #tpu.memory_space<vmem>>, %arg2: memref<16x32xf32, #tpu.memory_space<vmem>>, %arg3: memref<16x32xf32, #tpu.memory_space<vmem>>) attributes {dimension_semantics = [], scalar_prefetch = 0 : i64, scratch_operands = 0 : i64, tpu.core_type = #tpu.core_type<tc>} {
    %c0 = arith.constant 0 : index
    %c0_0 = arith.constant 0 : index
    %0 = vector.load %arg0[%c0, %c0_0] : memref<16x32xf32, #tpu.memory_space<vmem>>, vector<16x32xf32>
    %c0_1 = arith.constant 0 : index
    %c0_2 = arith.constant 0 : index
    %1 = vector.load %arg1[%c0_1, %c0_2] : memref<32x48xf32, #tpu.memory_space<vmem>>, vector<32x48xf32>
    %cst = arith.constant dense<0.000000e+00> : vector<16x48xf32>
    %2 = tpu.matmul %0, %1, %cst {dimension_numbers = #tpu.dot_dimension_numbers<[1], [0], [0], [1], [0, 0, 1, 1], [], []>} : vector<16x32xf32>, vector<32x48xf32>, vector<16x48xf32> -> vector<16x48xf32>
    %3 = vector.shape_cast %2 : vector<16x48xf32> to vector<2x8x48xf32>
    %4 = vector.extract_strided_slice %3 {offsets = [0, 0, 0], sizes = [2, 8, 4], strides = [1, 1, 1]} : vector<2x8x48xf32> to vector<2x8x4xf32>
    %5 = vector.extract_strided_slice %3 {offsets = [0, 0, 4], sizes = [2, 8, 4], strides = [1, 1, 1]} : vector<2x8x48xf32> to vector<2x8x4xf32>
    %6 = vector.extract_strided_slice %3 {offsets = [0, 0, 8], sizes = [2, 8, 4], strides = [1, 1, 1]} : vector<2x8x48xf32> to vector<2x8x4xf32>
    %7 = vector.extract_strided_slice %3 {offsets = [0, 0, 12], sizes = [2, 8, 4], strides = [1, 1, 1]} : vector<2x8x48xf32> to vector<2x8x4xf32>
    %8 = vector.shape_cast %4 : vector<2x8x4xf32> to vector<1x2x8x4xf32>
    %9 = vector.shape_cast %5 : vector<2x8x4xf32> to vector<1x2x8x4xf32>
    %10 = vector.shape_cast %6 : vector<2x8x4xf32> to vector<1x2x8x4xf32>
    %11 = vector.shape_cast %7 : vector<2x8x4xf32> to vector<1x2x8x4xf32>
    %12 = tpu.concatenate %8, %9, %10, %11 in 0 : vector<1x2x8x4xf32>, vector<1x2x8x4xf32>, vector<1x2x8x4xf32>, vector<1x2x8x4xf32> -> vector<4x2x8x4xf32>
    %13 = vector.extract_strided_slice %3 {offsets = [0, 0, 16], sizes = [2, 8, 4], strides = [1, 1, 1]} : vector<2x8x48xf32> to vector<2x8x4xf32>
    %14 = vector.extract_strided_slice %3 {offsets = [0, 0, 20], sizes = [2, 8, 4], strides = [1, 1, 1]} : vector<2x8x48xf32> to vector<2x8x4xf32>
    %15 = vector.extract_strided_slice %3 {offsets = [0, 0, 24], sizes = [2, 8, 4], strides = [1, 1, 1]} : vector<2x8x48xf32> to vector<2x8x4xf32>
    %16 = vector.extract_strided_slice %3 {offsets = [0, 0, 28], sizes = [2, 8, 4], strides = [1, 1, 1]} : vector<2x8x48xf32> to vector<2x8x4xf32>
    %17 = vector.shape_cast %13 : vector<2x8x4xf32> to vector<1x2x8x4xf32>
    %18 = vector.shape_cast %14 : vector<2x8x4xf32> to vector<1x2x8x4xf32>
    %19 = vector.shape_cast %15 : vector<2x8x4xf32> to vector<1x2x8x4xf32>
    %20 = vector.shape_cast %16 : vector<2x8x4xf32> to vector<1x2x8x4xf32>
    %21 = tpu.concatenate %17, %18, %19, %20 in 0 : vector<1x2x8x4xf32>, vector<1x2x8x4xf32>, vector<1x2x8x4xf32>, vector<1x2x8x4xf32> -> vector<4x2x8x4xf32>
    %22 = vector.extract_strided_slice %3 {offsets = [0, 0, 32], sizes = [2, 8, 4], strides = [1, 1, 1]} : vector<2x8x48xf32> to vector<2x8x4xf32>
    %23 = vector.extract_strided_slice %3 {offsets = [0, 0, 36], sizes = [2, 8, 4], strides = [1, 1, 1]} : vector<2x8x48xf32> to vector<2x8x4xf32>
    %24 = vector.extract_strided_slice %3 {offsets = [0, 0, 40], sizes = [2, 8, 4], strides = [1, 1, 1]} : vector<2x8x48xf32> to vector<2x8x4xf32>
    %25 = vector.extract_strided_slice %3 {offsets = [0, 0, 44], sizes = [2, 8, 4], strides = [1, 1, 1]} : vector<2x8x48xf32> to vector<2x8x4xf32>
    %26 = vector.shape_cast %22 : vector<2x8x4xf32> to vector<1x2x8x4xf32>
    %27 = vector.shape_cast %23 : vector<2x8x4xf32> to vector<1x2x8x4xf32>
    %28 = vector.shape_cast %24 : vector<2x8x4xf32> to vector<1x2x8x4xf32>
    %29 = vector.shape_cast %25 : vector<2x8x4xf32> to vector<1x2x8x4xf32>
    %30 = tpu.concatenate %26, %27, %28, %29 in 0 : vector<1x2x8x4xf32>, vector<1x2x8x4xf32>, vector<1x2x8x4xf32>, vector<1x2x8x4xf32> -> vector<4x2x8x4xf32>
    %31 = vector.shape_cast %12 : vector<4x2x8x4xf32> to vector<4x2x8x1x4xf32>
    %32 = vector.shape_cast %21 : vector<4x2x8x4xf32> to vector<4x2x1x8x4xf32>
    %33 = vector.broadcast %31 : vector<4x2x8x1x4xf32> to vector<4x2x8x8x4xf32>
    %34 = vector.broadcast %32 : vector<4x2x1x8x4xf32> to vector<4x2x8x8x4xf32>
    %35 = arith.mulf %33, %34 : vector<4x2x8x8x4xf32>
    %cst_3 = arith.constant dense<0.000000e+00> : vector<4x2x8x8xf32>
    %36 = vector.multi_reduction <add>, %35, %cst_3 [4] : vector<4x2x8x8x4xf32> to vector<4x2x8x8xf32>
    %cst_4 = arith.constant 0.353553385 : f32
    %37 = vector.broadcast %cst_4 : f32 to vector<4x2x8x8xf32>
    %38 = arith.mulf %36, %37 : vector<4x2x8x8xf32>
    %39 = tpu.iota {dimensions = array<i32: 0>} : vector<8x8xi32>
    %40 = tpu.iota {dimensions = array<i32: 1>} : vector<8x8xi32>
    %41 = arith.cmpi sle, %40, %39 : vector<8x8xi32>
    %cst_5 = arith.constant 0.000000e+00 : f32
    %cst_6 = arith.constant -1.000000e+09 : f32
    %42 = vector.broadcast %cst_5 : f32 to vector<8x8xf32>
    %43 = vector.broadcast %cst_6 : f32 to vector<8x8xf32>
    %44 = arith.select %41, %42, %43 : vector<8x8xi1>, vector<8x8xf32>
    %45 = vector.shape_cast %44 : vector<8x8xf32> to vector<1x1x8x8xf32>
    %46 = vector.broadcast %45 : vector<1x1x8x8xf32> to vector<4x2x8x8xf32>
    %47 = arith.addf %38, %46 : vector<4x2x8x8xf32>
    %cst_7 = arith.constant dense<0xFF800000> : vector<4x2x8xf32>
    %48 = vector.multi_reduction <maximumf>, %47, %cst_7 [3] : vector<4x2x8x8xf32> to vector<4x2x8xf32>
    %49 = vector.shape_cast %48 : vector<4x2x8xf32> to vector<4x2x8x1xf32>
    %50 = vector.broadcast %49 : vector<4x2x8x1xf32> to vector<4x2x8x8xf32>
    %51 = arith.subf %47, %50 : vector<4x2x8x8xf32>
    %52 = math.exp %51 : vector<4x2x8x8xf32>
    %cst_8 = arith.constant dense<0.000000e+00> : vector<4x2x8xf32>
    %53 = vector.multi_reduction <add>, %52, %cst_8 [3] : vector<4x2x8x8xf32> to vector<4x2x8xf32>
    %54 = vector.shape_cast %53 : vector<4x2x8xf32> to vector<4x2x8x1xf32>
    %55 = tpu.reciprocal %54 : vector<4x2x8x1xf32> -> vector<4x2x8x1xf32>
    %56 = vector.broadcast %55 : vector<4x2x8x1xf32> to vector<4x2x8x8xf32>
    %57 = arith.mulf %52, %56 : vector<4x2x8x8xf32>
    %58 = vector.shape_cast %57 : vector<4x2x8x8xf32> to vector<4x2x8x8x1xf32>
    %59 = vector.shape_cast %30 : vector<4x2x8x4xf32> to vector<4x2x1x8x4xf32>
    %60 = vector.broadcast %58 : vector<4x2x8x8x1xf32> to vector<4x2x8x8x4xf32>
    %61 = vector.broadcast %59 : vector<4x2x1x8x4xf32> to vector<4x2x8x8x4xf32>
    %62 = arith.mulf %60, %61 : vector<4x2x8x8x4xf32>
    %cst_9 = arith.constant dense<0.000000e+00> : vector<4x2x8x4xf32>
    %63 = vector.multi_reduction <add>, %62, %cst_9 [3] : vector<4x2x8x8x4xf32> to vector<4x2x8x4xf32>
    %64 = vector.extract_strided_slice %63 {offsets = [0, 0, 0, 0], sizes = [1, 2, 8, 4], strides = [1, 1, 1, 1]} : vector<4x2x8x4xf32> to vector<1x2x8x4xf32>
    %65 = vector.shape_cast %64 : vector<1x2x8x4xf32> to vector<2x8x4xf32>
    %66 = vector.shape_cast %65 : vector<2x8x4xf32> to vector<16x4xf32>
    %67 = vector.extract_strided_slice %63 {offsets = [1, 0, 0, 0], sizes = [1, 2, 8, 4], strides = [1, 1, 1, 1]} : vector<4x2x8x4xf32> to vector<1x2x8x4xf32>
    %68 = vector.shape_cast %67 : vector<1x2x8x4xf32> to vector<2x8x4xf32>
    %69 = vector.shape_cast %68 : vector<2x8x4xf32> to vector<16x4xf32>
    %70 = vector.extract_strided_slice %63 {offsets = [2, 0, 0, 0], sizes = [1, 2, 8, 4], strides = [1, 1, 1, 1]} : vector<4x2x8x4xf32> to vector<1x2x8x4xf32>
    %71 = vector.shape_cast %70 : vector<1x2x8x4xf32> to vector<2x8x4xf32>
    %72 = vector.shape_cast %71 : vector<2x8x4xf32> to vector<16x4xf32>
    %73 = vector.extract_strided_slice %63 {offsets = [3, 0, 0, 0], sizes = [1, 2, 8, 4], strides = [1, 1, 1, 1]} : vector<4x2x8x4xf32> to vector<1x2x8x4xf32>
    %74 = vector.shape_cast %73 : vector<1x2x8x4xf32> to vector<2x8x4xf32>
    %75 = vector.shape_cast %74 : vector<2x8x4xf32> to vector<16x4xf32>
    %76 = tpu.concatenate %66, %69, %72, %75 in 1 : vector<16x4xf32>, vector<16x4xf32>, vector<16x4xf32>, vector<16x4xf32> -> vector<16x16xf32>
    %c0_10 = arith.constant 0 : index
    %c0_11 = arith.constant 0 : index
    %77 = vector.load %arg2[%c0_10, %c0_11] : memref<16x32xf32, #tpu.memory_space<vmem>>, vector<16x32xf32>
    %cst_12 = arith.constant dense<0.000000e+00> : vector<16x32xf32>
    %78 = tpu.matmul %76, %77, %cst_12 {dimension_numbers = #tpu.dot_dimension_numbers<[1], [0], [0], [1], [0, 0, 1, 1], [], []>} : vector<16x16xf32>, vector<16x32xf32>, vector<16x32xf32> -> vector<16x32xf32>
    %c0_13 = arith.constant 0 : index
    %c0_14 = arith.constant 0 : index
    %79 = vector.load %arg3[%c0_13, %c0_14] : memref<16x32xf32, #tpu.memory_space<vmem>>, vector<16x32xf32>
    tpu.vector_store %arg3[%c0_13, %c0_14], %78 {strides = array<i32>} : memref<16x32xf32, #tpu.memory_space<vmem>>, vector<16x32xf32>,
    return
  }
}

</mosaic_0001>

<llo_original>
// kernel: tpu_custom_call.1
$region0: #{tpu_custom_call.1}
  #allocation0 [shape = 'u32[]', space=smem, size = 0x4, offset = 0x4, fixed_abs, tag = 'smem constant byte address 0x4 - core index']
  #allocation1 [shape = 'u32[144,128]{1,0:T(1,128)}', space=vmem, size = 0x12000, scoped, tag = 'internal scratch']
  %s0 = inlined_call_operand.hbm [shape: f32[16,32], index: 0, kind: input, shape index: {}]
  %s1 = inlined_call_operand.hbm [shape: f32[32,48], index: 1, kind: input, shape index: {}]
  %s2 = inlined_call_operand.hbm [shape: f32[16,32], index: 2, kind: input, shape index: {}]
  %s3 = inlined_call_operand.hbm [shape: f32[16,32], index: 3, kind: output, shape index: {}]
  %s4 = sld [smem:[#allocation0]]
  $region34: #{tpu_custom_call.1} parent=0
    _
  %s6 = ssub.s32 1, %s4
  %s7 = scalar_select 0, %s6, %s4
  $region1: #{tpu_custom_call.1} parent=0
    #allocation2 [shape = 'u8[8192]{0}', space=vmem, size = 0x2000, scoped, tag = 'input window, operand 0, single buffered']
    #allocation3 [shape = 's32[1]{0}', space=sflag, size = 0x4, scoped, tag = 'scoped memory for tpu_custom_call.1']
    #allocation4 [shape = 's32[1]{0}', space=sflag, size = 0x4, scoped, tag = 'scoped memory for tpu_custom_call.1']
    #allocation5 [shape = 'u8[16384]{0}', space=vmem, size = 0x4000, scoped, tag = 'input window, operand 1, single buffered']
    #allocation6 [shape = 's32[1]{0}', space=sflag, size = 0x4, scoped, tag = 'scoped memory for tpu_custom_call.1']
    #allocation7 [shape = 'u8[8192]{0}', space=vmem, size = 0x2000, scoped, tag = 'input window, operand 2, single buffered']
    #allocation8 [shape = 'u8[8192]{0}', space=vmem, size = 0x2000, scoped, tag = 'output window, operand 0, single buffered']
    %8 = vsyncpa [#allocation3], 0
    %9 = vsyncpa [#allocation6], 0
    %10 = vsyncpa [#allocation4], 0
    // Predicated region
    $region2: #{tpu_custom_call.1} parent=1 // pred_check
      _
    $region3: #{tpu_custom_call.1} parent=1 // pred_check_branch
      %12 = sbr.rel (0) target = $region5
    $region4: #{tpu_custom_call.1} parent=1 // pred_region
      %s14 = ssub.s32 256, 256
      %15 = vsyncadd [#allocation3], %s14
      %s16 = sshll.u32 [#allocation2], 4
      %s17 = int_to_ptr.vmem [resolvable:$true] %s16
      %22 = dma.hbm_to_vmem [thread:$0]  %s0, 256, %s17, [#allocation3], 128, 128, 8
    $region5: #{tpu_custom_call.1} parent=1 // pred_fallthru
      _
    // Predicated region
    $region6: #{tpu_custom_call.1} parent=1 // pred_check
      _
    $region7: #{tpu_custom_call.1} parent=1 // pred_check_branch
      %24 = sbr.rel (0) target = $region9
    $region8: #{tpu_custom_call.1} parent=1 // pred_region
      %s26 = ssub.s32 512, 512
      %27 = vsyncadd [#allocation6], %s26
      %s28 = sshll.u32 [#allocation5], 4
      %s29 = int_to_ptr.vmem [resolvable:$true] %s28
      %34 = dma.hbm_to_vmem [thread:$0]  %s1, 512, %s29, [#allocation6], 128, 128, 8
    $region9: #{tpu_custom_call.1} parent=1 // pred_fallthru
      _
    // Predicated region
    $region10: #{tpu_custom_call.1} parent=1 // pred_check
      _
    $region11: #{tpu_custom_call.1} parent=1 // pred_check_branch
      %36 = sbr.rel (0) target = $region13
    $region12: #{tpu_custom_call.1} parent=1 // pred_region
      %s38 = ssub.s32 256, 256
      %39 = vsyncadd [#allocation6], %s38
      %s40 = sshll.u32 [#allocation7], 4
      %s41 = int_to_ptr.vmem [resolvable:$true] %s40
      %46 = dma.hbm_to_vmem [thread:$0]  %s2, 256, %s41, [#allocation6], 128, 128, 8
    $region13: #{tpu_custom_call.1} parent=1 // pred_fallthru
      _
    // Predicated region
    $region14: #{tpu_custom_call.1} parent=1 // pred_check
      _
    $region15: #{tpu_custom_call.1} parent=1 // pred_check_branch
      %48 = sbr.rel (0) target = $region17
    $region16: #{tpu_custom_call.1} parent=1 // pred_region
      %49 = dma.done [#allocation3], 256
    $region17: #{tpu_custom_call.1} parent=1 // pred_fallthru
      _
    // Predicated region
    $region18: #{tpu_custom_call.1} parent=1 // pred_check
      _
    $region19: #{tpu_custom_call.1} parent=1 // pred_check_branch
      %51 = sbr.rel (0) target = $region21
    $region20: #{tpu_custom_call.1} parent=1 // pred_region
      %52 = dma.done [#allocation6], 512
    $region21: #{tpu_custom_call.1} parent=1 // pred_fallthru
      _
    // Predicated region
    $region22: #{tpu_custom_call.1} parent=1 // pred_check
      _
    $region23: #{tpu_custom_call.1} parent=1 // pred_check_branch
      %54 = sbr.rel (0) target = $region25
    $region24: #{tpu_custom_call.1} parent=1 // pred_region
      %55 = dma.done [#allocation6], 256
    $region25: #{tpu_custom_call.1} parent=1 // pred_fallthru
      _
    %v56 = vld [vmem:[#allocation2] sm:$0xff]
    %v57 = vld [vmem:[#allocation2 + $0x8] sm:$0xff]
    %v58 = vld [vmem:[#allocation5] sm:$0xff]
    %v59 = vld [vmem:[#allocation5 + $0x8] sm:$0xff]
    %v60 = vld [vmem:[#allocation5 + $0x10] sm:$0xff]
    %v61 = vld [vmem:[#allocation5 + $0x18] sm:$0xff]
    %vm62 = vcmask 261120
    %v64 = vsel %vm62, %v56, 0
    %v67 = vsel %vm62, %v57, 0
    %69 = vmatprep.subr.mxu0 0.0
    %70 = vmatpush1.msra.mxu0 0.0
    %71 = vmatprep.subr.mxu0 0.0
    %72 = vmatpush1.msra.mxu0 0.0
    %73 = vmatprep.subr.mxu0 0.0
    %74 = vmatpush1.msra.mxu0 0.0
    %75 = vmatprep.subr.mxu0 0.0
    %76 = vmatpush1.msra.mxu0 0.0
    %77 = vmatprep.subr.mxu0 0.0
    %78 = vmatpush1.msra.mxu0 0.0
    %79 = vmatprep.subr.mxu0 0.0
    %80 = vmatpush1.msra.mxu0 0.0
    %81 = vmatprep.subr.mxu0 0.0
    %82 = vmatpush1.msra.mxu0 0.0
    %83 = vmatprep.subr.mxu0 0.0
    %84 = vmatpush1.msra.mxu0 0.0
    %85 = vmatprep.subr.mxu0 0.0
    %86 = vmatpush1.msra.mxu0 0.0
    %87 = vmatprep.subr.mxu0 0.0
    %88 = vmatpush1.msra.mxu0 0.0
    %89 = vmatprep.subr.mxu0 0.0
    %90 = vmatpush1.msra.mxu0 0.0
    %91 = vmatprep.subr.mxu0 0.0
    %92 = vmatpush1.msra.mxu0 0.0
    %93 = vmatprep.subr.mxu0 0.0
    %94 = vmatpush1.msra.mxu0 %v61
    %95 = vmatprep.subr.mxu0 0.0
    %96 = vmatpush1.msra.mxu0 %v60
    %97 = vmatprep.subr.mxu0 0.0
    %98 = vmatpush1.msra.mxu0 %v59
    %99 = vmatprep.subr.mxu0 0.0
    %100 = vmatpush1.msra.mxu0 %v58
    %101 = vmatprep.subr.mxu0 0.0
    %102 = vmatpush2.msra.mxu0 0.0
    %103 = vmatprep.subr.mxu0 0.0
    %104 = vmatpush2.msra.mxu0 0.0
    %105 = vmatprep.subr.mxu0 0.0
    %106 = vmatpush2.msra.mxu0 0.0
    %107 = vmatprep.subr.mxu0 0.0
    %108 = vmatpush2.msra.mxu0 0.0
    %109 = vmatprep.subr.mxu0 0.0
    %110 = vmatpush2.msra.mxu0 0.0
    %111 = vmatprep.subr.mxu0 0.0
    %112 = vmatpush2.msra.mxu0 0.0
    %113 = vmatprep.subr.mxu0 0.0
    %114 = vmatpush2.msra.mxu0 0.0
    %115 = vmatprep.subr.mxu0 0.0
    %116 = vmatpush2.msra.mxu0 0.0
    %117 = vmatprep.subr.mxu0 0.0
    %118 = vmatpush2.msra.mxu0 0.0
    %119 = vmatprep.subr.mxu0 0.0
    %120 = vmatpush2.msra.mxu0 0.0
    %121 = vmatprep.subr.mxu0 0.0
    %122 = vmatpush2.msra.mxu0 0.0
    %123 = vmatprep.subr.mxu0 0.0
    %124 = vmatpush2.msra.mxu0 0.0
    %125 = vmatprep.subr.mxu0 0.0
    %126 = vmatpush2.msra.mxu0 0.0
    %127 = vmatprep.subr.mxu0 0.0
    %128 = vmatpush2.msra.mxu0 0.0
    %129 = vmatprep.subr.mxu0 0.0
    %130 = vmatpush2.msra.mxu0 0.0
    %131 = vmatprep.subr.mxu0 0.0
    %132 = vmatpush2.msra.mxu0 0.0
    %133 = vmatprep.mubr.f32.mxu0 0.0
    %134 = vmatmul.mubr.f32.gmra.mxu0 %v64
    %v135 = vpop.f32.mrf.mxu0
    %v136 = vadd.f32 0.0, %v135
    %v137 = vpop.f32.mrf.mxu0
    %138 = vmatprep.mubr.f32.mxu0 0.0
    %139 = vmatmul.mubr.f32.gmra.mxu0 %v67
    %v140 = vpop.f32.mrf.mxu0
    %v141 = vadd.f32 0.0, %v140
    %v142 = vpop.f32.mrf.mxu0
    %143 = vdwg.mxu0
    %146 = vrot.lane.b32.xlu0 %v136, 124
    %v147 = vpop.permute.xlu0 %146
    %148 = vrot.lane.b32.xlu0 %v141, 124
    %v149 = vpop.permute.xlu0 %148
    %150 = vrot.lane.b32.xlu0 %v136, 120
    %v151 = vpop.permute.xlu0 %150
    %152 = vrot.lane.b32.xlu0 %v141, 120
    %v153 = vpop.permute.xlu0 %152
    %154 = vrot.lane.b32.xlu0 %v136, 116
    %v155 = vpop.permute.xlu0 %154
    %156 = vrot.lane.b32.xlu0 %v141, 116
    %v157 = vpop.permute.xlu0 %156
    %v164 = vcombine.high %v136, %v136
    %v166 = vunpack.c.l.s4 1966171168
    %v167 = vunpack.c.0.s8 %v166
    %v168 = vlaneseq
    %v169 = vshrl.u32 %v168, 7
    %v170 = vsub.s32 %v167, %v169
    %v171 = vrot.slane %v136, %v170
    %v173 = vunpack.c.l.s4 1966171168
    %v174 = vunpack.c.0.s8 %v173
    %v175 = vlaneseq
    %v176 = vshrl.u32 %v175, 7
    %v177 = vsub.s32 %v174, %v176
    %v178 = vrot.slane %v164, %v177
    %v179 = vcombine.high %v171, %v171
    %v180 = vcombine.high %v178, %v178
    %v182 = vunpack.c.l.s4 1966171168
    %v183 = vunpack.c.0.s8 %v182
    %v184 = vlaneseq
    %v185 = vshrl.u32 %v184, 7
    %v186 = vsub.s32 %v183, %v185
    %v187 = vrot.slane %v171, %v186
    %v189 = vunpack.c.l.s4 1966171168
    %v190 = vunpack.c.0.s8 %v189
    %v191 = vlaneseq
    %v192 = vshrl.u32 %v191, 7
    %v193 = vsub.s32 %v190, %v192
    %v194 = vrot.slane %v178, %v193
    %v196 = vunpack.c.l.s4 1966171168
    %v197 = vunpack.c.0.s8 %v196
    %v198 = vlaneseq
    %v199 = vshrl.u32 %v198, 7
    %v200 = vsub.s32 %v197, %v199
    %v201 = vrot.slane %v179, %v200
    %v203 = vunpack.c.l.s4 1966171168
    %v204 = vunpack.c.0.s8 %v203
    %v205 = vlaneseq
    %v206 = vshrl.u32 %v205, 7
    %v207 = vsub.s32 %v204, %v206
    %v208 = vrot.slane %v180, %v207
    %v209 = vcombine.high %v187, %v187
    %v210 = vcombine.high %v194, %v194
    %v211 = vcombine.high %v201, %v201
    %v212 = vcombine.high %v208, %v208
    %v213 = vcombine.high %v141, %v141
    %v215 = vunpack.c.l.s4 1966171168
    %v216 = vunpack.c.0.s8 %v215
    %v217 = vlaneseq
    %v218 = vshrl.u32 %v217, 7
    %v219 = vsub.s32 %v216, %v218
    %v220 = vrot.slane %v141, %v219
    %v222 = vunpack.c.l.s4 1966171168
    %v223 = vunpack.c.0.s8 %v222
    %v224 = vlaneseq
    %v225 = vshrl.u32 %v224, 7
    %v226 = vsub.s32 %v223, %v225
    %v227 = vrot.slane %v213, %v226
    %v228 = vcombine.high %v220, %v220
    %v229 = vcombine.high %v227, %v227
    %v231 = vunpack.c.l.s4 1966171168
    %v232 = vunpack.c.0.s8 %v231
    %v233 = vlaneseq
    %v234 = vshrl.u32 %v233, 7
    %v235 = vsub.s32 %v232, %v234
    %v236 = vrot.slane %v220, %v235
    %v238 = vunpack.c.l.s4 1966171168
    %v239 = vunpack.c.0.s8 %v238
    %v240 = vlaneseq
    %v241 = vshrl.u32 %v240, 7
    %v242 = vsub.s32 %v239, %v241
    %v243 = vrot.slane %v227, %v242
    %v245 = vunpack.c.l.s4 1966171168
    %v246 = vunpack.c.0.s8 %v245
    %v247 = vlaneseq
    %v248 = vshrl.u32 %v247, 7
    %v249 = vsub.s32 %v246, %v248
    %v250 = vrot.slane %v228, %v249
    %v252 = vunpack.c.l.s4 1966171168
    %v253 = vunpack.c.0.s8 %v252
    %v254 = vlaneseq
    %v255 = vshrl.u32 %v254, 7
    %v256 = vsub.s32 %v253, %v255
    %v257 = vrot.slane %v229, %v256
    %v258 = vcombine.high %v236, %v236
    %v259 = vcombine.high %v243, %v243
    %v260 = vcombine.high %v250, %v250
    %v261 = vcombine.high %v257, %v257
    %v262 = vcombine.high %v147, %v147
    %v264 = vunpack.c.l.s4 1966171168
    %v265 = vunpack.c.0.s8 %v264
    %v266 = vlaneseq
    %v267 = vshrl.u32 %v266, 7
    %v268 = vsub.s32 %v265, %v267
    %v269 = vrot.slane %v147, %v268
    %v271 = vunpack.c.l.s4 1966171168
    %v272 = vunpack.c.0.s8 %v271
    %v273 = vlaneseq
    %v274 = vshrl.u32 %v273, 7
    %v275 = vsub.s32 %v272, %v274
    %v276 = vrot.slane %v262, %v275
    %v277 = vcombine.high %v269, %v269
    %v278 = vcombine.high %v276, %v276
    %v280 = vunpack.c.l.s4 1966171168
    %v281 = vunpack.c.0.s8 %v280
    %v282 = vlaneseq
    %v283 = vshrl.u32 %v282, 7
    %v284 = vsub.s32 %v281, %v283
    %v285 = vrot.slane %v269, %v284
    %v287 = vunpack.c.l.s4 1966171168
    %v288 = vunpack.c.0.s8 %v287
    %v289 = vlaneseq
    %v290 = vshrl.u32 %v289, 7
    %v291 = vsub.s32 %v288, %v290
    %v292 = vrot.slane %v276, %v291
    %v294 = vunpack.c.l.s4 1966171168
    %v295 = vunpack.c.0.s8 %v294
    %v296 = vlaneseq
    %v297 = vshrl.u32 %v296, 7
    %v298 = vsub.s32 %v295, %v297
    %v299 = vrot.slane %v277, %v298
    %v301 = vunpack.c.l.s4 1966171168
    %v302 = vunpack.c.0.s8 %v301
    %v303 = vlaneseq
    %v304 = vshrl.u32 %v303, 7
    %v305 = vsub.s32 %v302, %v304
    %v306 = vrot.slane %v278, %v305
    %v307 = vcombine.high %v285, %v285
    %v308 = vcombine.high %v292, %v292
    %v309 = vcombine.high %v299, %v299
    %v310 = vcombine.high %v306, %v306
    %v311 = vcombine.high %v149, %v149
    %v313 = vunpack.c.l.s4 1966171168
    %v314 = vunpack.c.0.s8 %v313
    %v315 = vlaneseq
    %v316 = vshrl.u32 %v315, 7
    %v317 = vsub.s32 %v314, %v316
    %v318 = vrot.slane %v149, %v317
    %v320 = vunpack.c.l.s4 1966171168
    %v321 = vunpack.c.0.s8 %v320
    %v322 = vlaneseq
    %v323 = vshrl.u32 %v322, 7
    %v324 = vsub.s32 %v321, %v323
    %v325 = vrot.slane %v311, %v324
    %v326 = vcombine.high %v318, %v318
    %v327 = vcombine.high %v325, %v325
    %v329 = vunpack.c.l.s4 1966171168
    %v330 = vunpack.c.0.s8 %v329
    %v331 = vlaneseq
    %v332 = vshrl.u32 %v331, 7
    %v333 = vsub.s32 %v330, %v332
    %v334 = vrot.slane %v318, %v333
    %v336 = vunpack.c.l.s4 1966171168
    %v337 = vunpack.c.0.s8 %v336
    %v338 = vlaneseq
    %v339 = vshrl.u32 %v338, 7
    %v340 = vsub.s32 %v337, %v339
    %v341 = vrot.slane %v325, %v340
    %v343 = vunpack.c.l.s4 1966171168
    %v344 = vunpack.c.0.s8 %v343
    %v345 = vlaneseq
    %v346 = vshrl.u32 %v345, 7
    %v347 = vsub.s32 %v344, %v346
    %v348 = vrot.slane %v326, %v347
    %v350 = vunpack.c.l.s4 1966171168
    %v351 = vunpack.c.0.s8 %v350
    %v352 = vlaneseq
    %v353 = vshrl.u32 %v352, 7
    %v354 = vsub.s32 %v351, %v353
    %v355 = vrot.slane %v327, %v354
    %v356 = vcombine.high %v334, %v334
    %v357 = vcombine.high %v341, %v341
    %v358 = vcombine.high %v348, %v348
    %v359 = vcombine.high %v355, %v355
    %v360 = vcombine.high %v151, %v151
    %v362 = vunpack.c.l.s4 1966171168
    %v363 = vunpack.c.0.s8 %v362
    %v364 = vlaneseq
    %v365 = vshrl.u32 %v364, 7
    %v366 = vsub.s32 %v363, %v365
    %v367 = vrot.slane %v151, %v366
    %v369 = vunpack.c.l.s4 1966171168
    %v370 = vunpack.c.0.s8 %v369
    %v371 = vlaneseq
    %v372 = vshrl.u32 %v371, 7
    %v373 = vsub.s32 %v370, %v372
    %v374 = vrot.slane %v360, %v373
    %v375 = vcombine.high %v367, %v367
    %v376 = vcombine.high %v374, %v374
    %v378 = vunpack.c.l.s4 1966171168
    %v379 = vunpack.c.0.s8 %v378
    %v380 = vlaneseq
    %v381 = vshrl.u32 %v380, 7
    %v382 = vsub.s32 %v379, %v381
    %v383 = vrot.slane %v367, %v382
    %v385 = vunpack.c.l.s4 1966171168
    %v386 = vunpack.c.0.s8 %v385
    %v387 = vlaneseq
    %v388 = vshrl.u32 %v387, 7
    %v389 = vsub.s32 %v386, %v388
    %v390 = vrot.slane %v374, %v389
    %v392 = vunpack.c.l.s4 1966171168
    %v393 = vunpack.c.0.s8 %v392
    %v394 = vlaneseq
    %v395 = vshrl.u32 %v394, 7
    %v396 = vsub.s32 %v393, %v395
    %v397 = vrot.slane %v375, %v396
    %v399 = vunpack.c.l.s4 1966171168
    %v400 = vunpack.c.0.s8 %v399
    %v401 = vlaneseq
    %v402 = vshrl.u32 %v401, 7
    %v403 = vsub.s32 %v400, %v402
    %v404 = vrot.slane %v376, %v403
    %v405 = vcombine.high %v383, %v383
    %v406 = vcombine.high %v390, %v390
    %v407 = vcombine.high %v397, %v397
    %v408 = vcombine.high %v404, %v404
    %v409 = vcombine.high %v153, %v153
    %v411 = vunpack.c.l.s4 1966171168
    %v412 = vunpack.c.0.s8 %v411
    %v413 = vlaneseq
    %v414 = vshrl.u32 %v413, 7
    %v415 = vsub.s32 %v412, %v414
    %v416 = vrot.slane %v153, %v415
    %v418 = vunpack.c.l.s4 1966171168
    %v419 = vunpack.c.0.s8 %v418
    %v420 = vlaneseq
    %v421 = vshrl.u32 %v420, 7
    %v422 = vsub.s32 %v419, %v421
    %v423 = vrot.slane %v409, %v422
    %v424 = vcombine.high %v416, %v416
    %v425 = vcombine.high %v423, %v423
    %v427 = vunpack.c.l.s4 1966171168
    %v428 = vunpack.c.0.s8 %v427
    %v429 = vlaneseq
    %v430 = vshrl.u32 %v429, 7
    %v431 = vsub.s32 %v428, %v430
    %v432 = vrot.slane %v416, %v431
    %v434 = vunpack.c.l.s4 1966171168
    %v435 = vunpack.c.0.s8 %v434
    %v436 = vlaneseq
    %v437 = vshrl.u32 %v436, 7
    %v438 = vsub.s32 %v435, %v437
    %v439 = vrot.slane %v423, %v438
    %v441 = vunpack.c.l.s4 1966171168
    %v442 = vunpack.c.0.s8 %v441
    %v443 = vlaneseq
    %v444 = vshrl.u32 %v443, 7
    %v445 = vsub.s32 %v442, %v444
    %v446 = vrot.slane %v424, %v445
    %v448 = vunpack.c.l.s4 1966171168
    %v449 = vunpack.c.0.s8 %v448
    %v450 = vlaneseq
    %v451 = vshrl.u32 %v450, 7
    %v452 = vsub.s32 %v449, %v451
    %v453 = vrot.slane %v425, %v452
    %v454 = vcombine.high %v432, %v432
    %v455 = vcombine.high %v439, %v439
    %v456 = vcombine.high %v446, %v446
    %v457 = vcombine.high %v453, %v453
    %v458 = vcombine.high %v155, %v155
    %v460 = vunpack.c.l.s4 1966171168
    %v461 = vunpack.c.0.s8 %v460
    %v462 = vlaneseq
    %v463 = vshrl.u32 %v462, 7
    %v464 = vsub.s32 %v461, %v463
    %v465 = vrot.slane %v155, %v464
    %v467 = vunpack.c.l.s4 1966171168
    %v468 = vunpack.c.0.s8 %v467
    %v469 = vlaneseq
    %v470 = vshrl.u32 %v469, 7
    %v471 = vsub.s32 %v468, %v470
    %v472 = vrot.slane %v458, %v471
    %v473 = vcombine.high %v465, %v465
    %v474 = vcombine.high %v472, %v472
    %v476 = vunpack.c.l.s4 1966171168
    %v477 = vunpack.c.0.s8 %v476
    %v478 = vlaneseq
    %v479 = vshrl.u32 %v478, 7
    %v480 = vsub.s32 %v477, %v479
    %v481 = vrot.slane %v465, %v480
    %v483 = vunpack.c.l.s4 1966171168
    %v484 = vunpack.c.0.s8 %v483
    %v485 = vlaneseq
    %v486 = vshrl.u32 %v485, 7
    %v487 = vsub.s32 %v484, %v486
    %v488 = vrot.slane %v472, %v487
    %v490 = vunpack.c.l.s4 1966171168
    %v491 = vunpack.c.0.s8 %v490
    %v492 = vlaneseq
    %v493 = vshrl.u32 %v492, 7
    %v494 = vsub.s32 %v491, %v493
    %v495 = vrot.slane %v473, %v494
    %v497 = vunpack.c.l.s4 1966171168
    %v498 = vunpack.c.0.s8 %v497
    %v499 = vlaneseq
    %v500 = vshrl.u32 %v499, 7
    %v501 = vsub.s32 %v498, %v500
    %v502 = vrot.slane %v474, %v501
    %v503 = vcombine.high %v481, %v481
    %v504 = vcombine.high %v488, %v488
    %v505 = vcombine.high %v495, %v495
    %v506 = vcombine.high %v502, %v502
    %v507 = vcombine.high %v157, %v157
    %v509 = vunpack.c.l.s4 1966171168
    %v510 = vunpack.c.0.s8 %v509
    %v511 = vlaneseq
    %v512 = vshrl.u32 %v511, 7
    %v513 = vsub.s32 %v510, %v512
    %v514 = vrot.slane %v157, %v513
    %v516 = vunpack.c.l.s4 1966171168
    %v517 = vunpack.c.0.s8 %v516
    %v518 = vlaneseq
    %v519 = vshrl.u32 %v518, 7
    %v520 = vsub.s32 %v517, %v519
    %v521 = vrot.slane %v507, %v520
    %v522 = vcombine.high %v514, %v514
    %v523 = vcombine.high %v521, %v521
    %v525 = vunpack.c.l.s4 1966171168
    %v526 = vunpack.c.0.s8 %v525
    %v527 = vlaneseq
    %v528 = vshrl.u32 %v527, 7
    %v529 = vsub.s32 %v526, %v528
    %v530 = vrot.slane %v514, %v529
    %v532 = vunpack.c.l.s4 1966171168
    %v533 = vunpack.c.0.s8 %v532
    %v534 = vlaneseq
    %v535 = vshrl.u32 %v534, 7
    %v536 = vsub.s32 %v533, %v535
    %v537 = vrot.slane %v521, %v536
    %v539 = vunpack.c.l.s4 1966171168
    %v540 = vunpack.c.0.s8 %v539
    %v541 = vlaneseq
    %v542 = vshrl.u32 %v541, 7
    %v543 = vsub.s32 %v540, %v542
    %v544 = vrot.slane %v522, %v543
    %v546 = vunpack.c.l.s4 1966171168
    %v547 = vunpack.c.0.s8 %v546
    %v548 = vlaneseq
    %v549 = vshrl.u32 %v548, 7
    %v550 = vsub.s32 %v547, %v549
    %v551 = vrot.slane %v523, %v550
    %v552 = vcombine.high %v530, %v530
    %v553 = vcombine.high %v537, %v537
    %v554 = vcombine.high %v544, %v544
    %v555 = vcombine.high %v551, %v551
    %v556 = vlaneseq
    %v557 = vshrl.u32 %v556, 7
    %v558 = vsub.s32 0, %v557
    %v559 = vrot.slane %v187, %v558
    %v560 = vlaneseq
    %v561 = vshrl.u32 %v560, 7
    %v562 = vsub.s32 0, %v561
    %v563 = vrot.slane %v201, %v562
    %v564 = vlaneseq
    %v565 = vshrl.u32 %v564, 7
    %v566 = vsub.s32 0, %v565
    %v567 = vrot.slane %v209, %v566
    %v568 = vlaneseq
    %v569 = vshrl.u32 %v568, 7
    %v570 = vsub.s32 0, %v569
    %v571 = vrot.slane %v211, %v570
    %v572 = vlaneseq
    %v573 = vshrl.u32 %v572, 7
    %v574 = vsub.s32 0, %v573
    %v575 = vrot.slane %v194, %v574
    %v576 = vlaneseq
    %v577 = vshrl.u32 %v576, 7
    %v578 = vsub.s32 0, %v577
    %v579 = vrot.slane %v208, %v578
    %v580 = vlaneseq
    %v581 = vshrl.u32 %v580, 7
    %v582 = vsub.s32 0, %v581
    %v583 = vrot.slane %v210, %v582
    %v584 = vlaneseq
    %v585 = vshrl.u32 %v584, 7
    %v586 = vsub.s32 0, %v585
    %v587 = vrot.slane %v212, %v586
    %v588 = vlaneseq
    %v589 = vshrl.u32 %v588, 7
    %v590 = vsub.s32 0, %v589
    %v591 = vrot.slane %v236, %v590
    %v592 = vlaneseq
    %v593 = vshrl.u32 %v592, 7
    %v594 = vsub.s32 0, %v593
    %v595 = vrot.slane %v250, %v594
    %v596 = vlaneseq
    %v597 = vshrl.u32 %v596, 7
    %v598 = vsub.s32 0, %v597
    %v599 = vrot.slane %v258, %v598
    %v600 = vlaneseq
    %v601 = vshrl.u32 %v600, 7
    %v602 = vsub.s32 0, %v601
    %v603 = vrot.slane %v260, %v602
    %v604 = vlaneseq
    %v605 = vshrl.u32 %v604, 7
    %v606 = vsub.s32 0, %v605
    %v607 = vrot.slane %v243, %v606
    %v608 = vlaneseq
    %v609 = vshrl.u32 %v608, 7
    %v610 = vsub.s32 0, %v609
    %v611 = vrot.slane %v257, %v610
    %v612 = vlaneseq
    %v613 = vshrl.u32 %v612, 7
    %v614 = vsub.s32 0, %v613
    %v615 = vrot.slane %v259, %v614
    %v616 = vlaneseq
    %v617 = vshrl.u32 %v616, 7
    %v618 = vsub.s32 0, %v617
    %v619 = vrot.slane %v261, %v618
    %v620 = vlaneseq
    %v621 = vshrl.u32 %v620, 7
    %v622 = vsub.s32 0, %v621
    %v623 = vrot.slane %v285, %v622
    %v624 = vlaneseq
    %v625 = vshrl.u32 %v624, 7
    %v626 = vsub.s32 0, %v625
    %v627 = vrot.slane %v299, %v626
    %v628 = vlaneseq
    %v629 = vshrl.u32 %v628, 7
    %v630 = vsub.s32 0, %v629
    %v631 = vrot.slane %v307, %v630
    %v632 = vlaneseq
    %v633 = vshrl.u32 %v632, 7
    %v634 = vsub.s32 0, %v633
    %v635 = vrot.slane %v309, %v634
    %v636 = vlaneseq
    %v637 = vshrl.u32 %v636, 7
    %v638 = vsub.s32 0, %v637
    %v639 = vrot.slane %v292, %v638
    %v640 = vlaneseq
    %v641 = vshrl.u32 %v640, 7
    %v642 = vsub.s32 0, %v641
    %v643 = vrot.slane %v306, %v642
    %v644 = vlaneseq
    %v645 = vshrl.u32 %v644, 7
    %v646 = vsub.s32 0, %v645
    %v647 = vrot.slane %v308, %v646
    %v648 = vlaneseq
    %v649 = vshrl.u32 %v648, 7
    %v650 = vsub.s32 0, %v649
    %v651 = vrot.slane %v310, %v650
    %v652 = vlaneseq
    %v653 = vshrl.u32 %v652, 7
    %v654 = vsub.s32 0, %v653
    %v655 = vrot.slane %v334, %v654
    %v656 = vlaneseq
    %v657 = vshrl.u32 %v656, 7
    %v658 = vsub.s32 0, %v657
    %v659 = vrot.slane %v348, %v658
    %v660 = vlaneseq
    %v661 = vshrl.u32 %v660, 7
    %v662 = vsub.s32 0, %v661
    %v663 = vrot.slane %v356, %v662
    %v664 = vlaneseq
    %v665 = vshrl.u32 %v664, 7
    %v666 = vsub.s32 0, %v665
    %v667 = vrot.slane %v358, %v666
    %v668 = vlaneseq
    %v669 = vshrl.u32 %v668, 7
    %v670 = vsub.s32 0, %v669
    %v671 = vrot.slane %v341, %v670
    %v672 = vlaneseq
    %v673 = vshrl.u32 %v672, 7
    %v674 = vsub.s32 0, %v673
    %v675 = vrot.slane %v355, %v674
    %v676 = vlaneseq
    %v677 = vshrl.u32 %v676, 7
    %v678 = vsub.s32 0, %v677
    %v679 = vrot.slane %v357, %v678
    %v680 = vlaneseq
    %v681 = vshrl.u32 %v680, 7
    %v682 = vsub.s32 0, %v681
    %v683 = vrot.slane %v359, %v682
    %v684 = vlaneseq
    %v685 = vshrl.u32 %v684, 7
    %v686 = vsub.s32 0, %v685
    %v687 = vrot.slane %v383, %v686
    %v688 = vlaneseq
    %v689 = vshrl.u32 %v688, 7
    %v690 = vsub.s32 0, %v689
    %v691 = vrot.slane %v397, %v690
    %v692 = vlaneseq
    %v693 = vshrl.u32 %v692, 7
    %v694 = vsub.s32 0, %v693
    %v695 = vrot.slane %v405, %v694
    %v696 = vlaneseq
    %v697 = vshrl.u32 %v696, 7
    %v698 = vsub.s32 0, %v697
    %v699 = vrot.slane %v407, %v698
    %v700 = vlaneseq
    %v701 = vshrl.u32 %v700, 7
    %v702 = vsub.s32 0, %v701
    %v703 = vrot.slane %v390, %v702
    %v704 = vlaneseq
    %v705 = vshrl.u32 %v704, 7
    %v706 = vsub.s32 0, %v705
    %v707 = vrot.slane %v404, %v706
    %v708 = vlaneseq
    %v709 = vshrl.u32 %v708, 7
    %v710 = vsub.s32 0, %v709
    %v711 = vrot.slane %v406, %v710
    %v712 = vlaneseq
    %v713 = vshrl.u32 %v712, 7
    %v714 = vsub.s32 0, %v713
    %v715 = vrot.slane %v408, %v714
    %v716 = vlaneseq
    %v717 = vshrl.u32 %v716, 7
    %v718 = vsub.s32 0, %v717
    %v719 = vrot.slane %v432, %v718
    %v720 = vlaneseq
    %v721 = vshrl.u32 %v720, 7
    %v722 = vsub.s32 0, %v721
    %v723 = vrot.slane %v446, %v722
    %v724 = vlaneseq
    %v725 = vshrl.u32 %v724, 7
    %v726 = vsub.s32 0, %v725
    %v727 = vrot.slane %v454, %v726
    %v728 = vlaneseq
    %v729 = vshrl.u32 %v728, 7
    %v730 = vsub.s32 0, %v729
    %v731 = vrot.slane %v456, %v730
    %v732 = vlaneseq
    %v733 = vshrl.u32 %v732, 7
    %v734 = vsub.s32 0, %v733
    %v735 = vrot.slane %v439, %v734
    %v736 = vlaneseq
    %v737 = vshrl.u32 %v736, 7
    %v738 = vsub.s32 0, %v737
    %v739 = vrot.slane %v453, %v738
    %v740 = vlaneseq
    %v741 = vshrl.u32 %v740, 7
    %v742 = vsub.s32 0, %v741
    %v743 = vrot.slane %v455, %v742
    %v744 = vlaneseq
    %v745 = vshrl.u32 %v744, 7
    %v746 = vsub.s32 0, %v745
    %v747 = vrot.slane %v457, %v746
    %v748 = vlaneseq
    %v749 = vshrl.u32 %v748, 7
    %v750 = vsub.s32 0, %v749
    %v751 = vrot.slane %v481, %v750
    %v752 = vlaneseq
    %v753 = vshrl.u32 %v752, 7
    %v754 = vsub.s32 0, %v753
    %v755 = vrot.slane %v495, %v754
    %v756 = vlaneseq
    %v757 = vshrl.u32 %v756, 7
    %v758 = vsub.s32 0, %v757
    %v759 = vrot.slane %v503, %v758
    %v760 = vlaneseq
    %v761 = vshrl.u32 %v760, 7
    %v762 = vsub.s32 0, %v761
    %v763 = vrot.slane %v505, %v762
    %v764 = vlaneseq
    %v765 = vshrl.u32 %v764, 7
    %v766 = vsub.s32 0, %v765
    %v767 = vrot.slane %v488, %v766
    %v768 = vlaneseq
    %v769 = vshrl.u32 %v768, 7
    %v770 = vsub.s32 0, %v769
    %v771 = vrot.slane %v502, %v770
    %v772 = vlaneseq
    %v773 = vshrl.u32 %v772, 7
    %v774 = vsub.s32 0, %v773
    %v775 = vrot.slane %v504, %v774
    %v776 = vlaneseq
    %v777 = vshrl.u32 %v776, 7
    %v778 = vsub.s32 0, %v777
    %v779 = vrot.slane %v506, %v778
    %v780 = vlaneseq
    %v781 = vshrl.u32 %v780, 7
    %v782 = vsub.s32 0, %v781
    %v783 = vrot.slane %v530, %v782
    %v784 = vlaneseq
    %v785 = vshrl.u32 %v784, 7
    %v786 = vsub.s32 0, %v785
    %v787 = vrot.slane %v544, %v786
    %v788 = vlaneseq
    %v789 = vshrl.u32 %v788, 7
    %v790 = vsub.s32 0, %v789
    %v791 = vrot.slane %v552, %v790
    %v792 = vlaneseq
    %v793 = vshrl.u32 %v792, 7
    %v794 = vsub.s32 0, %v793
    %v795 = vrot.slane %v554, %v794
    %v796 = vlaneseq
    %v797 = vshrl.u32 %v796, 7
    %v798 = vsub.s32 0, %v797
    %v799 = vrot.slane %v537, %v798
    %v800 = vlaneseq
    %v801 = vshrl.u32 %v800, 7
    %v802 = vsub.s32 0, %v801
    %v803 = vrot.slane %v551, %v802
    %v804 = vlaneseq
    %v805 = vshrl.u32 %v804, 7
    %v806 = vsub.s32 0, %v805
    %v807 = vrot.slane %v553, %v806
    %v808 = vlaneseq
    %v809 = vshrl.u32 %v808, 7
    %v810 = vsub.s32 0, %v809
    %v811 = vrot.slane %v555, %v810
    %876 = vrot.lane.b32.xlu0 %v136, 112
    %v877 = vpop.permute.xlu0 %876
    %878 = vrot.lane.b32.xlu0 %v141, 112
    %v879 = vpop.permute.xlu0 %878
    %880 = vrot.lane.b32.xlu0 %v147, 112
    %v881 = vpop.permute.xlu0 %880
    %882 = vrot.lane.b32.xlu0 %v149, 112
    %v883 = vpop.permute.xlu0 %882
    %884 = vrot.lane.b32.xlu0 %v151, 112
    %v885 = vpop.permute.xlu0 %884
    %886 = vrot.lane.b32.xlu0 %v153, 112
    %v887 = vpop.permute.xlu0 %886
    %888 = vrot.lane.b32.xlu0 %v155, 112
    %v889 = vpop.permute.xlu0 %888
    %890 = vrot.lane.b32.xlu0 %v157, 112
    %v891 = vpop.permute.xlu0 %890
    %v900 = vmul.f32 %v559, %v877
    %v901 = vmul.f32 %v563, %v877
    %v902 = vmul.f32 %v567, %v877
    %v903 = vmul.f32 %v571, %v877
    %v904 = vmul.f32 %v575, %v877
    %v905 = vmul.f32 %v579, %v877
    %v906 = vmul.f32 %v583, %v877
    %v907 = vmul.f32 %v587, %v877
    %v908 = vmul.f32 %v591, %v879
    %v909 = vmul.f32 %v595, %v879
    %v910 = vmul.f32 %v599, %v879
    %v911 = vmul.f32 %v603, %v879
    %v912 = vmul.f32 %v607, %v879
    %v913 = vmul.f32 %v611, %v879
    %v914 = vmul.f32 %v615, %v879
    %v915 = vmul.f32 %v619, %v879
    %v916 = vmul.f32 %v623, %v881
    %v917 = vmul.f32 %v627, %v881
    %v918 = vmul.f32 %v631, %v881
    %v919 = vmul.f32 %v635, %v881
    %v920 = vmul.f32 %v639, %v881
    %v921 = vmul.f32 %v643, %v881
    %v922 = vmul.f32 %v647, %v881
    %v923 = vmul.f32 %v651, %v881
    %v924 = vmul.f32 %v655, %v883
    %v925 = vmul.f32 %v659, %v883
    %v926 = vmul.f32 %v663, %v883
    %v927 = vmul.f32 %v667, %v883
    %v928 = vmul.f32 %v671, %v883
    %v929 = vmul.f32 %v675, %v883
    %v930 = vmul.f32 %v679, %v883
    %v931 = vmul.f32 %v683, %v883
    %v932 = vmul.f32 %v687, %v885
    %v933 = vmul.f32 %v691, %v885
    %v934 = vmul.f32 %v695, %v885
    %v935 = vmul.f32 %v699, %v885
    %v936 = vmul.f32 %v703, %v885
    %v937 = vmul.f32 %v707, %v885
    %v938 = vmul.f32 %v711, %v885
    %v939 = vmul.f32 %v715, %v885
    %v940 = vmul.f32 %v719, %v887
    %v941 = vmul.f32 %v723, %v887
    %v942 = vmul.f32 %v727, %v887
    %v943 = vmul.f32 %v731, %v887
    %v944 = vmul.f32 %v735, %v887
    %v945 = vmul.f32 %v739, %v887
    %v946 = vmul.f32 %v743, %v887
    %v947 = vmul.f32 %v747, %v887
    %v948 = vmul.f32 %v751, %v889
    %v949 = vmul.f32 %v755, %v889
    %v950 = vmul.f32 %v759, %v889
    %v951 = vmul.f32 %v763, %v889
    %v952 = vmul.f32 %v767, %v889
    %v953 = vmul.f32 %v771, %v889
    %v954 = vmul.f32 %v775, %v889
    %v955 = vmul.f32 %v779, %v889
    %v956 = vmul.f32 %v783, %v891
    %v957 = vmul.f32 %v787, %v891
    %v958 = vmul.f32 %v791, %v891
    %v959 = vmul.f32 %v795, %v891
    %v960 = vmul.f32 %v799, %v891
    %v961 = vmul.f32 %v803, %v891
    %v962 = vmul.f32 %v807, %v891
    %v963 = vmul.f32 %v811, %v891
    %vm964 = vcmask 31744
    %v965 = vsel %vm964, %v900, 0.0
    %966 = vadd.xlane.f32.xlu0 %v965
    %v967 = vpop.xlane.xlu0 %966
    %v968 = vsel %vm964, %v901, 0.0
    %969 = vadd.xlane.f32.xlu0 %v968
    %v970 = vpop.xlane.xlu0 %969
    %v971 = vsel %vm964, %v902, 0.0
    %972 = vadd.xlane.f32.xlu0 %v971
    %v973 = vpop.xlane.xlu0 %972
    %v974 = vsel %vm964, %v903, 0.0
    %975 = vadd.xlane.f32.xlu0 %v974
    %v976 = vpop.xlane.xlu0 %975
    %v977 = vsel %vm964, %v904, 0.0
    %978 = vadd.xlane.f32.xlu0 %v977
    %v979 = vpop.xlane.xlu0 %978
    %v980 = vsel %vm964, %v905, 0.0
    %981 = vadd.xlane.f32.xlu0 %v980
    %v982 = vpop.xlane.xlu0 %981
    %v983 = vsel %vm964, %v906, 0.0
    %984 = vadd.xlane.f32.xlu0 %v983
    %v985 = vpop.xlane.xlu0 %984
    %v986 = vsel %vm964, %v907, 0.0
    %987 = vadd.xlane.f32.xlu0 %v986
    %v988 = vpop.xlane.xlu0 %987
    %v989 = vsel %vm964, %v908, 0.0
    %990 = vadd.xlane.f32.xlu0 %v989
    %v991 = vpop.xlane.xlu0 %990
    %v992 = vsel %vm964, %v909, 0.0
    %993 = vadd.xlane.f32.xlu0 %v992
    %v994 = vpop.xlane.xlu0 %993
    %v995 = vsel %vm964, %v910, 0.0
    %996 = vadd.xlane.f32.xlu0 %v995
    %v997 = vpop.xlane.xlu0 %996
    %v998 = vsel %vm964, %v911, 0.0
    %999 = vadd.xlane.f32.xlu0 %v998
    %v1000 = vpop.xlane.xlu0 %999
    %v1001 = vsel %vm964, %v912, 0.0
    %1002 = vadd.xlane.f32.xlu0 %v1001
    %v1003 = vpop.xlane.xlu0 %1002
    %v1004 = vsel %vm964, %v913, 0.0
    %1005 = vadd.xlane.f32.xlu0 %v1004
    %v1006 = vpop.xlane.xlu0 %1005
    %v1007 = vsel %vm964, %v914, 0.0
    %1008 = vadd.xlane.f32.xlu0 %v1007
    %v1009 = vpop.xlane.xlu0 %1008
    %v1010 = vsel %vm964, %v915, 0.0
    %1011 = vadd.xlane.f32.xlu0 %v1010
    %v1012 = vpop.xlane.xlu0 %1011
    %v1013 = vsel %vm964, %v916, 0.0
    %1014 = vadd.xlane.f32.xlu0 %v1013
    %v1015 = vpop.xlane.xlu0 %1014
    %v1016 = vsel %vm964, %v917, 0.0
    %1017 = vadd.xlane.f32.xlu0 %v1016
    %v1018 = vpop.xlane.xlu0 %1017
    %v1019 = vsel %vm964, %v918, 0.0
    %1020 = vadd.xlane.f32.xlu0 %v1019
    %v1021 = vpop.xlane.xlu0 %1020
    %v1022 = vsel %vm964, %v919, 0.0
    %1023 = vadd.xlane.f32.xlu0 %v1022
    %v1024 = vpop.xlane.xlu0 %1023
    %v1025 = vsel %vm964, %v920, 0.0
    %1026 = vadd.xlane.f32.xlu0 %v1025
    %v1027 = vpop.xlane.xlu0 %1026
    %v1028 = vsel %vm964, %v921, 0.0
    %1029 = vadd.xlane.f32.xlu0 %v1028
    %v1030 = vpop.xlane.xlu0 %1029
    %v1031 = vsel %vm964, %v922, 0.0
    %1032 = vadd.xlane.f32.xlu0 %v1031
    %v1033 = vpop.xlane.xlu0 %1032
    %v1034 = vsel %vm964, %v923, 0.0
    %1035 = vadd.xlane.f32.xlu0 %v1034
    %v1036 = vpop.xlane.xlu0 %1035
    %v1037 = vsel %vm964, %v924, 0.0
    %1038 = vadd.xlane.f32.xlu0 %v1037
    %v1039 = vpop.xlane.xlu0 %1038
    %v1040 = vsel %vm964, %v925, 0.0
    %1041 = vadd.xlane.f32.xlu0 %v1040
    %v1042 = vpop.xlane.xlu0 %1041
    %v1043 = vsel %vm964, %v926, 0.0
    %1044 = vadd.xlane.f32.xlu0 %v1043
    %v1045 = vpop.xlane.xlu0 %1044
    %v1046 = vsel %vm964, %v927, 0.0
    %1047 = vadd.xlane.f32.xlu0 %v1046
    %v1048 = vpop.xlane.xlu0 %1047
    %v1049 = vsel %vm964, %v928, 0.0
    %1050 = vadd.xlane.f32.xlu0 %v1049
    %v1051 = vpop.xlane.xlu0 %1050
    %v1052 = vsel %vm964, %v929, 0.0
    %1053 = vadd.xlane.f32.xlu0 %v1052
    %v1054 = vpop.xlane.xlu0 %1053
    %v1055 = vsel %vm964, %v930, 0.0
    %1056 = vadd.xlane.f32.xlu0 %v1055
    %v1057 = vpop.xlane.xlu0 %1056
    %v1058 = vsel %vm964, %v931, 0.0
    %1059 = vadd.xlane.f32.xlu0 %v1058
    %v1060 = vpop.xlane.xlu0 %1059
    %v1061 = vsel %vm964, %v932, 0.0
    %1062 = vadd.xlane.f32.xlu0 %v1061
    %v1063 = vpop.xlane.xlu0 %1062
    %v1064 = vsel %vm964, %v933, 0.0
    %1065 = vadd.xlane.f32.xlu0 %v1064
    %v1066 = vpop.xlane.xlu0 %1065
    %v1067 = vsel %vm964, %v934, 0.0
    %1068 = vadd.xlane.f32.xlu0 %v1067
    %v1069 = vpop.xlane.xlu0 %1068
    %v1070 = vsel %vm964, %v935, 0.0
    %1071 = vadd.xlane.f32.xlu0 %v1070
    %v1072 = vpop.xlane.xlu0 %1071
    %v1073 = vsel %vm964, %v936, 0.0
    %1074 = vadd.xlane.f32.xlu0 %v1073
    %v1075 = vpop.xlane.xlu0 %1074
    %v1076 = vsel %vm964, %v937, 0.0
    %1077 = vadd.xlane.f32.xlu0 %v1076
    %v1078 = vpop.xlane.xlu0 %1077
    %v1079 = vsel %vm964, %v938, 0.0
    %1080 = vadd.xlane.f32.xlu0 %v1079
    %v1081 = vpop.xlane.xlu0 %1080
    %v1082 = vsel %vm964, %v939, 0.0
    %1083 = vadd.xlane.f32.xlu0 %v1082
    %v1084 = vpop.xlane.xlu0 %1083
    %v1085 = vsel %vm964, %v940, 0.0
    %1086 = vadd.xlane.f32.xlu0 %v1085
    %v1087 = vpop.xlane.xlu0 %1086
    %v1088 = vsel %vm964, %v941, 0.0
    %1089 = vadd.xlane.f32.xlu0 %v1088
    %v1090 = vpop.xlane.xlu0 %1089
    %v1091 = vsel %vm964, %v942, 0.0
    %1092 = vadd.xlane.f32.xlu0 %v1091
    %v1093 = vpop.xlane.xlu0 %1092
    %v1094 = vsel %vm964, %v943, 0.0
    %1095 = vadd.xlane.f32.xlu0 %v1094
    %v1096 = vpop.xlane.xlu0 %1095
    %v1097 = vsel %vm964, %v944, 0.0
    %1098 = vadd.xlane.f32.xlu0 %v1097
    %v1099 = vpop.xlane.xlu0 %1098
    %v1100 = vsel %vm964, %v945, 0.0
    %1101 = vadd.xlane.f32.xlu0 %v1100
    %v1102 = vpop.xlane.xlu0 %1101
    %v1103 = vsel %vm964, %v946, 0.0
    %1104 = vadd.xlane.f32.xlu0 %v1103
    %v1105 = vpop.xlane.xlu0 %1104
    %v1106 = vsel %vm964, %v947, 0.0
    %1107 = vadd.xlane.f32.xlu0 %v1106
    %v1108 = vpop.xlane.xlu0 %1107
    %v1109 = vsel %vm964, %v948, 0.0
    %1110 = vadd.xlane.f32.xlu0 %v1109
    %v1111 = vpop.xlane.xlu0 %1110
    %v1112 = vsel %vm964, %v949, 0.0
    %1113 = vadd.xlane.f32.xlu0 %v1112
    %v1114 = vpop.xlane.xlu0 %1113
    %v1115 = vsel %vm964, %v950, 0.0
    %1116 = vadd.xlane.f32.xlu0 %v1115
    %v1117 = vpop.xlane.xlu0 %1116
    %v1118 = vsel %vm964, %v951, 0.0
    %1119 = vadd.xlane.f32.xlu0 %v1118
    %v1120 = vpop.xlane.xlu0 %1119
    %v1121 = vsel %vm964, %v952, 0.0
    %1122 = vadd.xlane.f32.xlu0 %v1121
    %v1123 = vpop.xlane.xlu0 %1122
    %v1124 = vsel %vm964, %v953, 0.0
    %1125 = vadd.xlane.f32.xlu0 %v1124
    %v1126 = vpop.xlane.xlu0 %1125
    %v1127 = vsel %vm964, %v954, 0.0
    %1128 = vadd.xlane.f32.xlu0 %v1127
    %v1129 = vpop.xlane.xlu0 %1128
    %v1130 = vsel %vm964, %v955, 0.0
    %1131 = vadd.xlane.f32.xlu0 %v1130
    %v1132 = vpop.xlane.xlu0 %1131
    %v1133 = vsel %vm964, %v956, 0.0
    %1134 = vadd.xlane.f32.xlu0 %v1133
    %v1135 = vpop.xlane.xlu0 %1134
    %v1136 = vsel %vm964, %v957, 0.0
    %1137 = vadd.xlane.f32.xlu0 %v1136
    %v1138 = vpop.xlane.xlu0 %1137
    %v1139 = vsel %vm964, %v958, 0.0
    %1140 = vadd.xlane.f32.xlu0 %v1139
    %v1141 = vpop.xlane.xlu0 %1140
    %v1142 = vsel %vm964, %v959, 0.0
    %1143 = vadd.xlane.f32.xlu0 %v1142
    %v1144 = vpop.xlane.xlu0 %1143
    %v1145 = vsel %vm964, %v960, 0.0
    %1146 = vadd.xlane.f32.xlu0 %v1145
    %v1147 = vpop.xlane.xlu0 %1146
    %v1148 = vsel %vm964, %v961, 0.0
    %1149 = vadd.xlane.f32.xlu0 %v1148
    %v1150 = vpop.xlane.xlu0 %1149
    %v1151 = vsel %vm964, %v962, 0.0
    %1152 = vadd.xlane.f32.xlu0 %v1151
    %v1153 = vpop.xlane.xlu0 %1152
    %v1154 = vsel %vm964, %v963, 0.0
    %1155 = vadd.xlane.f32.xlu0 %v1154
    %v1156 = vpop.xlane.xlu0 %1155
    %v1157 = vmul.f32 %v967, 0.35355338
    %v1158 = vmul.f32 %v970, 0.35355338
    %v1159 = vmul.f32 %v973, 0.35355338
    %v1160 = vmul.f32 %v976, 0.35355338
    %v1161 = vmul.f32 %v979, 0.35355338
    %v1162 = vmul.f32 %v982, 0.35355338
    %v1163 = vmul.f32 %v985, 0.35355338
    %v1164 = vmul.f32 %v988, 0.35355338
    %v1165 = vmul.f32 %v991, 0.35355338
    %v1166 = vmul.f32 %v994, 0.35355338
    %v1167 = vmul.f32 %v997, 0.35355338
    %v1168 = vmul.f32 %v1000, 0.35355338
    %v1169 = vmul.f32 %v1003, 0.35355338
    %v1170 = vmul.f32 %v1006, 0.35355338
    %v1171 = vmul.f32 %v1009, 0.35355338
    %v1172 = vmul.f32 %v1012, 0.35355338
    %v1173 = vmul.f32 %v1015, 0.35355338
    %v1174 = vmul.f32 %v1018, 0.35355338
    %v1175 = vmul.f32 %v1021, 0.35355338
    %v1176 = vmul.f32 %v1024, 0.35355338
    %v1177 = vmul.f32 %v1027, 0.35355338
    %v1178 = vmul.f32 %v1030, 0.35355338
    %v1179 = vmul.f32 %v1033, 0.35355338
    %v1180 = vmul.f32 %v1036, 0.35355338
    %v1181 = vmul.f32 %v1039, 0.35355338
    %v1182 = vmul.f32 %v1042, 0.35355338
    %v1183 = vmul.f32 %v1045, 0.35355338
    %v1184 = vmul.f32 %v1048, 0.35355338
    %v1185 = vmul.f32 %v1051, 0.35355338
    %v1186 = vmul.f32 %v1054, 0.35355338
    %v1187 = vmul.f32 %v1057, 0.35355338
    %v1188 = vmul.f32 %v1060, 0.35355338
    %v1189 = vmul.f32 %v1063, 0.35355338
    %v1190 = vmul.f32 %v1066, 0.35355338
    %v1191 = vmul.f32 %v1069, 0.35355338
    %v1192 = vmul.f32 %v1072, 0.35355338
    %v1193 = vmul.f32 %v1075, 0.35355338
    %v1194 = vmul.f32 %v1078, 0.35355338
    %v1195 = vmul.f32 %v1081, 0.35355338
    %v1196 = vmul.f32 %v1084, 0.35355338
    %v1197 = vmul.f32 %v1087, 0.35355338
    %v1198 = vmul.f32 %v1090, 0.35355338
    %v1199 = vmul.f32 %v1093, 0.35355338
    %v1200 = vmul.f32 %v1096, 0.35355338
    %v1201 = vmul.f32 %v1099, 0.35355338
    %v1202 = vmul.f32 %v1102, 0.35355338
    %v1203 = vmul.f32 %v1105, 0.35355338
    %v1204 = vmul.f32 %v1108, 0.35355338
    %v1205 = vmul.f32 %v1111, 0.35355338
    %v1206 = vmul.f32 %v1114, 0.35355338
    %v1207 = vmul.f32 %v1117, 0.35355338
    %v1208 = vmul.f32 %v1120, 0.35355338
    %v1209 = vmul.f32 %v1123, 0.35355338
    %v1210 = vmul.f32 %v1126, 0.35355338
    %v1211 = vmul.f32 %v1129, 0.35355338
    %v1212 = vmul.f32 %v1132, 0.35355338
    %v1213 = vmul.f32 %v1135, 0.35355338
    %v1214 = vmul.f32 %v1138, 0.35355338
    %v1215 = vmul.f32 %v1141, 0.35355338
    %v1216 = vmul.f32 %v1144, 0.35355338
    %v1217 = vmul.f32 %v1147, 0.35355338
    %v1218 = vmul.f32 %v1150, 0.35355338
    %v1219 = vmul.f32 %v1153, 0.35355338
    %v1220 = vmul.f32 %v1156, 0.35355338
    %v1221 = vlaneseq
    %v1222 = vshrl.u32 %v1221, 7
    %v1223 = vlaneseq
    %v1224 = vand.u32 %v1223, 127
    %vm1225 = vcmp.le.s32.totalorder %v1224, %v1222
    %v1226 = vsel %vm1225, 0.0, -1e+09
    %v1228 = vlaneseq
    %v1229 = vshrl.u32 %v1228, 7
    %v1230 = vsub.s32 0, %v1229
    %v1231 = vrot.slane %v1226, %v1230
    %1233 = vbcast.lane.b32.xlu0 %v1231, 256
    %v1234 = vpop.permute.xlu0 %1233
    %v1235 = vlaneseq
    %v1236 = vshrl.u32 %v1235, 7
    %v1237 = vsub.s32 1, %v1236
    %v1238 = vrot.slane %v1226, %v1237
    %1240 = vbcast.lane.b32.xlu0 %v1238, 256
    %v1241 = vpop.permute.xlu0 %1240
    %v1242 = vlaneseq
    %v1243 = vshrl.u32 %v1242, 7
    %v1244 = vsub.s32 2, %v1243
    %v1245 = vrot.slane %v1226, %v1244
    %1247 = vbcast.lane.b32.xlu0 %v1245, 256
    %v1248 = vpop.permute.xlu0 %1247
    %v1249 = vlaneseq
    %v1250 = vshrl.u32 %v1249, 7
    %v1251 = vsub.s32 3, %v1250
    %v1252 = vrot.slane %v1226, %v1251
    %1254 = vbcast.lane.b32.xlu0 %v1252, 256
    %v1255 = vpop.permute.xlu0 %1254
    %v1256 = vlaneseq
    %v1257 = vshrl.u32 %v1256, 7
    %v1258 = vsub.s32 4, %v1257
    %v1259 = vrot.slane %v1226, %v1258
    %1261 = vbcast.lane.b32.xlu0 %v1259, 256
    %v1262 = vpop.permute.xlu0 %1261
    %v1263 = vlaneseq
    %v1264 = vshrl.u32 %v1263, 7
    %v1265 = vsub.s32 5, %v1264
    %v1266 = vrot.slane %v1226, %v1265
    %1268 = vbcast.lane.b32.xlu0 %v1266, 256
    %v1269 = vpop.permute.xlu0 %1268
    %v1270 = vlaneseq
    %v1271 = vshrl.u32 %v1270, 7
    %v1272 = vsub.s32 6, %v1271
    %v1273 = vrot.slane %v1226, %v1272
    %1275 = vbcast.lane.b32.xlu0 %v1273, 256
    %v1276 = vpop.permute.xlu0 %1275
    %v1277 = vlaneseq
    %v1278 = vshrl.u32 %v1277, 7
    %v1279 = vsub.s32 7, %v1278
    %v1280 = vrot.slane %v1226, %v1279
    %1282 = vbcast.lane.b32.xlu0 %v1280, 256
    %v1283 = vpop.permute.xlu0 %1282
    %v1292 = vadd.f32 %v1157, %v1234
    %v1293 = vadd.f32 %v1158, %v1241
    %v1294 = vadd.f32 %v1159, %v1248
    %v1295 = vadd.f32 %v1160, %v1255
    %v1296 = vadd.f32 %v1161, %v1262
    %v1297 = vadd.f32 %v1162, %v1269
    %v1298 = vadd.f32 %v1163, %v1276
    %v1299 = vadd.f32 %v1164, %v1283
    %v1300 = vadd.f32 %v1165, %v1234
    %v1301 = vadd.f32 %v1166, %v1241
    %v1302 = vadd.f32 %v1167, %v1248
    %v1303 = vadd.f32 %v1168, %v1255
    %v1304 = vadd.f32 %v1169, %v1262
    %v1305 = vadd.f32 %v1170, %v1269
    %v1306 = vadd.f32 %v1171, %v1276
    %v1307 = vadd.f32 %v1172, %v1283
    %v1308 = vadd.f32 %v1173, %v1234
    %v1309 = vadd.f32 %v1174, %v1241
    %v1310 = vadd.f32 %v1175, %v1248
    %v1311 = vadd.f32 %v1176, %v1255
    %v1312 = vadd.f32 %v1177, %v1262
    %v1313 = vadd.f32 %v1178, %v1269
    %v1314 = vadd.f32 %v1179, %v1276
    %v1315 = vadd.f32 %v1180, %v1283
    %v1316 = vadd.f32 %v1181, %v1234
    %v1317 = vadd.f32 %v1182, %v1241
    %v1318 = vadd.f32 %v1183, %v1248
    %v1319 = vadd.f32 %v1184, %v1255
    %v1320 = vadd.f32 %v1185, %v1262
    %v1321 = vadd.f32 %v1186, %v1269
    %v1322 = vadd.f32 %v1187, %v1276
    %v1323 = vadd.f32 %v1188, %v1283
    %v1324 = vadd.f32 %v1189, %v1234
    %v1325 = vadd.f32 %v1190, %v1241
    %v1326 = vadd.f32 %v1191, %v1248
    %v1327 = vadd.f32 %v1192, %v1255
    %v1328 = vadd.f32 %v1193, %v1262
    %v1329 = vadd.f32 %v1194, %v1269
    %v1330 = vadd.f32 %v1195, %v1276
    %v1331 = vadd.f32 %v1196, %v1283
    %v1332 = vadd.f32 %v1197, %v1234
    %v1333 = vadd.f32 %v1198, %v1241
    %v1334 = vadd.f32 %v1199, %v1248
    %v1335 = vadd.f32 %v1200, %v1255
    %v1336 = vadd.f32 %v1201, %v1262
    %v1337 = vadd.f32 %v1202, %v1269
    %v1338 = vadd.f32 %v1203, %v1276
    %v1339 = vadd.f32 %v1204, %v1283
    %v1340 = vadd.f32 %v1205, %v1234
    %v1341 = vadd.f32 %v1206, %v1241
    %v1342 = vadd.f32 %v1207, %v1248
    %v1343 = vadd.f32 %v1208, %v1255
    %v1344 = vadd.f32 %v1209, %v1262
    %v1345 = vadd.f32 %v1210, %v1269
    %v1346 = vadd.f32 %v1211, %v1276
    %v1347 = vadd.f32 %v1212, %v1283
    %v1348 = vadd.f32 %v1213, %v1234
    %v1349 = vadd.f32 %v1214, %v1241
    %v1350 = vadd.f32 %v1215, %v1248
    %v1351 = vadd.f32 %v1216, %v1255
    %v1352 = vadd.f32 %v1217, %v1262
    %v1353 = vadd.f32 %v1218, %v1269
    %v1354 = vadd.f32 %v1219, %v1276
    %v1355 = vadd.f32 %v1220, %v1283
    %1420 = vset.pattern.permute.xlu0 0
    %1421 = vperm.xlu0 %1420, %v1292
    %v1422 = vpop.permute.xlu0 %1421
    %1423 = vset.pattern.permute.xlu0 0
    %1424 = vperm.xlu0 %1423, %v1293
    %v1425 = vpop.permute.xlu0 %1424
    %1426 = vset.pattern.permute.xlu0 0
    %1427 = vperm.xlu0 %1426, %v1294
    %v1428 = vpop.permute.xlu0 %1427
    %1429 = vset.pattern.permute.xlu0 0
    %1430 = vperm.xlu0 %1429, %v1295
    %v1431 = vpop.permute.xlu0 %1430
    %1432 = vset.pattern.permute.xlu0 0
    %1433 = vperm.xlu0 %1432, %v1296
    %v1434 = vpop.permute.xlu0 %1433
    %1435 = vset.pattern.permute.xlu0 0
    %1436 = vperm.xlu0 %1435, %v1297
    %v1437 = vpop.permute.xlu0 %1436
    %1438 = vset.pattern.permute.xlu0 0
    %1439 = vperm.xlu0 %1438, %v1298
    %v1440 = vpop.permute.xlu0 %1439
    %1441 = vset.pattern.permute.xlu0 0
    %1442 = vperm.xlu0 %1441, %v1299
    %v1443 = vpop.permute.xlu0 %1442
    %1444 = vset.pattern.permute.xlu0 0
    %1445 = vperm.xlu0 %1444, %v1300
    %v1446 = vpop.permute.xlu0 %1445
    %1447 = vset.pattern.permute.xlu0 0
    %1448 = vperm.xlu0 %1447, %v1301
    %v1449 = vpop.permute.xlu0 %1448
    %1450 = vset.pattern.permute.xlu0 0
    %1451 = vperm.xlu0 %1450, %v1302
    %v1452 = vpop.permute.xlu0 %1451
    %1453 = vset.pattern.permute.xlu0 0
    %1454 = vperm.xlu0 %1453, %v1303
    %v1455 = vpop.permute.xlu0 %1454
    %1456 = vset.pattern.permute.xlu0 0
    %1457 = vperm.xlu0 %1456, %v1304
    %v1458 = vpop.permute.xlu0 %1457
    %1459 = vset.pattern.permute.xlu0 0
    %1460 = vperm.xlu0 %1459, %v1305
    %v1461 = vpop.permute.xlu0 %1460
    %1462 = vset.pattern.permute.xlu0 0
    %1463 = vperm.xlu0 %1462, %v1306
    %v1464 = vpop.permute.xlu0 %1463
    %1465 = vset.pattern.permute.xlu0 0
    %1466 = vperm.xlu0 %1465, %v1307
    %v1467 = vpop.permute.xlu0 %1466
    %1468 = vset.pattern.permute.xlu0 0
    %1469 = vperm.xlu0 %1468, %v1308
    %v1470 = vpop.permute.xlu0 %1469
    %1471 = vset.pattern.permute.xlu0 0
    %1472 = vperm.xlu0 %1471, %v1309
    %v1473 = vpop.permute.xlu0 %1472
    %1474 = vset.pattern.permute.xlu0 0
    %1475 = vperm.xlu0 %1474, %v1310
    %v1476 = vpop.permute.xlu0 %1475
    %1477 = vset.pattern.permute.xlu0 0
    %1478 = vperm.xlu0 %1477, %v1311
    %v1479 = vpop.permute.xlu0 %1478
    %1480 = vset.pattern.permute.xlu0 0
    %1481 = vperm.xlu0 %1480, %v1312
    %v1482 = vpop.permute.xlu0 %1481
    %1483 = vset.pattern.permute.xlu0 0
    %1484 = vperm.xlu0 %1483, %v1313
    %v1485 = vpop.permute.xlu0 %1484
    %1486 = vset.pattern.permute.xlu0 0
    %1487 = vperm.xlu0 %1486, %v1314
    %v1488 = vpop.permute.xlu0 %1487
    %1489 = vset.pattern.permute.xlu0 0
    %1490 = vperm.xlu0 %1489, %v1315
    %v1491 = vpop.permute.xlu0 %1490
    %1492 = vset.pattern.permute.xlu0 0
    %1493 = vperm.xlu0 %1492, %v1316
    %v1494 = vpop.permute.xlu0 %1493
    %1495 = vset.pattern.permute.xlu0 0
    %1496 = vperm.xlu0 %1495, %v1317
    %v1497 = vpop.permute.xlu0 %1496
    %1498 = vset.pattern.permute.xlu0 0
    %1499 = vperm.xlu0 %1498, %v1318
    %v1500 = vpop.permute.xlu0 %1499
    %1501 = vset.pattern.permute.xlu0 0
    %1502 = vperm.xlu0 %1501, %v1319
    %v1503 = vpop.permute.xlu0 %1502
    %1504 = vset.pattern.permute.xlu0 0
    %1505 = vperm.xlu0 %1504, %v1320
    %v1506 = vpop.permute.xlu0 %1505
    %1507 = vset.pattern.permute.xlu0 0
    %1508 = vperm.xlu0 %1507, %v1321
    %v1509 = vpop.permute.xlu0 %1508
    %1510 = vset.pattern.permute.xlu0 0
    %1511 = vperm.xlu0 %1510, %v1322
    %v1512 = vpop.permute.xlu0 %1511
    %1513 = vset.pattern.permute.xlu0 0
    %1514 = vperm.xlu0 %1513, %v1323
    %v1515 = vpop.permute.xlu0 %1514
    %1516 = vset.pattern.permute.xlu0 0
    %1517 = vperm.xlu0 %1516, %v1324
    %v1518 = vpop.permute.xlu0 %1517
    %1519 = vset.pattern.permute.xlu0 0
    %1520 = vperm.xlu0 %1519, %v1325
    %v1521 = vpop.permute.xlu0 %1520
    %1522 = vset.pattern.permute.xlu0 0
    %1523 = vperm.xlu0 %1522, %v1326
    %v1524 = vpop.permute.xlu0 %1523
    %1525 = vset.pattern.permute.xlu0 0
    %1526 = vperm.xlu0 %1525, %v1327
    %v1527 = vpop.permute.xlu0 %1526
    %1528 = vset.pattern.permute.xlu0 0
    %1529 = vperm.xlu0 %1528, %v1328
    %v1530 = vpop.permute.xlu0 %1529
    %1531 = vset.pattern.permute.xlu0 0
    %1532 = vperm.xlu0 %1531, %v1329
    %v1533 = vpop.permute.xlu0 %1532
    %1534 = vset.pattern.permute.xlu0 0
    %1535 = vperm.xlu0 %1534, %v1330
    %v1536 = vpop.permute.xlu0 %1535
    %1537 = vset.pattern.permute.xlu0 0
    %1538 = vperm.xlu0 %1537, %v1331
    %v1539 = vpop.permute.xlu0 %1538
    %1540 = vset.pattern.permute.xlu0 0
    %1541 = vperm.xlu0 %1540, %v1332
    %v1542 = vpop.permute.xlu0 %1541
    %1543 = vset.pattern.permute.xlu0 0
    %1544 = vperm.xlu0 %1543, %v1333
    %v1545 = vpop.permute.xlu0 %1544
    %1546 = vset.pattern.permute.xlu0 0
    %1547 = vperm.xlu0 %1546, %v1334
    %v1548 = vpop.permute.xlu0 %1547
    %1549 = vset.pattern.permute.xlu0 0
    %1550 = vperm.xlu0 %1549, %v1335
    %v1551 = vpop.permute.xlu0 %1550
    %1552 = vset.pattern.permute.xlu0 0
    %1553 = vperm.xlu0 %1552, %v1336
    %v1554 = vpop.permute.xlu0 %1553
    %1555 = vset.pattern.permute.xlu0 0
    %1556 = vperm.xlu0 %1555, %v1337
    %v1557 = vpop.permute.xlu0 %1556
    %1558 = vset.pattern.permute.xlu0 0
    %1559 = vperm.xlu0 %1558, %v1338
    %v1560 = vpop.permute.xlu0 %1559
    %1561 = vset.pattern.permute.xlu0 0
    %1562 = vperm.xlu0 %1561, %v1339
    %v1563 = vpop.permute.xlu0 %1562
    %1564 = vset.pattern.permute.xlu0 0
    %1565 = vperm.xlu0 %1564, %v1340
    %v1566 = vpop.permute.xlu0 %1565
    %1567 = vset.pattern.permute.xlu0 0
    %1568 = vperm.xlu0 %1567, %v1341
    %v1569 = vpop.permute.xlu0 %1568
    %1570 = vset.pattern.permute.xlu0 0
    %1571 = vperm.xlu0 %1570, %v1342
    %v1572 = vpop.permute.xlu0 %1571
    %1573 = vset.pattern.permute.xlu0 0
    %1574 = vperm.xlu0 %1573, %v1343
    %v1575 = vpop.permute.xlu0 %1574
    %1576 = vset.pattern.permute.xlu0 0
    %1577 = vperm.xlu0 %1576, %v1344
    %v1578 = vpop.permute.xlu0 %1577
    %1579 = vset.pattern.permute.xlu0 0
    %1580 = vperm.xlu0 %1579, %v1345
    %v1581 = vpop.permute.xlu0 %1580
    %1582 = vset.pattern.permute.xlu0 0
    %1583 = vperm.xlu0 %1582, %v1346
    %v1584 = vpop.permute.xlu0 %1583
    %1585 = vset.pattern.permute.xlu0 0
    %1586 = vperm.xlu0 %1585, %v1347
    %v1587 = vpop.permute.xlu0 %1586
    %1588 = vset.pattern.permute.xlu0 0
    %1589 = vperm.xlu0 %1588, %v1348
    %v1590 = vpop.permute.xlu0 %1589
    %1591 = vset.pattern.permute.xlu0 0
    %1592 = vperm.xlu0 %1591, %v1349
    %v1593 = vpop.permute.xlu0 %1592
    %1594 = vset.pattern.permute.xlu0 0
    %1595 = vperm.xlu0 %1594, %v1350
    %v1596 = vpop.permute.xlu0 %1595
    %1597 = vset.pattern.permute.xlu0 0
    %1598 = vperm.xlu0 %1597, %v1351
    %v1599 = vpop.permute.xlu0 %1598
    %1600 = vset.pattern.permute.xlu0 0
    %1601 = vperm.xlu0 %1600, %v1352
    %v1602 = vpop.permute.xlu0 %1601
    %1603 = vset.pattern.permute.xlu0 0
    %1604 = vperm.xlu0 %1603, %v1353
    %v1605 = vpop.permute.xlu0 %1604
    %1606 = vset.pattern.permute.xlu0 0
    %1607 = vperm.xlu0 %1606, %v1354
    %v1608 = vpop.permute.xlu0 %1607
    %1609 = vset.pattern.permute.xlu0 0
    %1610 = vperm.xlu0 %1609, %v1355
    %v1611 = vpop.permute.xlu0 %1610
    %v1612 = vlaneseq
    %v1613 = vshrl.u32 %v1612, 7
    %v1614 = vsub.s32 %v1224, %v1613
    %v1615 = vrot.slane %v1422, %v1614
    %v1616 = vlaneseq
    %v1617 = vshrl.u32 %v1616, 7
    %v1618 = vsub.s32 %v1224, %v1617
    %v1619 = vrot.slane %v1425, %v1618
    %v1620 = vlaneseq
    %v1621 = vshrl.u32 %v1620, 7
    %v1622 = vsub.s32 %v1224, %v1621
    %v1623 = vrot.slane %v1428, %v1622
    %v1624 = vlaneseq
    %v1625 = vshrl.u32 %v1624, 7
    %v1626 = vsub.s32 %v1224, %v1625
    %v1627 = vrot.slane %v1431, %v1626
    %v1628 = vlaneseq
    %v1629 = vshrl.u32 %v1628, 7
    %v1630 = vsub.s32 %v1224, %v1629
    %v1631 = vrot.slane %v1434, %v1630
    %v1632 = vlaneseq
    %v1633 = vshrl.u32 %v1632, 7
    %v1634 = vsub.s32 %v1224, %v1633
    %v1635 = vrot.slane %v1437, %v1634
    %v1636 = vlaneseq
    %v1637 = vshrl.u32 %v1636, 7
    %v1638 = vsub.s32 %v1224, %v1637
    %v1639 = vrot.slane %v1440, %v1638
    %v1640 = vlaneseq
    %v1641 = vshrl.u32 %v1640, 7
    %v1642 = vsub.s32 %v1224, %v1641
    %v1643 = vrot.slane %v1443, %v1642
    %v1644 = vlaneseq
    %v1645 = vshrl.u32 %v1644, 7
    %v1646 = vsub.s32 %v1224, %v1645
    %v1647 = vrot.slane %v1446, %v1646
    %v1648 = vlaneseq
    %v1649 = vshrl.u32 %v1648, 7
    %v1650 = vsub.s32 %v1224, %v1649
    %v1651 = vrot.slane %v1449, %v1650
    %v1652 = vlaneseq
    %v1653 = vshrl.u32 %v1652, 7
    %v1654 = vsub.s32 %v1224, %v1653
    %v1655 = vrot.slane %v1452, %v1654
    %v1656 = vlaneseq
    %v1657 = vshrl.u32 %v1656, 7
    %v1658 = vsub.s32 %v1224, %v1657
    %v1659 = vrot.slane %v1455, %v1658
    %v1660 = vlaneseq
    %v1661 = vshrl.u32 %v1660, 7
    %v1662 = vsub.s32 %v1224, %v1661
    %v1663 = vrot.slane %v1458, %v1662
    %v1664 = vlaneseq
    %v1665 = vshrl.u32 %v1664, 7
    %v1666 = vsub.s32 %v1224, %v1665
    %v1667 = vrot.slane %v1461, %v1666
    %v1668 = vlaneseq
    %v1669 = vshrl.u32 %v1668, 7
    %v1670 = vsub.s32 %v1224, %v1669
    %v1671 = vrot.slane %v1464, %v1670
    %v1672 = vlaneseq
    %v1673 = vshrl.u32 %v1672, 7
    %v1674 = vsub.s32 %v1224, %v1673
    %v1675 = vrot.slane %v1467, %v1674
    %v1676 = vlaneseq
    %v1677 = vshrl.u32 %v1676, 7
    %v1678 = vsub.s32 %v1224, %v1677
    %v1679 = vrot.slane %v1470, %v1678
    %v1680 = vlaneseq
    %v1681 = vshrl.u32 %v1680, 7
    %v1682 = vsub.s32 %v1224, %v1681
    %v1683 = vrot.slane %v1473, %v1682
    %v1684 = vlaneseq
    %v1685 = vshrl.u32 %v1684, 7
    %v1686 = vsub.s32 %v1224, %v1685
    %v1687 = vrot.slane %v1476, %v1686
    %v1688 = vlaneseq
    %v1689 = vshrl.u32 %v1688, 7
    %v1690 = vsub.s32 %v1224, %v1689
    %v1691 = vrot.slane %v1479, %v1690
    %v1692 = vlaneseq
    %v1693 = vshrl.u32 %v1692, 7
    %v1694 = vsub.s32 %v1224, %v1693
    %v1695 = vrot.slane %v1482, %v1694
    %v1696 = vlaneseq
    %v1697 = vshrl.u32 %v1696, 7
    %v1698 = vsub.s32 %v1224, %v1697
    %v1699 = vrot.slane %v1485, %v1698
    %v1700 = vlaneseq
    %v1701 = vshrl.u32 %v1700, 7
    %v1702 = vsub.s32 %v1224, %v1701
    %v1703 = vrot.slane %v1488, %v1702
    %v1704 = vlaneseq
    %v1705 = vshrl.u32 %v1704, 7
    %v1706 = vsub.s32 %v1224, %v1705
    %v1707 = vrot.slane %v1491, %v1706
    %v1708 = vlaneseq
    %v1709 = vshrl.u32 %v1708, 7
    %v1710 = vsub.s32 %v1224, %v1709
    %v1711 = vrot.slane %v1494, %v1710
    %v1712 = vlaneseq
    %v1713 = vshrl.u32 %v1712, 7
    %v1714 = vsub.s32 %v1224, %v1713
    %v1715 = vrot.slane %v1497, %v1714
    %v1716 = vlaneseq
    %v1717 = vshrl.u32 %v1716, 7
    %v1718 = vsub.s32 %v1224, %v1717
    %v1719 = vrot.slane %v1500, %v1718
    %v1720 = vlaneseq
    %v1721 = vshrl.u32 %v1720, 7
    %v1722 = vsub.s32 %v1224, %v1721
    %v1723 = vrot.slane %v1503, %v1722
    %v1724 = vlaneseq
    %v1725 = vshrl.u32 %v1724, 7
    %v1726 = vsub.s32 %v1224, %v1725
    %v1727 = vrot.slane %v1506, %v1726
    %v1728 = vlaneseq
    %v1729 = vshrl.u32 %v1728, 7
    %v1730 = vsub.s32 %v1224, %v1729
    %v1731 = vrot.slane %v1509, %v1730
    %v1732 = vlaneseq
    %v1733 = vshrl.u32 %v1732, 7
    %v1734 = vsub.s32 %v1224, %v1733
    %v1735 = vrot.slane %v1512, %v1734
    %v1736 = vlaneseq
    %v1737 = vshrl.u32 %v1736, 7
    %v1738 = vsub.s32 %v1224, %v1737
    %v1739 = vrot.slane %v1515, %v1738
    %v1740 = vlaneseq
    %v1741 = vshrl.u32 %v1740, 7
    %v1742 = vsub.s32 %v1224, %v1741
    %v1743 = vrot.slane %v1518, %v1742
    %v1744 = vlaneseq
    %v1745 = vshrl.u32 %v1744, 7
    %v1746 = vsub.s32 %v1224, %v1745
    %v1747 = vrot.slane %v1521, %v1746
    %v1748 = vlaneseq
    %v1749 = vshrl.u32 %v1748, 7
    %v1750 = vsub.s32 %v1224, %v1749
    %v1751 = vrot.slane %v1524, %v1750
    %v1752 = vlaneseq
    %v1753 = vshrl.u32 %v1752, 7
    %v1754 = vsub.s32 %v1224, %v1753
    %v1755 = vrot.slane %v1527, %v1754
    %v1756 = vlaneseq
    %v1757 = vshrl.u32 %v1756, 7
    %v1758 = vsub.s32 %v1224, %v1757
    %v1759 = vrot.slane %v1530, %v1758
    %v1760 = vlaneseq
    %v1761 = vshrl.u32 %v1760, 7
    %v1762 = vsub.s32 %v1224, %v1761
    %v1763 = vrot.slane %v1533, %v1762
    %v1764 = vlaneseq
    %v1765 = vshrl.u32 %v1764, 7
    %v1766 = vsub.s32 %v1224, %v1765
    %v1767 = vrot.slane %v1536, %v1766
    %v1768 = vlaneseq
    %v1769 = vshrl.u32 %v1768, 7
    %v1770 = vsub.s32 %v1224, %v1769
    %v1771 = vrot.slane %v1539, %v1770
    %v1772 = vlaneseq
    %v1773 = vshrl.u32 %v1772, 7
    %v1774 = vsub.s32 %v1224, %v1773
    %v1775 = vrot.slane %v1542, %v1774
    %v1776 = vlaneseq
    %v1777 = vshrl.u32 %v1776, 7
    %v1778 = vsub.s32 %v1224, %v1777
    %v1779 = vrot.slane %v1545, %v1778
    %v1780 = vlaneseq
    %v1781 = vshrl.u32 %v1780, 7
    %v1782 = vsub.s32 %v1224, %v1781
    %v1783 = vrot.slane %v1548, %v1782
    %v1784 = vlaneseq
    %v1785 = vshrl.u32 %v1784, 7
    %v1786 = vsub.s32 %v1224, %v1785
    %v1787 = vrot.slane %v1551, %v1786
    %v1788 = vlaneseq
    %v1789 = vshrl.u32 %v1788, 7
    %v1790 = vsub.s32 %v1224, %v1789
    %v1791 = vrot.slane %v1554, %v1790
    %v1792 = vlaneseq
    %v1793 = vshrl.u32 %v1792, 7
    %v1794 = vsub.s32 %v1224, %v1793
    %v1795 = vrot.slane %v1557, %v1794
    %v1796 = vlaneseq
    %v1797 = vshrl.u32 %v1796, 7
    %v1798 = vsub.s32 %v1224, %v1797
    %v1799 = vrot.slane %v1560, %v1798
    %v1800 = vlaneseq
    %v1801 = vshrl.u32 %v1800, 7
    %v1802 = vsub.s32 %v1224, %v1801
    %v1803 = vrot.slane %v1563, %v1802
    %v1804 = vlaneseq
    %v1805 = vshrl.u32 %v1804, 7
    %v1806 = vsub.s32 %v1224, %v1805
    %v1807 = vrot.slane %v1566, %v1806
    %v1808 = vlaneseq
    %v1809 = vshrl.u32 %v1808, 7
    %v1810 = vsub.s32 %v1224, %v1809
    %v1811 = vrot.slane %v1569, %v1810
    %v1812 = vlaneseq
    %v1813 = vshrl.u32 %v1812, 7
    %v1814 = vsub.s32 %v1224, %v1813
    %v1815 = vrot.slane %v1572, %v1814
    %v1816 = vlaneseq
    %v1817 = vshrl.u32 %v1816, 7
    %v1818 = vsub.s32 %v1224, %v1817
    %v1819 = vrot.slane %v1575, %v1818
    %v1820 = vlaneseq
    %v1821 = vshrl.u32 %v1820, 7
    %v1822 = vsub.s32 %v1224, %v1821
    %v1823 = vrot.slane %v1578, %v1822
    %v1824 = vlaneseq
    %v1825 = vshrl.u32 %v1824, 7
    %v1826 = vsub.s32 %v1224, %v1825
    %v1827 = vrot.slane %v1581, %v1826
    %v1828 = vlaneseq
    %v1829 = vshrl.u32 %v1828, 7
    %v1830 = vsub.s32 %v1224, %v1829
    %v1831 = vrot.slane %v1584, %v1830
    %v1832 = vlaneseq
    %v1833 = vshrl.u32 %v1832, 7
    %v1834 = vsub.s32 %v1224, %v1833
    %v1835 = vrot.slane %v1587, %v1834
    %v1836 = vlaneseq
    %v1837 = vshrl.u32 %v1836, 7
    %v1838 = vsub.s32 %v1224, %v1837
    %v1839 = vrot.slane %v1590, %v1838
    %v1840 = vlaneseq
    %v1841 = vshrl.u32 %v1840, 7
    %v1842 = vsub.s32 %v1224, %v1841
    %v1843 = vrot.slane %v1593, %v1842
    %v1844 = vlaneseq
    %v1845 = vshrl.u32 %v1844, 7
    %v1846 = vsub.s32 %v1224, %v1845
    %v1847 = vrot.slane %v1596, %v1846
    %v1848 = vlaneseq
    %v1849 = vshrl.u32 %v1848, 7
    %v1850 = vsub.s32 %v1224, %v1849
    %v1851 = vrot.slane %v1599, %v1850
    %v1852 = vlaneseq
    %v1853 = vshrl.u32 %v1852, 7
    %v1854 = vsub.s32 %v1224, %v1853
    %v1855 = vrot.slane %v1602, %v1854
    %v1856 = vlaneseq
    %v1857 = vshrl.u32 %v1856, 7
    %v1858 = vsub.s32 %v1224, %v1857
    %v1859 = vrot.slane %v1605, %v1858
    %v1860 = vlaneseq
    %v1861 = vshrl.u32 %v1860, 7
    %v1862 = vsub.s32 %v1224, %v1861
    %v1863 = vrot.slane %v1608, %v1862
    %v1864 = vlaneseq
    %v1865 = vshrl.u32 %v1864, 7
    %v1866 = vsub.s32 %v1224, %v1865
    %v1867 = vrot.slane %v1611, %v1866
    %vm1868 = vcmask 1041409
    %v1869 = vsel %vm1868, %v1619, %v1615
    %vm1870 = vcmask 1042434
    %v1871 = vsel %vm1870, %v1623, %v1869
    %vm1872 = vcmask 1043459
    %v1873 = vsel %vm1872, %v1627, %v1871
    %vm1874 = vcmask 1044484
    %v1875 = vsel %vm1874, %v1631, %v1873
    %vm1876 = vcmask 1045509
    %v1877 = vsel %vm1876, %v1635, %v1875
    %vm1878 = vcmask 1046534
    %v1879 = vsel %vm1878, %v1639, %v1877
    %vm1880 = vcmask 1047559
    %v1881 = vsel %vm1880, %v1643, %v1879
    %v1882 = vsel %vm1868, %v1651, %v1647
    %v1883 = vsel %vm1870, %v1655, %v1882
    %v1884 = vsel %vm1872, %v1659, %v1883
    %v1885 = vsel %vm1874, %v1663, %v1884
    %v1886 = vsel %vm1876, %v1667, %v1885
    %v1887 = vsel %vm1878, %v1671, %v1886
    %v1888 = vsel %vm1880, %v1675, %v1887
    %v1889 = vsel %vm1868, %v1683, %v1679
    %v1890 = vsel %vm1870, %v1687, %v1889
    %v1891 = vsel %vm1872, %v1691, %v1890
    %v1892 = vsel %vm1874, %v1695, %v1891
    %v1893 = vsel %vm1876, %v1699, %v1892
    %v1894 = vsel %vm1878, %v1703, %v1893
    %v1895 = vsel %vm1880, %v1707, %v1894
    %v1896 = vsel %vm1868, %v1715, %v1711
    %v1897 = vsel %vm1870, %v1719, %v1896
    %v1898 = vsel %vm1872, %v1723, %v1897
    %v1899 = vsel %vm1874, %v1727, %v1898
    %v1900 = vsel %vm1876, %v1731, %v1899
    %v1901 = vsel %vm1878, %v1735, %v1900
    %v1902 = vsel %vm1880, %v1739, %v1901
    %v1903 = vsel %vm1868, %v1747, %v1743
    %v1904 = vsel %vm1870, %v1751, %v1903
    %v1905 = vsel %vm1872, %v1755, %v1904
    %v1906 = vsel %vm1874, %v1759, %v1905
    %v1907 = vsel %vm1876, %v1763, %v1906
    %v1908 = vsel %vm1878, %v1767, %v1907
    %v1909 = vsel %vm1880, %v1771, %v1908
    %v1910 = vsel %vm1868, %v1779, %v1775
    %v1911 = vsel %vm1870, %v1783, %v1910
    %v1912 = vsel %vm1872, %v1787, %v1911
    %v1913 = vsel %vm1874, %v1791, %v1912
    %v1914 = vsel %vm1876, %v1795, %v1913
    %v1915 = vsel %vm1878, %v1799, %v1914
    %v1916 = vsel %vm1880, %v1803, %v1915
    %v1917 = vsel %vm1868, %v1811, %v1807
    %v1918 = vsel %vm1870, %v1815, %v1917
    %v1919 = vsel %vm1872, %v1819, %v1918
    %v1920 = vsel %vm1874, %v1823, %v1919
    %v1921 = vsel %vm1876, %v1827, %v1920
    %v1922 = vsel %vm1878, %v1831, %v1921
    %v1923 = vsel %vm1880, %v1835, %v1922
    %v1924 = vsel %vm1868, %v1843, %v1839
    %v1925 = vsel %vm1870, %v1847, %v1924
    %v1926 = vsel %vm1872, %v1851, %v1925
    %v1927 = vsel %vm1874, %v1855, %v1926
    %v1928 = vsel %vm1876, %v1859, %v1927
    %v1929 = vsel %vm1878, %v1863, %v1928
    %v1930 = vsel %vm1880, %v1867, %v1929
    %vm1939 = vcmask 64512
    %v1940 = vsel %vm1939, %v1881, -inf
    %1941 = vmax.xlane.f32.xlu0 %v1940
    %v1942 = vpop.xlane.xlu0 %1941
    %v1943 = vsel %vm1939, %v1888, -inf
    %1944 = vmax.xlane.f32.xlu0 %v1943
    %v1945 = vpop.xlane.xlu0 %1944
    %v1946 = vsel %vm1939, %v1895, -inf
    %1947 = vmax.xlane.f32.xlu0 %v1946
    %v1948 = vpop.xlane.xlu0 %1947
    %v1949 = vsel %vm1939, %v1902, -inf
    %1950 = vmax.xlane.f32.xlu0 %v1949
    %v1951 = vpop.xlane.xlu0 %1950
    %v1952 = vsel %vm1939, %v1909, -inf
    %1953 = vmax.xlane.f32.xlu0 %v1952
    %v1954 = vpop.xlane.xlu0 %1953
    %v1955 = vsel %vm1939, %v1916, -inf
    %1956 = vmax.xlane.f32.xlu0 %v1955
    %v1957 = vpop.xlane.xlu0 %1956
    %v1958 = vsel %vm1939, %v1923, -inf
    %1959 = vmax.xlane.f32.xlu0 %v1958
    %v1960 = vpop.xlane.xlu0 %1959
    %v1961 = vsel %vm1939, %v1930, -inf
    %1962 = vmax.xlane.f32.xlu0 %v1961
    %v1963 = vpop.xlane.xlu0 %1962
    %v1972 = vlaneseq
    %v1973 = vshrl.u32 %v1972, 7
    %v1974 = vsub.s32 0, %v1973
    %v1975 = vrot.slane %v1942, %v1974
    %v1976 = vlaneseq
    %v1977 = vshrl.u32 %v1976, 7
    %v1978 = vsub.s32 1, %v1977
    %v1979 = vrot.slane %v1942, %v1978
    %v1980 = vlaneseq
    %v1981 = vshrl.u32 %v1980, 7
    %v1982 = vsub.s32 2, %v1981
    %v1983 = vrot.slane %v1942, %v1982
    %v1984 = vlaneseq
    %v1985 = vshrl.u32 %v1984, 7
    %v1986 = vsub.s32 3, %v1985
    %v1987 = vrot.slane %v1942, %v1986
    %v1988 = vlaneseq
    %v1989 = vshrl.u32 %v1988, 7
    %v1990 = vsub.s32 4, %v1989
    %v1991 = vrot.slane %v1942, %v1990
    %v1992 = vlaneseq
    %v1993 = vshrl.u32 %v1992, 7
    %v1994 = vsub.s32 5, %v1993
    %v1995 = vrot.slane %v1942, %v1994
    %v1996 = vlaneseq
    %v1997 = vshrl.u32 %v1996, 7
    %v1998 = vsub.s32 6, %v1997
    %v1999 = vrot.slane %v1942, %v1998
    %v2000 = vlaneseq
    %v2001 = vshrl.u32 %v2000, 7
    %v2002 = vsub.s32 7, %v2001
    %v2003 = vrot.slane %v1942, %v2002
    %v2004 = vlaneseq
    %v2005 = vshrl.u32 %v2004, 7
    %v2006 = vsub.s32 0, %v2005
    %v2007 = vrot.slane %v1945, %v2006
    %v2008 = vlaneseq
    %v2009 = vshrl.u32 %v2008, 7
    %v2010 = vsub.s32 1, %v2009
    %v2011 = vrot.slane %v1945, %v2010
    %v2012 = vlaneseq
    %v2013 = vshrl.u32 %v2012, 7
    %v2014 = vsub.s32 2, %v2013
    %v2015 = vrot.slane %v1945, %v2014
    %v2016 = vlaneseq
    %v2017 = vshrl.u32 %v2016, 7
    %v2018 = vsub.s32 3, %v2017
    %v2019 = vrot.slane %v1945, %v2018
    %v2020 = vlaneseq
    %v2021 = vshrl.u32 %v2020, 7
    %v2022 = vsub.s32 4, %v2021
    %v2023 = vrot.slane %v1945, %v2022
    %v2024 = vlaneseq
    %v2025 = vshrl.u32 %v2024, 7
    %v2026 = vsub.s32 5, %v2025
    %v2027 = vrot.slane %v1945, %v2026
    %v2028 = vlaneseq
    %v2029 = vshrl.u32 %v2028, 7
    %v2030 = vsub.s32 6, %v2029
    %v2031 = vrot.slane %v1945, %v2030
    %v2032 = vlaneseq
    %v2033 = vshrl.u32 %v2032, 7
    %v2034 = vsub.s32 7, %v2033
    %v2035 = vrot.slane %v1945, %v2034
    %v2036 = vlaneseq
    %v2037 = vshrl.u32 %v2036, 7
    %v2038 = vsub.s32 0, %v2037
    %v2039 = vrot.slane %v1948, %v2038
    %v2040 = vlaneseq
    %v2041 = vshrl.u32 %v2040, 7
    %v2042 = vsub.s32 1, %v2041
    %v2043 = vrot.slane %v1948, %v2042
    %v2044 = vlaneseq
    %v2045 = vshrl.u32 %v2044, 7
    %v2046 = vsub.s32 2, %v2045
    %v2047 = vrot.slane %v1948, %v2046
    %v2048 = vlaneseq
    %v2049 = vshrl.u32 %v2048, 7
    %v2050 = vsub.s32 3, %v2049
    %v2051 = vrot.slane %v1948, %v2050
    %v2052 = vlaneseq
    %v2053 = vshrl.u32 %v2052, 7
    %v2054 = vsub.s32 4, %v2053
    %v2055 = vrot.slane %v1948, %v2054
    %v2056 = vlaneseq
    %v2057 = vshrl.u32 %v2056, 7
    %v2058 = vsub.s32 5, %v2057
    %v2059 = vrot.slane %v1948, %v2058
    %v2060 = vlaneseq
    %v2061 = vshrl.u32 %v2060, 7
    %v2062 = vsub.s32 6, %v2061
    %v2063 = vrot.slane %v1948, %v2062
    %v2064 = vlaneseq
    %v2065 = vshrl.u32 %v2064, 7
    %v2066 = vsub.s32 7, %v2065
    %v2067 = vrot.slane %v1948, %v2066
    %v2068 = vlaneseq
    %v2069 = vshrl.u32 %v2068, 7
    %v2070 = vsub.s32 0, %v2069
    %v2071 = vrot.slane %v1951, %v2070
    %v2072 = vlaneseq
    %v2073 = vshrl.u32 %v2072, 7
    %v2074 = vsub.s32 1, %v2073
    %v2075 = vrot.slane %v1951, %v2074
    %v2076 = vlaneseq
    %v2077 = vshrl.u32 %v2076, 7
    %v2078 = vsub.s32 2, %v2077
    %v2079 = vrot.slane %v1951, %v2078
    %v2080 = vlaneseq
    %v2081 = vshrl.u32 %v2080, 7
    %v2082 = vsub.s32 3, %v2081
    %v2083 = vrot.slane %v1951, %v2082
    %v2084 = vlaneseq
    %v2085 = vshrl.u32 %v2084, 7
    %v2086 = vsub.s32 4, %v2085
    %v2087 = vrot.slane %v1951, %v2086
    %v2088 = vlaneseq
    %v2089 = vshrl.u32 %v2088, 7
    %v2090 = vsub.s32 5, %v2089
    %v2091 = vrot.slane %v1951, %v2090
    %v2092 = vlaneseq
    %v2093 = vshrl.u32 %v2092, 7
    %v2094 = vsub.s32 6, %v2093
    %v2095 = vrot.slane %v1951, %v2094
    %v2096 = vlaneseq
    %v2097 = vshrl.u32 %v2096, 7
    %v2098 = vsub.s32 7, %v2097
    %v2099 = vrot.slane %v1951, %v2098
    %v2100 = vlaneseq
    %v2101 = vshrl.u32 %v2100, 7
    %v2102 = vsub.s32 0, %v2101
    %v2103 = vrot.slane %v1954, %v2102
    %v2104 = vlaneseq
    %v2105 = vshrl.u32 %v2104, 7
    %v2106 = vsub.s32 1, %v2105
    %v2107 = vrot.slane %v1954, %v2106
    %v2108 = vlaneseq
    %v2109 = vshrl.u32 %v2108, 7
    %v2110 = vsub.s32 2, %v2109
    %v2111 = vrot.slane %v1954, %v2110
    %v2112 = vlaneseq
    %v2113 = vshrl.u32 %v2112, 7
    %v2114 = vsub.s32 3, %v2113
    %v2115 = vrot.slane %v1954, %v2114
    %v2116 = vlaneseq
    %v2117 = vshrl.u32 %v2116, 7
    %v2118 = vsub.s32 4, %v2117
    %v2119 = vrot.slane %v1954, %v2118
    %v2120 = vlaneseq
    %v2121 = vshrl.u32 %v2120, 7
    %v2122 = vsub.s32 5, %v2121
    %v2123 = vrot.slane %v1954, %v2122
    %v2124 = vlaneseq
    %v2125 = vshrl.u32 %v2124, 7
    %v2126 = vsub.s32 6, %v2125
    %v2127 = vrot.slane %v1954, %v2126
    %v2128 = vlaneseq
    %v2129 = vshrl.u32 %v2128, 7
    %v2130 = vsub.s32 7, %v2129
    %v2131 = vrot.slane %v1954, %v2130
    %v2132 = vlaneseq
    %v2133 = vshrl.u32 %v2132, 7
    %v2134 = vsub.s32 0, %v2133
    %v2135 = vrot.slane %v1957, %v2134
    %v2136 = vlaneseq
    %v2137 = vshrl.u32 %v2136, 7
    %v2138 = vsub.s32 1, %v2137
    %v2139 = vrot.slane %v1957, %v2138
    %v2140 = vlaneseq
    %v2141 = vshrl.u32 %v2140, 7
    %v2142 = vsub.s32 2, %v2141
    %v2143 = vrot.slane %v1957, %v2142
    %v2144 = vlaneseq
    %v2145 = vshrl.u32 %v2144, 7
    %v2146 = vsub.s32 3, %v2145
    %v2147 = vrot.slane %v1957, %v2146
    %v2148 = vlaneseq
    %v2149 = vshrl.u32 %v2148, 7
    %v2150 = vsub.s32 4, %v2149
    %v2151 = vrot.slane %v1957, %v2150
    %v2152 = vlaneseq
    %v2153 = vshrl.u32 %v2152, 7
    %v2154 = vsub.s32 5, %v2153
    %v2155 = vrot.slane %v1957, %v2154
    %v2156 = vlaneseq
    %v2157 = vshrl.u32 %v2156, 7
    %v2158 = vsub.s32 6, %v2157
    %v2159 = vrot.slane %v1957, %v2158
    %v2160 = vlaneseq
    %v2161 = vshrl.u32 %v2160, 7
    %v2162 = vsub.s32 7, %v2161
    %v2163 = vrot.slane %v1957, %v2162
    %v2164 = vlaneseq
    %v2165 = vshrl.u32 %v2164, 7
    %v2166 = vsub.s32 0, %v2165
    %v2167 = vrot.slane %v1960, %v2166
    %v2168 = vlaneseq
    %v2169 = vshrl.u32 %v2168, 7
    %v2170 = vsub.s32 1, %v2169
    %v2171 = vrot.slane %v1960, %v2170
    %v2172 = vlaneseq
    %v2173 = vshrl.u32 %v2172, 7
    %v2174 = vsub.s32 2, %v2173
    %v2175 = vrot.slane %v1960, %v2174
    %v2176 = vlaneseq
    %v2177 = vshrl.u32 %v2176, 7
    %v2178 = vsub.s32 3, %v2177
    %v2179 = vrot.slane %v1960, %v2178
    %v2180 = vlaneseq
    %v2181 = vshrl.u32 %v2180, 7
    %v2182 = vsub.s32 4, %v2181
    %v2183 = vrot.slane %v1960, %v2182
    %v2184 = vlaneseq
    %v2185 = vshrl.u32 %v2184, 7
    %v2186 = vsub.s32 5, %v2185
    %v2187 = vrot.slane %v1960, %v2186
    %v2188 = vlaneseq
    %v2189 = vshrl.u32 %v2188, 7
    %v2190 = vsub.s32 6, %v2189
    %v2191 = vrot.slane %v1960, %v2190
    %v2192 = vlaneseq
    %v2193 = vshrl.u32 %v2192, 7
    %v2194 = vsub.s32 7, %v2193
    %v2195 = vrot.slane %v1960, %v2194
    %v2196 = vlaneseq
    %v2197 = vshrl.u32 %v2196, 7
    %v2198 = vsub.s32 0, %v2197
    %v2199 = vrot.slane %v1963, %v2198
    %v2200 = vlaneseq
    %v2201 = vshrl.u32 %v2200, 7
    %v2202 = vsub.s32 1, %v2201
    %v2203 = vrot.slane %v1963, %v2202
    %v2204 = vlaneseq
    %v2205 = vshrl.u32 %v2204, 7
    %v2206 = vsub.s32 2, %v2205
    %v2207 = vrot.slane %v1963, %v2206
    %v2208 = vlaneseq
    %v2209 = vshrl.u32 %v2208, 7
    %v2210 = vsub.s32 3, %v2209
    %v2211 = vrot.slane %v1963, %v2210
    %v2212 = vlaneseq
    %v2213 = vshrl.u32 %v2212, 7
    %v2214 = vsub.s32 4, %v2213
    %v2215 = vrot.slane %v1963, %v2214
    %v2216 = vlaneseq
    %v2217 = vshrl.u32 %v2216, 7
    %v2218 = vsub.s32 5, %v2217
    %v2219 = vrot.slane %v1963, %v2218
    %v2220 = vlaneseq
    %v2221 = vshrl.u32 %v2220, 7
    %v2222 = vsub.s32 6, %v2221
    %v2223 = vrot.slane %v1963, %v2222
    %v2224 = vlaneseq
    %v2225 = vshrl.u32 %v2224, 7
    %v2226 = vsub.s32 7, %v2225
    %v2227 = vrot.slane %v1963, %v2226
    %v2292 = vsub.f32 %v1292, %v1975
    %v2293 = vsub.f32 %v1293, %v1979
    %v2294 = vsub.f32 %v1294, %v1983
    %v2295 = vsub.f32 %v1295, %v1987
    %v2296 = vsub.f32 %v1296, %v1991
    %v2297 = vsub.f32 %v1297, %v1995
    %v2298 = vsub.f32 %v1298, %v1999
    %v2299 = vsub.f32 %v1299, %v2003
    %v2300 = vsub.f32 %v1300, %v2007
    %v2301 = vsub.f32 %v1301, %v2011
    %v2302 = vsub.f32 %v1302, %v2015
    %v2303 = vsub.f32 %v1303, %v2019
    %v2304 = vsub.f32 %v1304, %v2023
    %v2305 = vsub.f32 %v1305, %v2027
    %v2306 = vsub.f32 %v1306, %v2031
    %v2307 = vsub.f32 %v1307, %v2035
    %v2308 = vsub.f32 %v1308, %v2039
    %v2309 = vsub.f32 %v1309, %v2043
    %v2310 = vsub.f32 %v1310, %v2047
    %v2311 = vsub.f32 %v1311, %v2051
    %v2312 = vsub.f32 %v1312, %v2055
    %v2313 = vsub.f32 %v1313, %v2059
    %v2314 = vsub.f32 %v1314, %v2063
    %v2315 = vsub.f32 %v1315, %v2067
    %v2316 = vsub.f32 %v1316, %v2071
    %v2317 = vsub.f32 %v1317, %v2075
    %v2318 = vsub.f32 %v1318, %v2079
    %v2319 = vsub.f32 %v1319, %v2083
    %v2320 = vsub.f32 %v1320, %v2087
    %v2321 = vsub.f32 %v1321, %v2091
    %v2322 = vsub.f32 %v1322, %v2095
    %v2323 = vsub.f32 %v1323, %v2099
    %v2324 = vsub.f32 %v1324, %v2103
    %v2325 = vsub.f32 %v1325, %v2107
    %v2326 = vsub.f32 %v1326, %v2111
    %v2327 = vsub.f32 %v1327, %v2115
    %v2328 = vsub.f32 %v1328, %v2119
    %v2329 = vsub.f32 %v1329, %v2123
    %v2330 = vsub.f32 %v1330, %v2127
    %v2331 = vsub.f32 %v1331, %v2131
    %v2332 = vsub.f32 %v1332, %v2135
    %v2333 = vsub.f32 %v1333, %v2139
    %v2334 = vsub.f32 %v1334, %v2143
    %v2335 = vsub.f32 %v1335, %v2147
    %v2336 = vsub.f32 %v1336, %v2151
    %v2337 = vsub.f32 %v1337, %v2155
    %v2338 = vsub.f32 %v1338, %v2159
    %v2339 = vsub.f32 %v1339, %v2163
    %v2340 = vsub.f32 %v1340, %v2167
    %v2341 = vsub.f32 %v1341, %v2171
    %v2342 = vsub.f32 %v1342, %v2175
    %v2343 = vsub.f32 %v1343, %v2179
    %v2344 = vsub.f32 %v1344, %v2183
    %v2345 = vsub.f32 %v1345, %v2187
    %v2346 = vsub.f32 %v1346, %v2191
    %v2347 = vsub.f32 %v1347, %v2195
    %v2348 = vsub.f32 %v1348, %v2199
    %v2349 = vsub.f32 %v1349, %v2203
    %v2350 = vsub.f32 %v1350, %v2207
    %v2351 = vsub.f32 %v1351, %v2211
    %v2352 = vsub.f32 %v1352, %v2215
    %v2353 = vsub.f32 %v1353, %v2219
    %v2354 = vsub.f32 %v1354, %v2223
    %v2355 = vsub.f32 %v1355, %v2227
    %v2356 = vmul.f32 %v2292, 1.442695
    %v2357 = vpow.pop %v2356
    %v2358 = vmul.f32 %v2293, 1.442695
    %v2359 = vpow.pop %v2358
    %v2360 = vmul.f32 %v2294, 1.442695
    %v2361 = vpow.pop %v2360
    %v2362 = vmul.f32 %v2295, 1.442695
    %v2363 = vpow.pop %v2362
    %v2364 = vmul.f32 %v2296, 1.442695
    %v2365 = vpow.pop %v2364
    %v2366 = vmul.f32 %v2297, 1.442695
    %v2367 = vpow.pop %v2366
    %v2368 = vmul.f32 %v2298, 1.442695
    %v2369 = vpow.pop %v2368
    %v2370 = vmul.f32 %v2299, 1.442695
    %v2371 = vpow.pop %v2370
    %v2372 = vmul.f32 %v2300, 1.442695
    %v2373 = vpow.pop %v2372
    %v2374 = vmul.f32 %v2301, 1.442695
    %v2375 = vpow.pop %v2374
    %v2376 = vmul.f32 %v2302, 1.442695
    %v2377 = vpow.pop %v2376
    %v2378 = vmul.f32 %v2303, 1.442695
    %v2379 = vpow.pop %v2378
    %v2380 = vmul.f32 %v2304, 1.442695
    %v2381 = vpow.pop %v2380
    %v2382 = vmul.f32 %v2305, 1.442695
    %v2383 = vpow.pop %v2382
    %v2384 = vmul.f32 %v2306, 1.442695
    %v2385 = vpow.pop %v2384
    %v2386 = vmul.f32 %v2307, 1.442695
    %v2387 = vpow.pop %v2386
    %v2388 = vmul.f32 %v2308, 1.442695
    %v2389 = vpow.pop %v2388
    %v2390 = vmul.f32 %v2309, 1.442695
    %v2391 = vpow.pop %v2390
    %v2392 = vmul.f32 %v2310, 1.442695
    %v2393 = vpow.pop %v2392
    %v2394 = vmul.f32 %v2311, 1.442695
    %v2395 = vpow.pop %v2394
    %v2396 = vmul.f32 %v2312, 1.442695
    %v2397 = vpow.pop %v2396
    %v2398 = vmul.f32 %v2313, 1.442695
    %v2399 = vpow.pop %v2398
    %v2400 = vmul.f32 %v2314, 1.442695
    %v2401 = vpow.pop %v2400
    %v2402 = vmul.f32 %v2315, 1.442695
    %v2403 = vpow.pop %v2402
    %v2404 = vmul.f32 %v2316, 1.442695
    %v2405 = vpow.pop %v2404
    %v2406 = vmul.f32 %v2317, 1.442695
    %v2407 = vpow.pop %v2406
    %v2408 = vmul.f32 %v2318, 1.442695
    %v2409 = vpow.pop %v2408
    %v2410 = vmul.f32 %v2319, 1.442695
    %v2411 = vpow.pop %v2410
    %v2412 = vmul.f32 %v2320, 1.442695
    %v2413 = vpow.pop %v2412
    %v2414 = vmul.f32 %v2321, 1.442695
    %v2415 = vpow.pop %v2414
    %v2416 = vmul.f32 %v2322, 1.442695
    %v2417 = vpow.pop %v2416
    %v2418 = vmul.f32 %v2323, 1.442695
    %v2419 = vpow.pop %v2418
    %v2420 = vmul.f32 %v2324, 1.442695
    %v2421 = vpow.pop %v2420
    %v2422 = vmul.f32 %v2325, 1.442695
    %v2423 = vpow.pop %v2422
    %v2424 = vmul.f32 %v2326, 1.442695
    %v2425 = vpow.pop %v2424
    %v2426 = vmul.f32 %v2327, 1.442695
    %v2427 = vpow.pop %v2426
    %v2428 = vmul.f32 %v2328, 1.442695
    %v2429 = vpow.pop %v2428
    %v2430 = vmul.f32 %v2329, 1.442695
    %v2431 = vpow.pop %v2430
    %v2432 = vmul.f32 %v2330, 1.442695
    %v2433 = vpow.pop %v2432
    %v2434 = vmul.f32 %v2331, 1.442695
    %v2435 = vpow.pop %v2434
    %v2436 = vmul.f32 %v2332, 1.442695
    %v2437 = vpow.pop %v2436
    %v2438 = vmul.f32 %v2333, 1.442695
    %v2439 = vpow.pop %v2438
    %v2440 = vmul.f32 %v2334, 1.442695
    %v2441 = vpow.pop %v2440
    %v2442 = vmul.f32 %v2335, 1.442695
    %v2443 = vpow.pop %v2442
    %v2444 = vmul.f32 %v2336, 1.442695
    %v2445 = vpow.pop %v2444
    %v2446 = vmul.f32 %v2337, 1.442695
    %v2447 = vpow.pop %v2446
    %v2448 = vmul.f32 %v2338, 1.442695
    %v2449 = vpow.pop %v2448
    %v2450 = vmul.f32 %v2339, 1.442695
    %v2451 = vpow.pop %v2450
    %v2452 = vmul.f32 %v2340, 1.442695
    %v2453 = vpow.pop %v2452
    %v2454 = vmul.f32 %v2341, 1.442695
    %v2455 = vpow.pop %v2454
    %v2456 = vmul.f32 %v2342, 1.442695
    %v2457 = vpow.pop %v2456
    %v2458 = vmul.f32 %v2343, 1.442695
    %v2459 = vpow.pop %v2458
    %v2460 = vmul.f32 %v2344, 1.442695
    %v2461 = vpow.pop %v2460
    %v2462 = vmul.f32 %v2345, 1.442695
    %v2463 = vpow.pop %v2462
    %v2464 = vmul.f32 %v2346, 1.442695
    %v2465 = vpow.pop %v2464
    %v2466 = vmul.f32 %v2347, 1.442695
    %v2467 = vpow.pop %v2466
    %v2468 = vmul.f32 %v2348, 1.442695
    %v2469 = vpow.pop %v2468
    %v2470 = vmul.f32 %v2349, 1.442695
    %v2471 = vpow.pop %v2470
    %v2472 = vmul.f32 %v2350, 1.442695
    %v2473 = vpow.pop %v2472
    %v2474 = vmul.f32 %v2351, 1.442695
    %v2475 = vpow.pop %v2474
    %v2476 = vmul.f32 %v2352, 1.442695
    %v2477 = vpow.pop %v2476
    %v2478 = vmul.f32 %v2353, 1.442695
    %v2479 = vpow.pop %v2478
    %v2480 = vmul.f32 %v2354, 1.442695
    %v2481 = vpow.pop %v2480
    %v2482 = vmul.f32 %v2355, 1.442695
    %v2483 = vpow.pop %v2482
    %2548 = vset.pattern.permute.xlu0 0
    %2549 = vperm.xlu0 %2548, %v2357
    %v2550 = vpop.permute.xlu0 %2549
    %2551 = vset.pattern.permute.xlu0 0
    %2552 = vperm.xlu0 %2551, %v2359
    %v2553 = vpop.permute.xlu0 %2552
    %2554 = vset.pattern.permute.xlu0 0
    %2555 = vperm.xlu0 %2554, %v2361
    %v2556 = vpop.permute.xlu0 %2555
    %2557 = vset.pattern.permute.xlu0 0
    %2558 = vperm.xlu0 %2557, %v2363
    %v2559 = vpop.permute.xlu0 %2558
    %2560 = vset.pattern.permute.xlu0 0
    %2561 = vperm.xlu0 %2560, %v2365
    %v2562 = vpop.permute.xlu0 %2561
    %2563 = vset.pattern.permute.xlu0 0
    %2564 = vperm.xlu0 %2563, %v2367
    %v2565 = vpop.permute.xlu0 %2564
    %2566 = vset.pattern.permute.xlu0 0
    %2567 = vperm.xlu0 %2566, %v2369
    %v2568 = vpop.permute.xlu0 %2567
    %2569 = vset.pattern.permute.xlu0 0
    %2570 = vperm.xlu0 %2569, %v2371
    %v2571 = vpop.permute.xlu0 %2570
    %2572 = vset.pattern.permute.xlu0 0
    %2573 = vperm.xlu0 %2572, %v2373
    %v2574 = vpop.permute.xlu0 %2573
    %2575 = vset.pattern.permute.xlu0 0
    %2576 = vperm.xlu0 %2575, %v2375
    %v2577 = vpop.permute.xlu0 %2576
    %2578 = vset.pattern.permute.xlu0 0
    %2579 = vperm.xlu0 %2578, %v2377
    %v2580 = vpop.permute.xlu0 %2579
    %2581 = vset.pattern.permute.xlu0 0
    %2582 = vperm.xlu0 %2581, %v2379
    %v2583 = vpop.permute.xlu0 %2582
    %2584 = vset.pattern.permute.xlu0 0
    %2585 = vperm.xlu0 %2584, %v2381
    %v2586 = vpop.permute.xlu0 %2585
    %2587 = vset.pattern.permute.xlu0 0
    %2588 = vperm.xlu0 %2587, %v2383
    %v2589 = vpop.permute.xlu0 %2588
    %2590 = vset.pattern.permute.xlu0 0
    %2591 = vperm.xlu0 %2590, %v2385
    %v2592 = vpop.permute.xlu0 %2591
    %2593 = vset.pattern.permute.xlu0 0
    %2594 = vperm.xlu0 %2593, %v2387
    %v2595 = vpop.permute.xlu0 %2594
    %2596 = vset.pattern.permute.xlu0 0
    %2597 = vperm.xlu0 %2596, %v2389
    %v2598 = vpop.permute.xlu0 %2597
    %2599 = vset.pattern.permute.xlu0 0
    %2600 = vperm.xlu0 %2599, %v2391
    %v2601 = vpop.permute.xlu0 %2600
    %2602 = vset.pattern.permute.xlu0 0
    %2603 = vperm.xlu0 %2602, %v2393
    %v2604 = vpop.permute.xlu0 %2603
    %2605 = vset.pattern.permute.xlu0 0
    %2606 = vperm.xlu0 %2605, %v2395
    %v2607 = vpop.permute.xlu0 %2606
    %2608 = vset.pattern.permute.xlu0 0
    %2609 = vperm.xlu0 %2608, %v2397
    %v2610 = vpop.permute.xlu0 %2609
    %2611 = vset.pattern.permute.xlu0 0
    %2612 = vperm.xlu0 %2611, %v2399
    %v2613 = vpop.permute.xlu0 %2612
    %2614 = vset.pattern.permute.xlu0 0
    %2615 = vperm.xlu0 %2614, %v2401
    %v2616 = vpop.permute.xlu0 %2615
    %2617 = vset.pattern.permute.xlu0 0
    %2618 = vperm.xlu0 %2617, %v2403
    %v2619 = vpop.permute.xlu0 %2618
    %2620 = vset.pattern.permute.xlu0 0
    %2621 = vperm.xlu0 %2620, %v2405
    %v2622 = vpop.permute.xlu0 %2621
    %2623 = vset.pattern.permute.xlu0 0
    %2624 = vperm.xlu0 %2623, %v2407
    %v2625 = vpop.permute.xlu0 %2624
    %2626 = vset.pattern.permute.xlu0 0
    %2627 = vperm.xlu0 %2626, %v2409
    %v2628 = vpop.permute.xlu0 %2627
    %2629 = vset.pattern.permute.xlu0 0
    %2630 = vperm.xlu0 %2629, %v2411
    %v2631 = vpop.permute.xlu0 %2630
    %2632 = vset.pattern.permute.xlu0 0
    %2633 = vperm.xlu0 %2632, %v2413
    %v2634 = vpop.permute.xlu0 %2633
    %2635 = vset.pattern.permute.xlu0 0
    %2636 = vperm.xlu0 %2635, %v2415
    %v2637 = vpop.permute.xlu0 %2636
    %2638 = vset.pattern.permute.xlu0 0
    %2639 = vperm.xlu0 %2638, %v2417
    %v2640 = vpop.permute.xlu0 %2639
    %2641 = vset.pattern.permute.xlu0 0
    %2642 = vperm.xlu0 %2641, %v2419
    %v2643 = vpop.permute.xlu0 %2642
    %2644 = vset.pattern.permute.xlu0 0
    %2645 = vperm.xlu0 %2644, %v2421
    %v2646 = vpop.permute.xlu0 %2645
    %2647 = vset.pattern.permute.xlu0 0
    %2648 = vperm.xlu0 %2647, %v2423
    %v2649 = vpop.permute.xlu0 %2648
    %2650 = vset.pattern.permute.xlu0 0
    %2651 = vperm.xlu0 %2650, %v2425
    %v2652 = vpop.permute.xlu0 %2651
    %2653 = vset.pattern.permute.xlu0 0
    %2654 = vperm.xlu0 %2653, %v2427
    %v2655 = vpop.permute.xlu0 %2654
    %2656 = vset.pattern.permute.xlu0 0
    %2657 = vperm.xlu0 %2656, %v2429
    %v2658 = vpop.permute.xlu0 %2657
    %2659 = vset.pattern.permute.xlu0 0
    %2660 = vperm.xlu0 %2659, %v2431
    %v2661 = vpop.permute.xlu0 %2660
    %2662 = vset.pattern.permute.xlu0 0
    %2663 = vperm.xlu0 %2662, %v2433
    %v2664 = vpop.permute.xlu0 %2663
    %2665 = vset.pattern.permute.xlu0 0
    %2666 = vperm.xlu0 %2665, %v2435
    %v2667 = vpop.permute.xlu0 %2666
    %2668 = vset.pattern.permute.xlu0 0
    %2669 = vperm.xlu0 %2668, %v2437
    %v2670 = vpop.permute.xlu0 %2669
    %2671 = vset.pattern.permute.xlu0 0
    %2672 = vperm.xlu0 %2671, %v2439
    %v2673 = vpop.permute.xlu0 %2672
    %2674 = vset.pattern.permute.xlu0 0
    %2675 = vperm.xlu0 %2674, %v2441
    %v2676 = vpop.permute.xlu0 %2675
    %2677 = vset.pattern.permute.xlu0 0
    %2678 = vperm.xlu0 %2677, %v2443
    %v2679 = vpop.permute.xlu0 %2678
    %2680 = vset.pattern.permute.xlu0 0
    %2681 = vperm.xlu0 %2680, %v2445
    %v2682 = vpop.permute.xlu0 %2681
    %2683 = vset.pattern.permute.xlu0 0
    %2684 = vperm.xlu0 %2683, %v2447
    %v2685 = vpop.permute.xlu0 %2684
    %2686 = vset.pattern.permute.xlu0 0
    %2687 = vperm.xlu0 %2686, %v2449
    %v2688 = vpop.permute.xlu0 %2687
    %2689 = vset.pattern.permute.xlu0 0
    %2690 = vperm.xlu0 %2689, %v2451
    %v2691 = vpop.permute.xlu0 %2690
    %2692 = vset.pattern.permute.xlu0 0
    %2693 = vperm.xlu0 %2692, %v2453
    %v2694 = vpop.permute.xlu0 %2693
    %2695 = vset.pattern.permute.xlu0 0
    %2696 = vperm.xlu0 %2695, %v2455
    %v2697 = vpop.permute.xlu0 %2696
    %2698 = vset.pattern.permute.xlu0 0
    %2699 = vperm.xlu0 %2698, %v2457
    %v2700 = vpop.permute.xlu0 %2699
    %2701 = vset.pattern.permute.xlu0 0
    %2702 = vperm.xlu0 %2701, %v2459
    %v2703 = vpop.permute.xlu0 %2702
    %2704 = vset.pattern.permute.xlu0 0
    %2705 = vperm.xlu0 %2704, %v2461
    %v2706 = vpop.permute.xlu0 %2705
    %2707 = vset.pattern.permute.xlu0 0
    %2708 = vperm.xlu0 %2707, %v2463
    %v2709 = vpop.permute.xlu0 %2708
    %2710 = vset.pattern.permute.xlu0 0
    %2711 = vperm.xlu0 %2710, %v2465
    %v2712 = vpop.permute.xlu0 %2711
    %2713 = vset.pattern.permute.xlu0 0
    %2714 = vperm.xlu0 %2713, %v2467
    %v2715 = vpop.permute.xlu0 %2714
    %2716 = vset.pattern.permute.xlu0 0
    %2717 = vperm.xlu0 %2716, %v2469
    %v2718 = vpop.permute.xlu0 %2717
    %2719 = vset.pattern.permute.xlu0 0
    %2720 = vperm.xlu0 %2719, %v2471
    %v2721 = vpop.permute.xlu0 %2720
    %2722 = vset.pattern.permute.xlu0 0
    %2723 = vperm.xlu0 %2722, %v2473
    %v2724 = vpop.permute.xlu0 %2723
    %2725 = vset.pattern.permute.xlu0 0
    %2726 = vperm.xlu0 %2725, %v2475
    %v2727 = vpop.permute.xlu0 %2726
    %2728 = vset.pattern.permute.xlu0 0
    %2729 = vperm.xlu0 %2728, %v2477
    %v2730 = vpop.permute.xlu0 %2729
    %2731 = vset.pattern.permute.xlu0 0
    %2732 = vperm.xlu0 %2731, %v2479
    %v2733 = vpop.permute.xlu0 %2732
    %2734 = vset.pattern.permute.xlu0 0
    %2735 = vperm.xlu0 %2734, %v2481
    %v2736 = vpop.permute.xlu0 %2735
    %2737 = vset.pattern.permute.xlu0 0
    %2738 = vperm.xlu0 %2737, %v2483
    %v2739 = vpop.permute.xlu0 %2738
    %v2740 = vlaneseq
    %v2741 = vshrl.u32 %v2740, 7
    %v2742 = vsub.s32 %v1224, %v2741
    %v2743 = vrot.slane %v2550, %v2742
    %v2744 = vlaneseq
    %v2745 = vshrl.u32 %v2744, 7
    %v2746 = vsub.s32 %v1224, %v2745
    %v2747 = vrot.slane %v2553, %v2746
    %v2748 = vlaneseq
    %v2749 = vshrl.u32 %v2748, 7
    %v2750 = vsub.s32 %v1224, %v2749
    %v2751 = vrot.slane %v2556, %v2750
    %v2752 = vlaneseq
    %v2753 = vshrl.u32 %v2752, 7
    %v2754 = vsub.s32 %v1224, %v2753
    %v2755 = vrot.slane %v2559, %v2754
    %v2756 = vlaneseq
    %v2757 = vshrl.u32 %v2756, 7
    %v2758 = vsub.s32 %v1224, %v2757
    %v2759 = vrot.slane %v2562, %v2758
    %v2760 = vlaneseq
    %v2761 = vshrl.u32 %v2760, 7
    %v2762 = vsub.s32 %v1224, %v2761
    %v2763 = vrot.slane %v2565, %v2762
    %v2764 = vlaneseq
    %v2765 = vshrl.u32 %v2764, 7
    %v2766 = vsub.s32 %v1224, %v2765
    %v2767 = vrot.slane %v2568, %v2766
    %v2768 = vlaneseq
    %v2769 = vshrl.u32 %v2768, 7
    %v2770 = vsub.s32 %v1224, %v2769
    %v2771 = vrot.slane %v2571, %v2770
    %v2772 = vlaneseq
    %v2773 = vshrl.u32 %v2772, 7
    %v2774 = vsub.s32 %v1224, %v2773
    %v2775 = vrot.slane %v2574, %v2774
    %v2776 = vlaneseq
    %v2777 = vshrl.u32 %v2776, 7
    %v2778 = vsub.s32 %v1224, %v2777
    %v2779 = vrot.slane %v2577, %v2778
    %v2780 = vlaneseq
    %v2781 = vshrl.u32 %v2780, 7
    %v2782 = vsub.s32 %v1224, %v2781
    %v2783 = vrot.slane %v2580, %v2782
    %v2784 = vlaneseq
    %v2785 = vshrl.u32 %v2784, 7
    %v2786 = vsub.s32 %v1224, %v2785
    %v2787 = vrot.slane %v2583, %v2786
    %v2788 = vlaneseq
    %v2789 = vshrl.u32 %v2788, 7
    %v2790 = vsub.s32 %v1224, %v2789
    %v2791 = vrot.slane %v2586, %v2790
    %v2792 = vlaneseq
    %v2793 = vshrl.u32 %v2792, 7
    %v2794 = vsub.s32 %v1224, %v2793
    %v2795 = vrot.slane %v2589, %v2794
    %v2796 = vlaneseq
    %v2797 = vshrl.u32 %v2796, 7
    %v2798 = vsub.s32 %v1224, %v2797
    %v2799 = vrot.slane %v2592, %v2798
    %v2800 = vlaneseq
    %v2801 = vshrl.u32 %v2800, 7
    %v2802 = vsub.s32 %v1224, %v2801
    %v2803 = vrot.slane %v2595, %v2802
    %v2804 = vlaneseq
    %v2805 = vshrl.u32 %v2804, 7
    %v2806 = vsub.s32 %v1224, %v2805
    %v2807 = vrot.slane %v2598, %v2806
    %v2808 = vlaneseq
    %v2809 = vshrl.u32 %v2808, 7
    %v2810 = vsub.s32 %v1224, %v2809
    %v2811 = vrot.slane %v2601, %v2810
    %v2812 = vlaneseq
    %v2813 = vshrl.u32 %v2812, 7
    %v2814 = vsub.s32 %v1224, %v2813
    %v2815 = vrot.slane %v2604, %v2814
    %v2816 = vlaneseq
    %v2817 = vshrl.u32 %v2816, 7
    %v2818 = vsub.s32 %v1224, %v2817
    %v2819 = vrot.slane %v2607, %v2818
    %v2820 = vlaneseq
    %v2821 = vshrl.u32 %v2820, 7
    %v2822 = vsub.s32 %v1224, %v2821
    %v2823 = vrot.slane %v2610, %v2822
    %v2824 = vlaneseq
    %v2825 = vshrl.u32 %v2824, 7
    %v2826 = vsub.s32 %v1224, %v2825
    %v2827 = vrot.slane %v2613, %v2826
    %v2828 = vlaneseq
    %v2829 = vshrl.u32 %v2828, 7
    %v2830 = vsub.s32 %v1224, %v2829
    %v2831 = vrot.slane %v2616, %v2830
    %v2832 = vlaneseq
    %v2833 = vshrl.u32 %v2832, 7
    %v2834 = vsub.s32 %v1224, %v2833
    %v2835 = vrot.slane %v2619, %v2834
    %v2836 = vlaneseq
    %v2837 = vshrl.u32 %v2836, 7
    %v2838 = vsub.s32 %v1224, %v2837
    %v2839 = vrot.slane %v2622, %v2838
    %v2840 = vlaneseq
    %v2841 = vshrl.u32 %v2840, 7
    %v2842 = vsub.s32 %v1224, %v2841
    %v2843 = vrot.slane %v2625, %v2842
    %v2844 = vlaneseq
    %v2845 = vshrl.u32 %v2844, 7
    %v2846 = vsub.s32 %v1224, %v2845
    %v2847 = vrot.slane %v2628, %v2846
    %v2848 = vlaneseq
    %v2849 = vshrl.u32 %v2848, 7
    %v2850 = vsub.s32 %v1224, %v2849
    %v2851 = vrot.slane %v2631, %v2850
    %v2852 = vlaneseq
    %v2853 = vshrl.u32 %v2852, 7
    %v2854 = vsub.s32 %v1224, %v2853
    %v2855 = vrot.slane %v2634, %v2854
    %v2856 = vlaneseq
    %v2857 = vshrl.u32 %v2856, 7
    %v2858 = vsub.s32 %v1224, %v2857
    %v2859 = vrot.slane %v2637, %v2858
    %v2860 = vlaneseq
    %v2861 = vshrl.u32 %v2860, 7
    %v2862 = vsub.s32 %v1224, %v2861
    %v2863 = vrot.slane %v2640, %v2862
    %v2864 = vlaneseq
    %v2865 = vshrl.u32 %v2864, 7
    %v2866 = vsub.s32 %v1224, %v2865
    %v2867 = vrot.slane %v2643, %v2866
    %v2868 = vlaneseq
    %v2869 = vshrl.u32 %v2868, 7
    %v2870 = vsub.s32 %v1224, %v2869
    %v2871 = vrot.slane %v2646, %v2870
    %v2872 = vlaneseq
    %v2873 = vshrl.u32 %v2872, 7
    %v2874 = vsub.s32 %v1224, %v2873
    %v2875 = vrot.slane %v2649, %v2874
    %v2876 = vlaneseq
    %v2877 = vshrl.u32 %v2876, 7
    %v2878 = vsub.s32 %v1224, %v2877
    %v2879 = vrot.slane %v2652, %v2878
    %v2880 = vlaneseq
    %v2881 = vshrl.u32 %v2880, 7
    %v2882 = vsub.s32 %v1224, %v2881
    %v2883 = vrot.slane %v2655, %v2882
    %v2884 = vlaneseq
    %v2885 = vshrl.u32 %v2884, 7
    %v2886 = vsub.s32 %v1224, %v2885
    %v2887 = vrot.slane %v2658, %v2886
    %v2888 = vlaneseq
    %v2889 = vshrl.u32 %v2888, 7
    %v2890 = vsub.s32 %v1224, %v2889
    %v2891 = vrot.slane %v2661, %v2890
    %v2892 = vlaneseq
    %v2893 = vshrl.u32 %v2892, 7
    %v2894 = vsub.s32 %v1224, %v2893
    %v2895 = vrot.slane %v2664, %v2894
    %v2896 = vlaneseq
    %v2897 = vshrl.u32 %v2896, 7
    %v2898 = vsub.s32 %v1224, %v2897
    %v2899 = vrot.slane %v2667, %v2898
    %v2900 = vlaneseq
    %v2901 = vshrl.u32 %v2900, 7
    %v2902 = vsub.s32 %v1224, %v2901
    %v2903 = vrot.slane %v2670, %v2902
    %v2904 = vlaneseq
    %v2905 = vshrl.u32 %v2904, 7
    %v2906 = vsub.s32 %v1224, %v2905
    %v2907 = vrot.slane %v2673, %v2906
    %v2908 = vlaneseq
    %v2909 = vshrl.u32 %v2908, 7
    %v2910 = vsub.s32 %v1224, %v2909
    %v2911 = vrot.slane %v2676, %v2910
    %v2912 = vlaneseq
    %v2913 = vshrl.u32 %v2912, 7
    %v2914 = vsub.s32 %v1224, %v2913
    %v2915 = vrot.slane %v2679, %v2914
    %v2916 = vlaneseq
    %v2917 = vshrl.u32 %v2916, 7
    %v2918 = vsub.s32 %v1224, %v2917
    %v2919 = vrot.slane %v2682, %v2918
    %v2920 = vlaneseq
    %v2921 = vshrl.u32 %v2920, 7
    %v2922 = vsub.s32 %v1224, %v2921
    %v2923 = vrot.slane %v2685, %v2922
    %v2924 = vlaneseq
    %v2925 = vshrl.u32 %v2924, 7
    %v2926 = vsub.s32 %v1224, %v2925
    %v2927 = vrot.slane %v2688, %v2926
    %v2928 = vlaneseq
    %v2929 = vshrl.u32 %v2928, 7
    %v2930 = vsub.s32 %v1224, %v2929
    %v2931 = vrot.slane %v2691, %v2930
    %v2932 = vlaneseq
    %v2933 = vshrl.u32 %v2932, 7
    %v2934 = vsub.s32 %v1224, %v2933
    %v2935 = vrot.slane %v2694, %v2934
    %v2936 = vlaneseq
    %v2937 = vshrl.u32 %v2936, 7
    %v2938 = vsub.s32 %v1224, %v2937
    %v2939 = vrot.slane %v2697, %v2938
    %v2940 = vlaneseq
    %v2941 = vshrl.u32 %v2940, 7
    %v2942 = vsub.s32 %v1224, %v2941
    %v2943 = vrot.slane %v2700, %v2942
    %v2944 = vlaneseq
    %v2945 = vshrl.u32 %v2944, 7
    %v2946 = vsub.s32 %v1224, %v2945
    %v2947 = vrot.slane %v2703, %v2946
    %v2948 = vlaneseq
    %v2949 = vshrl.u32 %v2948, 7
    %v2950 = vsub.s32 %v1224, %v2949
    %v2951 = vrot.slane %v2706, %v2950
    %v2952 = vlaneseq
    %v2953 = vshrl.u32 %v2952, 7
    %v2954 = vsub.s32 %v1224, %v2953
    %v2955 = vrot.slane %v2709, %v2954
    %v2956 = vlaneseq
    %v2957 = vshrl.u32 %v2956, 7
    %v2958 = vsub.s32 %v1224, %v2957
    %v2959 = vrot.slane %v2712, %v2958
    %v2960 = vlaneseq
    %v2961 = vshrl.u32 %v2960, 7
    %v2962 = vsub.s32 %v1224, %v2961
    %v2963 = vrot.slane %v2715, %v2962
    %v2964 = vlaneseq
    %v2965 = vshrl.u32 %v2964, 7
    %v2966 = vsub.s32 %v1224, %v2965
    %v2967 = vrot.slane %v2718, %v2966
    %v2968 = vlaneseq
    %v2969 = vshrl.u32 %v2968, 7
    %v2970 = vsub.s32 %v1224, %v2969
    %v2971 = vrot.slane %v2721, %v2970
    %v2972 = vlaneseq
    %v2973 = vshrl.u32 %v2972, 7
    %v2974 = vsub.s32 %v1224, %v2973
    %v2975 = vrot.slane %v2724, %v2974
    %v2976 = vlaneseq
    %v2977 = vshrl.u32 %v2976, 7
    %v2978 = vsub.s32 %v1224, %v2977
    %v2979 = vrot.slane %v2727, %v2978
    %v2980 = vlaneseq
    %v2981 = vshrl.u32 %v2980, 7
    %v2982 = vsub.s32 %v1224, %v2981
    %v2983 = vrot.slane %v2730, %v2982
    %v2984 = vlaneseq
    %v2985 = vshrl.u32 %v2984, 7
    %v2986 = vsub.s32 %v1224, %v2985
    %v2987 = vrot.slane %v2733, %v2986
    %v2988 = vlaneseq
    %v2989 = vshrl.u32 %v2988, 7
    %v2990 = vsub.s32 %v1224, %v2989
    %v2991 = vrot.slane %v2736, %v2990
    %v2992 = vlaneseq
    %v2993 = vshrl.u32 %v2992, 7
    %v2994 = vsub.s32 %v1224, %v2993
    %v2995 = vrot.slane %v2739, %v2994
    %v2996 = vsel %vm1868, %v2747, %v2743
    %v2997 = vsel %vm1870, %v2751, %v2996
    %v2998 = vsel %vm1872, %v2755, %v2997
    %v2999 = vsel %vm1874, %v2759, %v2998
    %v3000 = vsel %vm1876, %v2763, %v2999
    %v3001 = vsel %vm1878, %v2767, %v3000
    %v3002 = vsel %vm1880, %v2771, %v3001
    %v3003 = vsel %vm1868, %v2779, %v2775
    %v3004 = vsel %vm1870, %v2783, %v3003
    %v3005 = vsel %vm1872, %v2787, %v3004
    %v3006 = vsel %vm1874, %v2791, %v3005
    %v3007 = vsel %vm1876, %v2795, %v3006
    %v3008 = vsel %vm1878, %v2799, %v3007
    %v3009 = vsel %vm1880, %v2803, %v3008
    %v3010 = vsel %vm1868, %v2811, %v2807
    %v3011 = vsel %vm1870, %v2815, %v3010
    %v3012 = vsel %vm1872, %v2819, %v3011
    %v3013 = vsel %vm1874, %v2823, %v3012
    %v3014 = vsel %vm1876, %v2827, %v3013
    %v3015 = vsel %vm1878, %v2831, %v3014
    %v3016 = vsel %vm1880, %v2835, %v3015
    %v3017 = vsel %vm1868, %v2843, %v2839
    %v3018 = vsel %vm1870, %v2847, %v3017
    %v3019 = vsel %vm1872, %v2851, %v3018
    %v3020 = vsel %vm1874, %v2855, %v3019
    %v3021 = vsel %vm1876, %v2859, %v3020
    %v3022 = vsel %vm1878, %v2863, %v3021
    %v3023 = vsel %vm1880, %v2867, %v3022
    %v3024 = vsel %vm1868, %v2875, %v2871
    %v3025 = vsel %vm1870, %v2879, %v3024
    %v3026 = vsel %vm1872, %v2883, %v3025
    %v3027 = vsel %vm1874, %v2887, %v3026
    %v3028 = vsel %vm1876, %v2891, %v3027
    %v3029 = vsel %vm1878, %v2895, %v3028
    %v3030 = vsel %vm1880, %v2899, %v3029
    %v3031 = vsel %vm1868, %v2907, %v2903
    %v3032 = vsel %vm1870, %v2911, %v3031
    %v3033 = vsel %vm1872, %v2915, %v3032
    %v3034 = vsel %vm1874, %v2919, %v3033
    %v3035 = vsel %vm1876, %v2923, %v3034
    %v3036 = vsel %vm1878, %v2927, %v3035
    %v3037 = vsel %vm1880, %v2931, %v3036
    %v3038 = vsel %vm1868, %v2939, %v2935
    %v3039 = vsel %vm1870, %v2943, %v3038
    %v3040 = vsel %vm1872, %v2947, %v3039
    %v3041 = vsel %vm1874, %v2951, %v3040
    %v3042 = vsel %vm1876, %v2955, %v3041
    %v3043 = vsel %vm1878, %v2959, %v3042
    %v3044 = vsel %vm1880, %v2963, %v3043
    %v3045 = vsel %vm1868, %v2971, %v2967
    %v3046 = vsel %vm1870, %v2975, %v3045
    %v3047 = vsel %vm1872, %v2979, %v3046
    %v3048 = vsel %vm1874, %v2983, %v3047
    %v3049 = vsel %vm1876, %v2987, %v3048
    %v3050 = vsel %vm1878, %v2991, %v3049
    %v3051 = vsel %vm1880, %v2995, %v3050
    %v3060 = vsel %vm1939, %v3002, 0.0
    %3061 = vadd.xlane.f32.xlu0 %v3060
    %v3062 = vpop.xlane.xlu0 %3061
    %v3063 = vsel %vm1939, %v3009, 0.0
    %3064 = vadd.xlane.f32.xlu0 %v3063
    %v3065 = vpop.xlane.xlu0 %3064
    %v3066 = vsel %vm1939, %v3016, 0.0
    %3067 = vadd.xlane.f32.xlu0 %v3066
    %v3068 = vpop.xlane.xlu0 %3067
    %v3069 = vsel %vm1939, %v3023, 0.0
    %3070 = vadd.xlane.f32.xlu0 %v3069
    %v3071 = vpop.xlane.xlu0 %3070
    %v3072 = vsel %vm1939, %v3030, 0.0
    %3073 = vadd.xlane.f32.xlu0 %v3072
    %v3074 = vpop.xlane.xlu0 %3073
    %v3075 = vsel %vm1939, %v3037, 0.0
    %3076 = vadd.xlane.f32.xlu0 %v3075
    %v3077 = vpop.xlane.xlu0 %3076
    %v3078 = vsel %vm1939, %v3044, 0.0
    %3079 = vadd.xlane.f32.xlu0 %v3078
    %v3080 = vpop.xlane.xlu0 %3079
    %v3081 = vsel %vm1939, %v3051, 0.0
    %3082 = vadd.xlane.f32.xlu0 %v3081
    %v3083 = vpop.xlane.xlu0 %3082
    %v3084 = vrcp.pop %v3062
    %v3085 = vrcp.pop %v3065
    %v3086 = vrcp.pop %v3068
    %v3087 = vrcp.pop %v3071
    %v3088 = vrcp.pop %v3074
    %v3089 = vrcp.pop %v3077
    %v3090 = vrcp.pop %v3080
    %v3091 = vrcp.pop %v3083
    %v3100 = vlaneseq
    %v3101 = vshrl.u32 %v3100, 7
    %v3102 = vsub.s32 0, %v3101
    %v3103 = vrot.slane %v3084, %v3102
    %v3104 = vlaneseq
    %v3105 = vshrl.u32 %v3104, 7
    %v3106 = vsub.s32 1, %v3105
    %v3107 = vrot.slane %v3084, %v3106
    %v3108 = vlaneseq
    %v3109 = vshrl.u32 %v3108, 7
    %v3110 = vsub.s32 2, %v3109
    %v3111 = vrot.slane %v3084, %v3110
    %v3112 = vlaneseq
    %v3113 = vshrl.u32 %v3112, 7
    %v3114 = vsub.s32 3, %v3113
    %v3115 = vrot.slane %v3084, %v3114
    %v3116 = vlaneseq
    %v3117 = vshrl.u32 %v3116, 7
    %v3118 = vsub.s32 4, %v3117
    %v3119 = vrot.slane %v3084, %v3118
    %v3120 = vlaneseq
    %v3121 = vshrl.u32 %v3120, 7
    %v3122 = vsub.s32 5, %v3121
    %v3123 = vrot.slane %v3084, %v3122
    %v3124 = vlaneseq
    %v3125 = vshrl.u32 %v3124, 7
    %v3126 = vsub.s32 6, %v3125
    %v3127 = vrot.slane %v3084, %v3126
    %v3128 = vlaneseq
    %v3129 = vshrl.u32 %v3128, 7
    %v3130 = vsub.s32 7, %v3129
    %v3131 = vrot.slane %v3084, %v3130
    %v3132 = vlaneseq
    %v3133 = vshrl.u32 %v3132, 7
    %v3134 = vsub.s32 0, %v3133
    %v3135 = vrot.slane %v3085, %v3134
    %v3136 = vlaneseq
    %v3137 = vshrl.u32 %v3136, 7
    %v3138 = vsub.s32 1, %v3137
    %v3139 = vrot.slane %v3085, %v3138
    %v3140 = vlaneseq
    %v3141 = vshrl.u32 %v3140, 7
    %v3142 = vsub.s32 2, %v3141
    %v3143 = vrot.slane %v3085, %v3142
    %v3144 = vlaneseq
    %v3145 = vshrl.u32 %v3144, 7
    %v3146 = vsub.s32 3, %v3145
    %v3147 = vrot.slane %v3085, %v3146
    %v3148 = vlaneseq
    %v3149 = vshrl.u32 %v3148, 7
    %v3150 = vsub.s32 4, %v3149
    %v3151 = vrot.slane %v3085, %v3150
    %v3152 = vlaneseq
    %v3153 = vshrl.u32 %v3152, 7
    %v3154 = vsub.s32 5, %v3153
    %v3155 = vrot.slane %v3085, %v3154
    %v3156 = vlaneseq
    %v3157 = vshrl.u32 %v3156, 7
    %v3158 = vsub.s32 6, %v3157
    %v3159 = vrot.slane %v3085, %v3158
    %v3160 = vlaneseq
    %v3161 = vshrl.u32 %v3160, 7
    %v3162 = vsub.s32 7, %v3161
    %v3163 = vrot.slane %v3085, %v3162
    %v3164 = vlaneseq
    %v3165 = vshrl.u32 %v3164, 7
    %v3166 = vsub.s32 0, %v3165
    %v3167 = vrot.slane %v3086, %v3166
    %v3168 = vlaneseq
    %v3169 = vshrl.u32 %v3168, 7
    %v3170 = vsub.s32 1, %v3169
    %v3171 = vrot.slane %v3086, %v3170
    %v3172 = vlaneseq
    %v3173 = vshrl.u32 %v3172, 7
    %v3174 = vsub.s32 2, %v3173
    %v3175 = vrot.slane %v3086, %v3174
    %v3176 = vlaneseq
    %v3177 = vshrl.u32 %v3176, 7
    %v3178 = vsub.s32 3, %v3177
    %v3179 = vrot.slane %v3086, %v3178
    %v3180 = vlaneseq
    %v3181 = vshrl.u32 %v3180, 7
    %v3182 = vsub.s32 4, %v3181
    %v3183 = vrot.slane %v3086, %v3182
    %v3184 = vlaneseq
    %v3185 = vshrl.u32 %v3184, 7
    %v3186 = vsub.s32 5, %v3185
    %v3187 = vrot.slane %v3086, %v3186
    %v3188 = vlaneseq
    %v3189 = vshrl.u32 %v3188, 7
    %v3190 = vsub.s32 6, %v3189
    %v3191 = vrot.slane %v3086, %v3190
    %v3192 = vlaneseq
    %v3193 = vshrl.u32 %v3192, 7
    %v3194 = vsub.s32 7, %v3193
    %v3195 = vrot.slane %v3086, %v3194
    %v3196 = vlaneseq
    %v3197 = vshrl.u32 %v3196, 7
    %v3198 = vsub.s32 0, %v3197
    %v3199 = vrot.slane %v3087, %v3198
    %v3200 = vlaneseq
    %v3201 = vshrl.u32 %v3200, 7
    %v3202 = vsub.s32 1, %v3201
    %v3203 = vrot.slane %v3087, %v3202
    %v3204 = vlaneseq
    %v3205 = vshrl.u32 %v3204, 7
    %v3206 = vsub.s32 2, %v3205
    %v3207 = vrot.slane %v3087, %v3206
    %v3208 = vlaneseq
    %v3209 = vshrl.u32 %v3208, 7
    %v3210 = vsub.s32 3, %v3209
    %v3211 = vrot.slane %v3087, %v3210
    %v3212 = vlaneseq
    %v3213 = vshrl.u32 %v3212, 7
    %v3214 = vsub.s32 4, %v3213
    %v3215 = vrot.slane %v3087, %v3214
    %v3216 = vlaneseq
    %v3217 = vshrl.u32 %v3216, 7
    %v3218 = vsub.s32 5, %v3217
    %v3219 = vrot.slane %v3087, %v3218
    %v3220 = vlaneseq
    %v3221 = vshrl.u32 %v3220, 7
    %v3222 = vsub.s32 6, %v3221
    %v3223 = vrot.slane %v3087, %v3222
    %v3224 = vlaneseq
    %v3225 = vshrl.u32 %v3224, 7
    %v3226 = vsub.s32 7, %v3225
    %v3227 = vrot.slane %v3087, %v3226
    %v3228 = vlaneseq
    %v3229 = vshrl.u32 %v3228, 7
    %v3230 = vsub.s32 0, %v3229
    %v3231 = vrot.slane %v3088, %v3230
    %v3232 = vlaneseq
    %v3233 = vshrl.u32 %v3232, 7
    %v3234 = vsub.s32 1, %v3233
    %v3235 = vrot.slane %v3088, %v3234
    %v3236 = vlaneseq
    %v3237 = vshrl.u32 %v3236, 7
    %v3238 = vsub.s32 2, %v3237
    %v3239 = vrot.slane %v3088, %v3238
    %v3240 = vlaneseq
    %v3241 = vshrl.u32 %v3240, 7
    %v3242 = vsub.s32 3, %v3241
    %v3243 = vrot.slane %v3088, %v3242
    %v3244 = vlaneseq
    %v3245 = vshrl.u32 %v3244, 7
    %v3246 = vsub.s32 4, %v3245
    %v3247 = vrot.slane %v3088, %v3246
    %v3248 = vlaneseq
    %v3249 = vshrl.u32 %v3248, 7
    %v3250 = vsub.s32 5, %v3249
    %v3251 = vrot.slane %v3088, %v3250
    %v3252 = vlaneseq
    %v3253 = vshrl.u32 %v3252, 7
    %v3254 = vsub.s32 6, %v3253
    %v3255 = vrot.slane %v3088, %v3254
    %v3256 = vlaneseq
    %v3257 = vshrl.u32 %v3256, 7
    %v3258 = vsub.s32 7, %v3257
    %v3259 = vrot.slane %v3088, %v3258
    %v3260 = vlaneseq
    %v3261 = vshrl.u32 %v3260, 7
    %v3262 = vsub.s32 0, %v3261
    %v3263 = vrot.slane %v3089, %v3262
    %v3264 = vlaneseq
    %v3265 = vshrl.u32 %v3264, 7
    %v3266 = vsub.s32 1, %v3265
    %v3267 = vrot.slane %v3089, %v3266
    %v3268 = vlaneseq
    %v3269 = vshrl.u32 %v3268, 7
    %v3270 = vsub.s32 2, %v3269
    %v3271 = vrot.slane %v3089, %v3270
    %v3272 = vlaneseq
    %v3273 = vshrl.u32 %v3272, 7
    %v3274 = vsub.s32 3, %v3273
    %v3275 = vrot.slane %v3089, %v3274
    %v3276 = vlaneseq
    %v3277 = vshrl.u32 %v3276, 7
    %v3278 = vsub.s32 4, %v3277
    %v3279 = vrot.slane %v3089, %v3278
    %v3280 = vlaneseq
    %v3281 = vshrl.u32 %v3280, 7
    %v3282 = vsub.s32 5, %v3281
    %v3283 = vrot.slane %v3089, %v3282
    %v3284 = vlaneseq
    %v3285 = vshrl.u32 %v3284, 7
    %v3286 = vsub.s32 6, %v3285
    %v3287 = vrot.slane %v3089, %v3286
    %v3288 = vlaneseq
    %v3289 = vshrl.u32 %v3288, 7
    %v3290 = vsub.s32 7, %v3289
    %v3291 = vrot.slane %v3089, %v3290
    %v3292 = vlaneseq
    %v3293 = vshrl.u32 %v3292, 7
    %v3294 = vsub.s32 0, %v3293
    %v3295 = vrot.slane %v3090, %v3294
    %v3296 = vlaneseq
    %v3297 = vshrl.u32 %v3296, 7
    %v3298 = vsub.s32 1, %v3297
    %v3299 = vrot.slane %v3090, %v3298
    %v3300 = vlaneseq
    %v3301 = vshrl.u32 %v3300, 7
    %v3302 = vsub.s32 2, %v3301
    %v3303 = vrot.slane %v3090, %v3302
    %v3304 = vlaneseq
    %v3305 = vshrl.u32 %v3304, 7
    %v3306 = vsub.s32 3, %v3305
    %v3307 = vrot.slane %v3090, %v3306
    %v3308 = vlaneseq
    %v3309 = vshrl.u32 %v3308, 7
    %v3310 = vsub.s32 4, %v3309
    %v3311 = vrot.slane %v3090, %v3310
    %v3312 = vlaneseq
    %v3313 = vshrl.u32 %v3312, 7
    %v3314 = vsub.s32 5, %v3313
    %v3315 = vrot.slane %v3090, %v3314
    %v3316 = vlaneseq
    %v3317 = vshrl.u32 %v3316, 7
    %v3318 = vsub.s32 6, %v3317
    %v3319 = vrot.slane %v3090, %v3318
    %v3320 = vlaneseq
    %v3321 = vshrl.u32 %v3320, 7
    %v3322 = vsub.s32 7, %v3321
    %v3323 = vrot.slane %v3090, %v3322
    %v3324 = vlaneseq
    %v3325 = vshrl.u32 %v3324, 7
    %v3326 = vsub.s32 0, %v3325
    %v3327 = vrot.slane %v3091, %v3326
    %v3328 = vlaneseq
    %v3329 = vshrl.u32 %v3328, 7
    %v3330 = vsub.s32 1, %v3329
    %v3331 = vrot.slane %v3091, %v3330
    %v3332 = vlaneseq
    %v3333 = vshrl.u32 %v3332, 7
    %v3334 = vsub.s32 2, %v3333
    %v3335 = vrot.slane %v3091, %v3334
    %v3336 = vlaneseq
    %v3337 = vshrl.u32 %v3336, 7
    %v3338 = vsub.s32 3, %v3337
    %v3339 = vrot.slane %v3091, %v3338
    %v3340 = vlaneseq
    %v3341 = vshrl.u32 %v3340, 7
    %v3342 = vsub.s32 4, %v3341
    %v3343 = vrot.slane %v3091, %v3342
    %v3344 = vlaneseq
    %v3345 = vshrl.u32 %v3344, 7
    %v3346 = vsub.s32 5, %v3345
    %v3347 = vrot.slane %v3091, %v3346
    %v3348 = vlaneseq
    %v3349 = vshrl.u32 %v3348, 7
    %v3350 = vsub.s32 6, %v3349
    %v3351 = vrot.slane %v3091, %v3350
    %v3352 = vlaneseq
    %v3353 = vshrl.u32 %v3352, 7
    %v3354 = vsub.s32 7, %v3353
    %v3355 = vrot.slane %v3091, %v3354
    %v3420 = vmul.f32 %v2357, %v3103
    %v3421 = vmul.f32 %v2359, %v3107
    %v3422 = vmul.f32 %v2361, %v3111
    %v3423 = vmul.f32 %v2363, %v3115
    %v3424 = vmul.f32 %v2365, %v3119
    %v3425 = vmul.f32 %v2367, %v3123
    %v3426 = vmul.f32 %v2369, %v3127
    %v3427 = vmul.f32 %v2371, %v3131
    %v3428 = vmul.f32 %v2373, %v3135
    %v3429 = vmul.f32 %v2375, %v3139
    %v3430 = vmul.f32 %v2377, %v3143
    %v3431 = vmul.f32 %v2379, %v3147
    %v3432 = vmul.f32 %v2381, %v3151
    %v3433 = vmul.f32 %v2383, %v3155
    %v3434 = vmul.f32 %v2385, %v3159
    %v3435 = vmul.f32 %v2387, %v3163
    %v3436 = vmul.f32 %v2389, %v3167
    %v3437 = vmul.f32 %v2391, %v3171
    %v3438 = vmul.f32 %v2393, %v3175
    %v3439 = vmul.f32 %v2395, %v3179
    %v3440 = vmul.f32 %v2397, %v3183
    %v3441 = vmul.f32 %v2399, %v3187
    %v3442 = vmul.f32 %v2401, %v3191
    %v3443 = vmul.f32 %v2403, %v3195
    %v3444 = vmul.f32 %v2405, %v3199
    %v3445 = vmul.f32 %v2407, %v3203
    %v3446 = vmul.f32 %v2409, %v3207
    %v3447 = vmul.f32 %v2411, %v3211
    %v3448 = vmul.f32 %v2413, %v3215
    %v3449 = vmul.f32 %v2415, %v3219
    %v3450 = vmul.f32 %v2417, %v3223
    %v3451 = vmul.f32 %v2419, %v3227
    %v3452 = vmul.f32 %v2421, %v3231
    %v3453 = vmul.f32 %v2423, %v3235
    %v3454 = vmul.f32 %v2425, %v3239
    %v3455 = vmul.f32 %v2427, %v3243
    %v3456 = vmul.f32 %v2429, %v3247
    %v3457 = vmul.f32 %v2431, %v3251
    %v3458 = vmul.f32 %v2433, %v3255
    %v3459 = vmul.f32 %v2435, %v3259
    %v3460 = vmul.f32 %v2437, %v3263
    %v3461 = vmul.f32 %v2439, %v3267
    %v3462 = vmul.f32 %v2441, %v3271
    %v3463 = vmul.f32 %v2443, %v3275
    %v3464 = vmul.f32 %v2445, %v3279
    %v3465 = vmul.f32 %v2447, %v3283
    %v3466 = vmul.f32 %v2449, %v3287
    %v3467 = vmul.f32 %v2451, %v3291
    %v3468 = vmul.f32 %v2453, %v3295
    %v3469 = vmul.f32 %v2455, %v3299
    %v3470 = vmul.f32 %v2457, %v3303
    %v3471 = vmul.f32 %v2459, %v3307
    %v3472 = vmul.f32 %v2461, %v3311
    %v3473 = vmul.f32 %v2463, %v3315
    %v3474 = vmul.f32 %v2465, %v3319
    %v3475 = vmul.f32 %v2467, %v3323
    %v3476 = vmul.f32 %v2469, %v3327
    %v3477 = vmul.f32 %v2471, %v3331
    %v3478 = vmul.f32 %v2473, %v3335
    %v3479 = vmul.f32 %v2475, %v3339
    %v3480 = vmul.f32 %v2477, %v3343
    %v3481 = vmul.f32 %v2479, %v3347
    %v3482 = vmul.f32 %v2481, %v3351
    %v3483 = vmul.f32 %v2483, %v3355
    %3485 = vset.pattern.permute.xlu0 0
    %3486 = vperm.xlu0 %3485, %v3420
    %v3487 = vpop.permute.xlu0 %3486
    %3490 = vset.pattern.permute.xlu0 0
    %3491 = vperm.xlu0 %3490, %v3421
    %v3492 = vpop.permute.xlu0 %3491
    %3495 = vset.pattern.permute.xlu0 0
    %3496 = vperm.xlu0 %3495, %v3422
    %v3497 = vpop.permute.xlu0 %3496
    %3500 = vset.pattern.permute.xlu0 0
    %3501 = vperm.xlu0 %3500, %v3423
    %v3502 = vpop.permute.xlu0 %3501
    %3505 = vset.pattern.permute.xlu0 0
    %3506 = vperm.xlu0 %3505, %v3424
    %v3507 = vpop.permute.xlu0 %3506
    %3510 = vset.pattern.permute.xlu0 0
    %3511 = vperm.xlu0 %3510, %v3425
    %v3512 = vpop.permute.xlu0 %3511
    %3515 = vset.pattern.permute.xlu0 0
    %3516 = vperm.xlu0 %3515, %v3426
    %v3517 = vpop.permute.xlu0 %3516
    %3520 = vset.pattern.permute.xlu0 0
    %3521 = vperm.xlu0 %3520, %v3427
    %v3522 = vpop.permute.xlu0 %3521
    %3525 = vset.pattern.permute.xlu0 0
    %3526 = vperm.xlu0 %3525, %v3428
    %v3527 = vpop.permute.xlu0 %3526
    %3530 = vset.pattern.permute.xlu0 0
    %3531 = vperm.xlu0 %3530, %v3429
    %v3532 = vpop.permute.xlu0 %3531
    %3535 = vset.pattern.permute.xlu0 0
    %3536 = vperm.xlu0 %3535, %v3430
    %v3537 = vpop.permute.xlu0 %3536
    %3540 = vset.pattern.permute.xlu0 0
    %3541 = vperm.xlu0 %3540, %v3431
    %v3542 = vpop.permute.xlu0 %3541
    %3545 = vset.pattern.permute.xlu0 0
    %3546 = vperm.xlu0 %3545, %v3432
    %v3547 = vpop.permute.xlu0 %3546
    %3550 = vset.pattern.permute.xlu0 0
    %3551 = vperm.xlu0 %3550, %v3433
    %v3552 = vpop.permute.xlu0 %3551
    %3555 = vset.pattern.permute.xlu0 0
    %3556 = vperm.xlu0 %3555, %v3434
    %v3557 = vpop.permute.xlu0 %3556
    %3560 = vset.pattern.permute.xlu0 0
    %3561 = vperm.xlu0 %3560, %v3435
    %v3562 = vpop.permute.xlu0 %3561
    %3565 = vset.pattern.permute.xlu0 0
    %3566 = vperm.xlu0 %3565, %v3436
    %v3567 = vpop.permute.xlu0 %3566
    %3570 = vset.pattern.permute.xlu0 0
    %3571 = vperm.xlu0 %3570, %v3437
    %v3572 = vpop.permute.xlu0 %3571
    %3575 = vset.pattern.permute.xlu0 0
    %3576 = vperm.xlu0 %3575, %v3438
    %v3577 = vpop.permute.xlu0 %3576
    %3580 = vset.pattern.permute.xlu0 0
    %3581 = vperm.xlu0 %3580, %v3439
    %v3582 = vpop.permute.xlu0 %3581
    %3585 = vset.pattern.permute.xlu0 0
    %3586 = vperm.xlu0 %3585, %v3440
    %v3587 = vpop.permute.xlu0 %3586
    %3590 = vset.pattern.permute.xlu0 0
    %3591 = vperm.xlu0 %3590, %v3441
    %v3592 = vpop.permute.xlu0 %3591
    %3595 = vset.pattern.permute.xlu0 0
    %3596 = vperm.xlu0 %3595, %v3442
    %v3597 = vpop.permute.xlu0 %3596
    %3600 = vset.pattern.permute.xlu0 0
    %3601 = vperm.xlu0 %3600, %v3443
    %v3602 = vpop.permute.xlu0 %3601
    %3605 = vset.pattern.permute.xlu0 0
    %3606 = vperm.xlu0 %3605, %v3444
    %v3607 = vpop.permute.xlu0 %3606
    %3610 = vset.pattern.permute.xlu0 0
    %3611 = vperm.xlu0 %3610, %v3445
    %v3612 = vpop.permute.xlu0 %3611
    %3615 = vset.pattern.permute.xlu0 0
    %3616 = vperm.xlu0 %3615, %v3446
    %v3617 = vpop.permute.xlu0 %3616
    %3620 = vset.pattern.permute.xlu0 0
    %3621 = vperm.xlu0 %3620, %v3447
    %v3622 = vpop.permute.xlu0 %3621
    %3625 = vset.pattern.permute.xlu0 0
    %3626 = vperm.xlu0 %3625, %v3448
    %v3627 = vpop.permute.xlu0 %3626
    %3630 = vset.pattern.permute.xlu0 0
    %3631 = vperm.xlu0 %3630, %v3449
    %v3632 = vpop.permute.xlu0 %3631
    %3635 = vset.pattern.permute.xlu0 0
    %3636 = vperm.xlu0 %3635, %v3450
    %v3637 = vpop.permute.xlu0 %3636
    %3640 = vset.pattern.permute.xlu0 0
    %3641 = vperm.xlu0 %3640, %v3451
    %v3642 = vpop.permute.xlu0 %3641
    %3645 = vset.pattern.permute.xlu0 0
    %3646 = vperm.xlu0 %3645, %v3452
    %v3647 = vpop.permute.xlu0 %3646
    %3650 = vset.pattern.permute.xlu0 0
    %3651 = vperm.xlu0 %3650, %v3453
    %v3652 = vpop.permute.xlu0 %3651
    %3655 = vset.pattern.permute.xlu0 0
    %3656 = vperm.xlu0 %3655, %v3454
    %v3657 = vpop.permute.xlu0 %3656
    %3660 = vset.pattern.permute.xlu0 0
    %3661 = vperm.xlu0 %3660, %v3455
    %v3662 = vpop.permute.xlu0 %3661
    %3665 = vset.pattern.permute.xlu0 0
    %3666 = vperm.xlu0 %3665, %v3456
    %v3667 = vpop.permute.xlu0 %3666
    %3670 = vset.pattern.permute.xlu0 0
    %3671 = vperm.xlu0 %3670, %v3457
    %v3672 = vpop.permute.xlu0 %3671
    %3675 = vset.pattern.permute.xlu0 0
    %3676 = vperm.xlu0 %3675, %v3458
    %v3677 = vpop.permute.xlu0 %3676
    %3680 = vset.pattern.permute.xlu0 0
    %3681 = vperm.xlu0 %3680, %v3459
    %v3682 = vpop.permute.xlu0 %3681
    %3685 = vset.pattern.permute.xlu0 0
    %3686 = vperm.xlu0 %3685, %v3460
    %v3687 = vpop.permute.xlu0 %3686
    %3690 = vset.pattern.permute.xlu0 0
    %3691 = vperm.xlu0 %3690, %v3461
    %v3692 = vpop.permute.xlu0 %3691
    %3695 = vset.pattern.permute.xlu0 0
    %3696 = vperm.xlu0 %3695, %v3462
    %v3697 = vpop.permute.xlu0 %3696
    %3700 = vset.pattern.permute.xlu0 0
    %3701 = vperm.xlu0 %3700, %v3463
    %v3702 = vpop.permute.xlu0 %3701
    %3705 = vset.pattern.permute.xlu0 0
    %3706 = vperm.xlu0 %3705, %v3464
    %v3707 = vpop.permute.xlu0 %3706
    %3710 = vset.pattern.permute.xlu0 0
    %3711 = vperm.xlu0 %3710, %v3465
    %v3712 = vpop.permute.xlu0 %3711
    %3715 = vset.pattern.permute.xlu0 0
    %3716 = vperm.xlu0 %3715, %v3466
    %v3717 = vpop.permute.xlu0 %3716
    %3720 = vset.pattern.permute.xlu0 0
    %3721 = vperm.xlu0 %3720, %v3467
    %v3722 = vpop.permute.xlu0 %3721
    %3725 = vset.pattern.permute.xlu0 0
    %3726 = vperm.xlu0 %3725, %v3468
    %v3727 = vpop.permute.xlu0 %3726
    %3730 = vset.pattern.permute.xlu0 0
    %3731 = vperm.xlu0 %3730, %v3469
    %v3732 = vpop.permute.xlu0 %3731
    %3735 = vset.pattern.permute.xlu0 0
    %3736 = vperm.xlu0 %3735, %v3470
    %v3737 = vpop.permute.xlu0 %3736
    %3740 = vset.pattern.permute.xlu0 0
    %3741 = vperm.xlu0 %3740, %v3471
    %v3742 = vpop.permute.xlu0 %3741
    %3745 = vset.pattern.permute.xlu0 0
    %3746 = vperm.xlu0 %3745, %v3472
    %v3747 = vpop.permute.xlu0 %3746
    %3750 = vset.pattern.permute.xlu0 0
    %3751 = vperm.xlu0 %3750, %v3473
    %v3752 = vpop.permute.xlu0 %3751
    %3755 = vset.pattern.permute.xlu0 0
    %3756 = vperm.xlu0 %3755, %v3474
    %v3757 = vpop.permute.xlu0 %3756
    %3760 = vset.pattern.permute.xlu0 0
    %3761 = vperm.xlu0 %3760, %v3475
    %v3762 = vpop.permute.xlu0 %3761
    %3765 = vset.pattern.permute.xlu0 0
    %3766 = vperm.xlu0 %3765, %v3476
    %v3767 = vpop.permute.xlu0 %3766
    %3770 = vset.pattern.permute.xlu0 0
    %3771 = vperm.xlu0 %3770, %v3477
    %v3772 = vpop.permute.xlu0 %3771
    %3775 = vset.pattern.permute.xlu0 0
    %3776 = vperm.xlu0 %3775, %v3478
    %v3777 = vpop.permute.xlu0 %3776
    %3780 = vset.pattern.permute.xlu0 0
    %3781 = vperm.xlu0 %3780, %v3479
    %v3782 = vpop.permute.xlu0 %3781
    %3785 = vset.pattern.permute.xlu0 0
    %3786 = vperm.xlu0 %3785, %v3480
    %v3787 = vpop.permute.xlu0 %3786
    %3790 = vset.pattern.permute.xlu0 0
    %3791 = vperm.xlu0 %3790, %v3481
    %v3792 = vpop.permute.xlu0 %3791
    %3795 = vset.pattern.permute.xlu0 0
    %3796 = vperm.xlu0 %3795, %v3482
    %v3797 = vpop.permute.xlu0 %3796
    %3800 = vset.pattern.permute.xlu0 0
    %3801 = vperm.xlu0 %3800, %v3483
    %v3802 = vpop.permute.xlu0 %3801
    %v3804 = vmul.f32 %v3487, %v136
    %v3805 = vmul.f32 %v3492, %v136
    %v3806 = vmul.f32 %v3497, %v136
    %v3807 = vmul.f32 %v3502, %v136
    %v3808 = vmul.f32 %v3507, %v136
    %v3809 = vmul.f32 %v3512, %v136
    %v3810 = vmul.f32 %v3517, %v136
    %v3811 = vmul.f32 %v3522, %v136
    %v3812 = vmul.f32 %v3527, %v141
    %v3813 = vmul.f32 %v3532, %v141
    %v3814 = vmul.f32 %v3537, %v141
    %v3815 = vmul.f32 %v3542, %v141
    %v3816 = vmul.f32 %v3547, %v141
    %v3817 = vmul.f32 %v3552, %v141
    %v3818 = vmul.f32 %v3557, %v141
    %v3819 = vmul.f32 %v3562, %v141
    %v3820 = vmul.f32 %v3567, %v147
    %v3821 = vmul.f32 %v3572, %v147
    %v3822 = vmul.f32 %v3577, %v147
    %v3823 = vmul.f32 %v3582, %v147
    %v3824 = vmul.f32 %v3587, %v147
    %v3825 = vmul.f32 %v3592, %v147
    %v3826 = vmul.f32 %v3597, %v147
    %v3827 = vmul.f32 %v3602, %v147
    %v3828 = vmul.f32 %v3607, %v149
    %v3829 = vmul.f32 %v3612, %v149
    %v3830 = vmul.f32 %v3617, %v149
    %v3831 = vmul.f32 %v3622, %v149
    %v3832 = vmul.f32 %v3627, %v149
    %v3833 = vmul.f32 %v3632, %v149
    %v3834 = vmul.f32 %v3637, %v149
    %v3835 = vmul.f32 %v3642, %v149
    %v3836 = vmul.f32 %v3647, %v151
    %v3837 = vmul.f32 %v3652, %v151
    %v3838 = vmul.f32 %v3657, %v151
    %v3839 = vmul.f32 %v3662, %v151
    %v3840 = vmul.f32 %v3667, %v151
    %v3841 = vmul.f32 %v3672, %v151
    %v3842 = vmul.f32 %v3677, %v151
    %v3843 = vmul.f32 %v3682, %v151
    %v3844 = vmul.f32 %v3687, %v153
    %v3845 = vmul.f32 %v3692, %v153
    %v3846 = vmul.f32 %v3697, %v153
    %v3847 = vmul.f32 %v3702, %v153
    %v3848 = vmul.f32 %v3707, %v153
    %v3849 = vmul.f32 %v3712, %v153
    %v3850 = vmul.f32 %v3717, %v153
    %v3851 = vmul.f32 %v3722, %v153
    %v3852 = vmul.f32 %v3727, %v155
    %v3853 = vmul.f32 %v3732, %v155
    %v3854 = vmul.f32 %v3737, %v155
    %v3855 = vmul.f32 %v3742, %v155
    %v3856 = vmul.f32 %v3747, %v155
    %v3857 = vmul.f32 %v3752, %v155
    %v3858 = vmul.f32 %v3757, %v155
    %v3859 = vmul.f32 %v3762, %v155
    %v3860 = vmul.f32 %v3767, %v157
    %v3861 = vmul.f32 %v3772, %v157
    %v3862 = vmul.f32 %v3777, %v157
    %v3863 = vmul.f32 %v3782, %v157
    %v3864 = vmul.f32 %v3787, %v157
    %v3865 = vmul.f32 %v3792, %v157
    %v3866 = vmul.f32 %v3797, %v157
    %v3867 = vmul.f32 %v3802, %v157
    %vm3868 = vcmask 294144
    %v3869 = vsel %vm3868, %v3804, 0.0
    %v3870 = vrot.slane %v3869, 4
    %v3871 = vadd.f32 %v3869, %v3870
    %v3872 = vrot.slane %v3871, 2
    %v3873 = vadd.f32 %v3871, %v3872
    %v3874 = vrot.slane %v3873, 1
    %v3875 = vadd.f32 %v3873, %v3874
    %v3876 = vsel %vm3868, %v3805, 0.0
    %v3877 = vrot.slane %v3876, 4
    %v3878 = vadd.f32 %v3876, %v3877
    %v3879 = vrot.slane %v3878, 2
    %v3880 = vadd.f32 %v3878, %v3879
    %v3881 = vrot.slane %v3880, 1
    %v3882 = vadd.f32 %v3880, %v3881
    %v3883 = vsel %vm3868, %v3806, 0.0
    %v3884 = vrot.slane %v3883, 4
    %v3885 = vadd.f32 %v3883, %v3884
    %v3886 = vrot.slane %v3885, 2
    %v3887 = vadd.f32 %v3885, %v3886
    %v3888 = vrot.slane %v3887, 1
    %v3889 = vadd.f32 %v3887, %v3888
    %v3890 = vsel %vm3868, %v3807, 0.0
    %v3891 = vrot.slane %v3890, 4
    %v3892 = vadd.f32 %v3890, %v3891
    %v3893 = vrot.slane %v3892, 2
    %v3894 = vadd.f32 %v3892, %v3893
    %v3895 = vrot.slane %v3894, 1
    %v3896 = vadd.f32 %v3894, %v3895
    %v3897 = vsel %vm3868, %v3808, 0.0
    %v3898 = vrot.slane %v3897, 4
    %v3899 = vadd.f32 %v3897, %v3898
    %v3900 = vrot.slane %v3899, 2
    %v3901 = vadd.f32 %v3899, %v3900
    %v3902 = vrot.slane %v3901, 1
    %v3903 = vadd.f32 %v3901, %v3902
    %v3904 = vsel %vm3868, %v3809, 0.0
    %v3905 = vrot.slane %v3904, 4
    %v3906 = vadd.f32 %v3904, %v3905
    %v3907 = vrot.slane %v3906, 2
    %v3908 = vadd.f32 %v3906, %v3907
    %v3909 = vrot.slane %v3908, 1
    %v3910 = vadd.f32 %v3908, %v3909
    %v3911 = vsel %vm3868, %v3810, 0.0
    %v3912 = vrot.slane %v3911, 4
    %v3913 = vadd.f32 %v3911, %v3912
    %v3914 = vrot.slane %v3913, 2
    %v3915 = vadd.f32 %v3913, %v3914
    %v3916 = vrot.slane %v3915, 1
    %v3917 = vadd.f32 %v3915, %v3916
    %v3918 = vsel %vm3868, %v3811, 0.0
    %v3919 = vrot.slane %v3918, 4
    %v3920 = vadd.f32 %v3918, %v3919
    %v3921 = vrot.slane %v3920, 2
    %v3922 = vadd.f32 %v3920, %v3921
    %v3923 = vrot.slane %v3922, 1
    %v3924 = vadd.f32 %v3922, %v3923
    %v3925 = vsel %vm3868, %v3812, 0.0
    %v3926 = vrot.slane %v3925, 4
    %v3927 = vadd.f32 %v3925, %v3926
    %v3928 = vrot.slane %v3927, 2
    %v3929 = vadd.f32 %v3927, %v3928
    %v3930 = vrot.slane %v3929, 1
    %v3931 = vadd.f32 %v3929, %v3930
    %v3932 = vsel %vm3868, %v3813, 0.0
    %v3933 = vrot.slane %v3932, 4
    %v3934 = vadd.f32 %v3932, %v3933
    %v3935 = vrot.slane %v3934, 2
    %v3936 = vadd.f32 %v3934, %v3935
    %v3937 = vrot.slane %v3936, 1
    %v3938 = vadd.f32 %v3936, %v3937
    %v3939 = vsel %vm3868, %v3814, 0.0
    %v3940 = vrot.slane %v3939, 4
    %v3941 = vadd.f32 %v3939, %v3940
    %v3942 = vrot.slane %v3941, 2
    %v3943 = vadd.f32 %v3941, %v3942
    %v3944 = vrot.slane %v3943, 1
    %v3945 = vadd.f32 %v3943, %v3944
    %v3946 = vsel %vm3868, %v3815, 0.0
    %v3947 = vrot.slane %v3946, 4
    %v3948 = vadd.f32 %v3946, %v3947
    %v3949 = vrot.slane %v3948, 2
    %v3950 = vadd.f32 %v3948, %v3949
    %v3951 = vrot.slane %v3950, 1
    %v3952 = vadd.f32 %v3950, %v3951
    %v3953 = vsel %vm3868, %v3816, 0.0
    %v3954 = vrot.slane %v3953, 4
    %v3955 = vadd.f32 %v3953, %v3954
    %v3956 = vrot.slane %v3955, 2
    %v3957 = vadd.f32 %v3955, %v3956
    %v3958 = vrot.slane %v3957, 1
    %v3959 = vadd.f32 %v3957, %v3958
    %v3960 = vsel %vm3868, %v3817, 0.0
    %v3961 = vrot.slane %v3960, 4
    %v3962 = vadd.f32 %v3960, %v3961
    %v3963 = vrot.slane %v3962, 2
    %v3964 = vadd.f32 %v3962, %v3963
    %v3965 = vrot.slane %v3964, 1
    %v3966 = vadd.f32 %v3964, %v3965
    %v3967 = vsel %vm3868, %v3818, 0.0
    %v3968 = vrot.slane %v3967, 4
    %v3969 = vadd.f32 %v3967, %v3968
    %v3970 = vrot.slane %v3969, 2
    %v3971 = vadd.f32 %v3969, %v3970
    %v3972 = vrot.slane %v3971, 1
    %v3973 = vadd.f32 %v3971, %v3972
    %v3974 = vsel %vm3868, %v3819, 0.0
    %v3975 = vrot.slane %v3974, 4
    %v3976 = vadd.f32 %v3974, %v3975
    %v3977 = vrot.slane %v3976, 2
    %v3978 = vadd.f32 %v3976, %v3977
    %v3979 = vrot.slane %v3978, 1
    %v3980 = vadd.f32 %v3978, %v3979
    %v3981 = vsel %vm3868, %v3820, 0.0
    %v3982 = vrot.slane %v3981, 4
    %v3983 = vadd.f32 %v3981, %v3982
    %v3984 = vrot.slane %v3983, 2
    %v3985 = vadd.f32 %v3983, %v3984
    %v3986 = vrot.slane %v3985, 1
    %v3987 = vadd.f32 %v3985, %v3986
    %v3988 = vsel %vm3868, %v3821, 0.0
    %v3989 = vrot.slane %v3988, 4
    %v3990 = vadd.f32 %v3988, %v3989
    %v3991 = vrot.slane %v3990, 2
    %v3992 = vadd.f32 %v3990, %v3991
    %v3993 = vrot.slane %v3992, 1
    %v3994 = vadd.f32 %v3992, %v3993
    %v3995 = vsel %vm3868, %v3822, 0.0
    %v3996 = vrot.slane %v3995, 4
    %v3997 = vadd.f32 %v3995, %v3996
    %v3998 = vrot.slane %v3997, 2
    %v3999 = vadd.f32 %v3997, %v3998
    %v4000 = vrot.slane %v3999, 1
    %v4001 = vadd.f32 %v3999, %v4000
    %v4002 = vsel %vm3868, %v3823, 0.0
    %v4003 = vrot.slane %v4002, 4
    %v4004 = vadd.f32 %v4002, %v4003
    %v4005 = vrot.slane %v4004, 2
    %v4006 = vadd.f32 %v4004, %v4005
    %v4007 = vrot.slane %v4006, 1
    %v4008 = vadd.f32 %v4006, %v4007
    %v4009 = vsel %vm3868, %v3824, 0.0
    %v4010 = vrot.slane %v4009, 4
    %v4011 = vadd.f32 %v4009, %v4010
    %v4012 = vrot.slane %v4011, 2
    %v4013 = vadd.f32 %v4011, %v4012
    %v4014 = vrot.slane %v4013, 1
    %v4015 = vadd.f32 %v4013, %v4014
    %v4016 = vsel %vm3868, %v3825, 0.0
    %v4017 = vrot.slane %v4016, 4
    %v4018 = vadd.f32 %v4016, %v4017
    %v4019 = vrot.slane %v4018, 2
    %v4020 = vadd.f32 %v4018, %v4019
    %v4021 = vrot.slane %v4020, 1
    %v4022 = vadd.f32 %v4020, %v4021
    %v4023 = vsel %vm3868, %v3826, 0.0
    %v4024 = vrot.slane %v4023, 4
    %v4025 = vadd.f32 %v4023, %v4024
    %v4026 = vrot.slane %v4025, 2
    %v4027 = vadd.f32 %v4025, %v4026
    %v4028 = vrot.slane %v4027, 1
    %v4029 = vadd.f32 %v4027, %v4028
    %v4030 = vsel %vm3868, %v3827, 0.0
    %v4031 = vrot.slane %v4030, 4
    %v4032 = vadd.f32 %v4030, %v4031
    %v4033 = vrot.slane %v4032, 2
    %v4034 = vadd.f32 %v4032, %v4033
    %v4035 = vrot.slane %v4034, 1
    %v4036 = vadd.f32 %v4034, %v4035
    %v4037 = vsel %vm3868, %v3828, 0.0
    %v4038 = vrot.slane %v4037, 4
    %v4039 = vadd.f32 %v4037, %v4038
    %v4040 = vrot.slane %v4039, 2
    %v4041 = vadd.f32 %v4039, %v4040
    %v4042 = vrot.slane %v4041, 1
    %v4043 = vadd.f32 %v4041, %v4042
    %v4044 = vsel %vm3868, %v3829, 0.0
    %v4045 = vrot.slane %v4044, 4
    %v4046 = vadd.f32 %v4044, %v4045
    %v4047 = vrot.slane %v4046, 2
    %v4048 = vadd.f32 %v4046, %v4047
    %v4049 = vrot.slane %v4048, 1
    %v4050 = vadd.f32 %v4048, %v4049
    %v4051 = vsel %vm3868, %v3830, 0.0
    %v4052 = vrot.slane %v4051, 4
    %v4053 = vadd.f32 %v4051, %v4052
    %v4054 = vrot.slane %v4053, 2
    %v4055 = vadd.f32 %v4053, %v4054
    %v4056 = vrot.slane %v4055, 1
    %v4057 = vadd.f32 %v4055, %v4056
    %v4058 = vsel %vm3868, %v3831, 0.0
    %v4059 = vrot.slane %v4058, 4
    %v4060 = vadd.f32 %v4058, %v4059
    %v4061 = vrot.slane %v4060, 2
    %v4062 = vadd.f32 %v4060, %v4061
    %v4063 = vrot.slane %v4062, 1
    %v4064 = vadd.f32 %v4062, %v4063
    %v4065 = vsel %vm3868, %v3832, 0.0
    %v4066 = vrot.slane %v4065, 4
    %v4067 = vadd.f32 %v4065, %v4066
    %v4068 = vrot.slane %v4067, 2
    %v4069 = vadd.f32 %v4067, %v4068
    %v4070 = vrot.slane %v4069, 1
    %v4071 = vadd.f32 %v4069, %v4070
    %v4072 = vsel %vm3868, %v3833, 0.0
    %v4073 = vrot.slane %v4072, 4
    %v4074 = vadd.f32 %v4072, %v4073
    %v4075 = vrot.slane %v4074, 2
    %v4076 = vadd.f32 %v4074, %v4075
    %v4077 = vrot.slane %v4076, 1
    %v4078 = vadd.f32 %v4076, %v4077
    %v4079 = vsel %vm3868, %v3834, 0.0
    %v4080 = vrot.slane %v4079, 4
    %v4081 = vadd.f32 %v4079, %v4080
    %v4082 = vrot.slane %v4081, 2
    %v4083 = vadd.f32 %v4081, %v4082
    %v4084 = vrot.slane %v4083, 1
    %v4085 = vadd.f32 %v4083, %v4084
    %v4086 = vsel %vm3868, %v3835, 0.0
    %v4087 = vrot.slane %v4086, 4
    %v4088 = vadd.f32 %v4086, %v4087
    %v4089 = vrot.slane %v4088, 2
    %v4090 = vadd.f32 %v4088, %v4089
    %v4091 = vrot.slane %v4090, 1
    %v4092 = vadd.f32 %v4090, %v4091
    %v4093 = vsel %vm3868, %v3836, 0.0
    %v4094 = vrot.slane %v4093, 4
    %v4095 = vadd.f32 %v4093, %v4094
    %v4096 = vrot.slane %v4095, 2
    %v4097 = vadd.f32 %v4095, %v4096
    %v4098 = vrot.slane %v4097, 1
    %v4099 = vadd.f32 %v4097, %v4098
    %v4100 = vsel %vm3868, %v3837, 0.0
    %v4101 = vrot.slane %v4100, 4
    %v4102 = vadd.f32 %v4100, %v4101
    %v4103 = vrot.slane %v4102, 2
    %v4104 = vadd.f32 %v4102, %v4103
    %v4105 = vrot.slane %v4104, 1
    %v4106 = vadd.f32 %v4104, %v4105
    %v4107 = vsel %vm3868, %v3838, 0.0
    %v4108 = vrot.slane %v4107, 4
    %v4109 = vadd.f32 %v4107, %v4108
    %v4110 = vrot.slane %v4109, 2
    %v4111 = vadd.f32 %v4109, %v4110
    %v4112 = vrot.slane %v4111, 1
    %v4113 = vadd.f32 %v4111, %v4112
    %v4114 = vsel %vm3868, %v3839, 0.0
    %v4115 = vrot.slane %v4114, 4
    %v4116 = vadd.f32 %v4114, %v4115
    %v4117 = vrot.slane %v4116, 2
    %v4118 = vadd.f32 %v4116, %v4117
    %v4119 = vrot.slane %v4118, 1
    %v4120 = vadd.f32 %v4118, %v4119
    %v4121 = vsel %vm3868, %v3840, 0.0
    %v4122 = vrot.slane %v4121, 4
    %v4123 = vadd.f32 %v4121, %v4122
    %v4124 = vrot.slane %v4123, 2
    %v4125 = vadd.f32 %v4123, %v4124
    %v4126 = vrot.slane %v4125, 1
    %v4127 = vadd.f32 %v4125, %v4126
    %v4128 = vsel %vm3868, %v3841, 0.0
    %v4129 = vrot.slane %v4128, 4
    %v4130 = vadd.f32 %v4128, %v4129
    %v4131 = vrot.slane %v4130, 2
    %v4132 = vadd.f32 %v4130, %v4131
    %v4133 = vrot.slane %v4132, 1
    %v4134 = vadd.f32 %v4132, %v4133
    %v4135 = vsel %vm3868, %v3842, 0.0
    %v4136 = vrot.slane %v4135, 4
    %v4137 = vadd.f32 %v4135, %v4136
    %v4138 = vrot.slane %v4137, 2
    %v4139 = vadd.f32 %v4137, %v4138
    %v4140 = vrot.slane %v4139, 1
    %v4141 = vadd.f32 %v4139, %v4140
    %v4142 = vsel %vm3868, %v3843, 0.0
    %v4143 = vrot.slane %v4142, 4
    %v4144 = vadd.f32 %v4142, %v4143
    %v4145 = vrot.slane %v4144, 2
    %v4146 = vadd.f32 %v4144, %v4145
    %v4147 = vrot.slane %v4146, 1
    %v4148 = vadd.f32 %v4146, %v4147
    %v4149 = vsel %vm3868, %v3844, 0.0
    %v4150 = vrot.slane %v4149, 4
    %v4151 = vadd.f32 %v4149, %v4150
    %v4152 = vrot.slane %v4151, 2
    %v4153 = vadd.f32 %v4151, %v4152
    %v4154 = vrot.slane %v4153, 1
    %v4155 = vadd.f32 %v4153, %v4154
    %v4156 = vsel %vm3868, %v3845, 0.0
    %v4157 = vrot.slane %v4156, 4
    %v4158 = vadd.f32 %v4156, %v4157
    %v4159 = vrot.slane %v4158, 2
    %v4160 = vadd.f32 %v4158, %v4159
    %v4161 = vrot.slane %v4160, 1
    %v4162 = vadd.f32 %v4160, %v4161
    %v4163 = vsel %vm3868, %v3846, 0.0
    %v4164 = vrot.slane %v4163, 4
    %v4165 = vadd.f32 %v4163, %v4164
    %v4166 = vrot.slane %v4165, 2
    %v4167 = vadd.f32 %v4165, %v4166
    %v4168 = vrot.slane %v4167, 1
    %v4169 = vadd.f32 %v4167, %v4168
    %v4170 = vsel %vm3868, %v3847, 0.0
    %v4171 = vrot.slane %v4170, 4
    %v4172 = vadd.f32 %v4170, %v4171
    %v4173 = vrot.slane %v4172, 2
    %v4174 = vadd.f32 %v4172, %v4173
    %v4175 = vrot.slane %v4174, 1
    %v4176 = vadd.f32 %v4174, %v4175
    %v4177 = vsel %vm3868, %v3848, 0.0
    %v4178 = vrot.slane %v4177, 4
    %v4179 = vadd.f32 %v4177, %v4178
    %v4180 = vrot.slane %v4179, 2
    %v4181 = vadd.f32 %v4179, %v4180
    %v4182 = vrot.slane %v4181, 1
    %v4183 = vadd.f32 %v4181, %v4182
    %v4184 = vsel %vm3868, %v3849, 0.0
    %v4185 = vrot.slane %v4184, 4
    %v4186 = vadd.f32 %v4184, %v4185
    %v4187 = vrot.slane %v4186, 2
    %v4188 = vadd.f32 %v4186, %v4187
    %v4189 = vrot.slane %v4188, 1
    %v4190 = vadd.f32 %v4188, %v4189
    %v4191 = vsel %vm3868, %v3850, 0.0
    %v4192 = vrot.slane %v4191, 4
    %v4193 = vadd.f32 %v4191, %v4192
    %v4194 = vrot.slane %v4193, 2
    %v4195 = vadd.f32 %v4193, %v4194
    %v4196 = vrot.slane %v4195, 1
    %v4197 = vadd.f32 %v4195, %v4196
    %v4198 = vsel %vm3868, %v3851, 0.0
    %v4199 = vrot.slane %v4198, 4
    %v4200 = vadd.f32 %v4198, %v4199
    %v4201 = vrot.slane %v4200, 2
    %v4202 = vadd.f32 %v4200, %v4201
    %v4203 = vrot.slane %v4202, 1
    %v4204 = vadd.f32 %v4202, %v4203
    %v4205 = vsel %vm3868, %v3852, 0.0
    %v4206 = vrot.slane %v4205, 4
    %v4207 = vadd.f32 %v4205, %v4206
    %v4208 = vrot.slane %v4207, 2
    %v4209 = vadd.f32 %v4207, %v4208
    %v4210 = vrot.slane %v4209, 1
    %v4211 = vadd.f32 %v4209, %v4210
    %v4212 = vsel %vm3868, %v3853, 0.0
    %v4213 = vrot.slane %v4212, 4
    %v4214 = vadd.f32 %v4212, %v4213
    %v4215 = vrot.slane %v4214, 2
    %v4216 = vadd.f32 %v4214, %v4215
    %v4217 = vrot.slane %v4216, 1
    %v4218 = vadd.f32 %v4216, %v4217
    %v4219 = vsel %vm3868, %v3854, 0.0
    %v4220 = vrot.slane %v4219, 4
    %v4221 = vadd.f32 %v4219, %v4220
    %v4222 = vrot.slane %v4221, 2
    %v4223 = vadd.f32 %v4221, %v4222
    %v4224 = vrot.slane %v4223, 1
    %v4225 = vadd.f32 %v4223, %v4224
    %v4226 = vsel %vm3868, %v3855, 0.0
    %v4227 = vrot.slane %v4226, 4
    %v4228 = vadd.f32 %v4226, %v4227
    %v4229 = vrot.slane %v4228, 2
    %v4230 = vadd.f32 %v4228, %v4229
    %v4231 = vrot.slane %v4230, 1
    %v4232 = vadd.f32 %v4230, %v4231
    %v4233 = vsel %vm3868, %v3856, 0.0
    %v4234 = vrot.slane %v4233, 4
    %v4235 = vadd.f32 %v4233, %v4234
    %v4236 = vrot.slane %v4235, 2
    %v4237 = vadd.f32 %v4235, %v4236
    %v4238 = vrot.slane %v4237, 1
    %v4239 = vadd.f32 %v4237, %v4238
    %v4240 = vsel %vm3868, %v3857, 0.0
    %v4241 = vrot.slane %v4240, 4
    %v4242 = vadd.f32 %v4240, %v4241
    %v4243 = vrot.slane %v4242, 2
    %v4244 = vadd.f32 %v4242, %v4243
    %v4245 = vrot.slane %v4244, 1
    %v4246 = vadd.f32 %v4244, %v4245
    %v4247 = vsel %vm3868, %v3858, 0.0
    %v4248 = vrot.slane %v4247, 4
    %v4249 = vadd.f32 %v4247, %v4248
    %v4250 = vrot.slane %v4249, 2
    %v4251 = vadd.f32 %v4249, %v4250
    %v4252 = vrot.slane %v4251, 1
    %v4253 = vadd.f32 %v4251, %v4252
    %v4254 = vsel %vm3868, %v3859, 0.0
    %v4255 = vrot.slane %v4254, 4
    %v4256 = vadd.f32 %v4254, %v4255
    %v4257 = vrot.slane %v4256, 2
    %v4258 = vadd.f32 %v4256, %v4257
    %v4259 = vrot.slane %v4258, 1
    %v4260 = vadd.f32 %v4258, %v4259
    %v4261 = vsel %vm3868, %v3860, 0.0
    %v4262 = vrot.slane %v4261, 4
    %v4263 = vadd.f32 %v4261, %v4262
    %v4264 = vrot.slane %v4263, 2
    %v4265 = vadd.f32 %v4263, %v4264
    %v4266 = vrot.slane %v4265, 1
    %v4267 = vadd.f32 %v4265, %v4266
    %v4268 = vsel %vm3868, %v3861, 0.0
    %v4269 = vrot.slane %v4268, 4
    %v4270 = vadd.f32 %v4268, %v4269
    %v4271 = vrot.slane %v4270, 2
    %v4272 = vadd.f32 %v4270, %v4271
    %v4273 = vrot.slane %v4272, 1
    %v4274 = vadd.f32 %v4272, %v4273
    %v4275 = vsel %vm3868, %v3862, 0.0
    %v4276 = vrot.slane %v4275, 4
    %v4277 = vadd.f32 %v4275, %v4276
    %v4278 = vrot.slane %v4277, 2
    %v4279 = vadd.f32 %v4277, %v4278
    %v4280 = vrot.slane %v4279, 1
    %v4281 = vadd.f32 %v4279, %v4280
    %v4282 = vsel %vm3868, %v3863, 0.0
    %v4283 = vrot.slane %v4282, 4
    %v4284 = vadd.f32 %v4282, %v4283
    %v4285 = vrot.slane %v4284, 2
    %v4286 = vadd.f32 %v4284, %v4285
    %v4287 = vrot.slane %v4286, 1
    %v4288 = vadd.f32 %v4286, %v4287
    %v4289 = vsel %vm3868, %v3864, 0.0
    %v4290 = vrot.slane %v4289, 4
    %v4291 = vadd.f32 %v4289, %v4290
    %v4292 = vrot.slane %v4291, 2
    %v4293 = vadd.f32 %v4291, %v4292
    %v4294 = vrot.slane %v4293, 1
    %v4295 = vadd.f32 %v4293, %v4294
    %v4296 = vsel %vm3868, %v3865, 0.0
    %v4297 = vrot.slane %v4296, 4
    %v4298 = vadd.f32 %v4296, %v4297
    %v4299 = vrot.slane %v4298, 2
    %v4300 = vadd.f32 %v4298, %v4299
    %v4301 = vrot.slane %v4300, 1
    %v4302 = vadd.f32 %v4300, %v4301
    %v4303 = vsel %vm3868, %v3866, 0.0
    %v4304 = vrot.slane %v4303, 4
    %v4305 = vadd.f32 %v4303, %v4304
    %v4306 = vrot.slane %v4305, 2
    %v4307 = vadd.f32 %v4305, %v4306
    %v4308 = vrot.slane %v4307, 1
    %v4309 = vadd.f32 %v4307, %v4308
    %v4310 = vsel %vm3868, %v3867, 0.0
    %v4311 = vrot.slane %v4310, 4
    %v4312 = vadd.f32 %v4310, %v4311
    %v4313 = vrot.slane %v4312, 2
    %v4314 = vadd.f32 %v4312, %v4313
    %v4315 = vrot.slane %v4314, 1
    %v4316 = vadd.f32 %v4314, %v4315
    %v4333 = vsel %vm1868, %v3882, %v3875
    %v4334 = vsel %vm1870, %v3889, %v4333
    %v4335 = vsel %vm1872, %v3896, %v4334
    %v4336 = vsel %vm1874, %v3903, %v4335
    %v4337 = vsel %vm1876, %v3910, %v4336
    %v4338 = vsel %vm1878, %v3917, %v4337
    %v4339 = vsel %vm1880, %v3924, %v4338
    %v4340 = vsel %vm1868, %v3938, %v3931
    %v4341 = vsel %vm1870, %v3945, %v4340
    %v4342 = vsel %vm1872, %v3952, %v4341
    %v4343 = vsel %vm1874, %v3959, %v4342
    %v4344 = vsel %vm1876, %v3966, %v4343
    %v4345 = vsel %vm1878, %v3973, %v4344
    %v4346 = vsel %vm1880, %v3980, %v4345
    %4347 = vrot.lane.b32.xlu0 %v4339, 96
    %v4348 = vpop.permute.xlu0 %4347
    %4349 = vrot.lane.b32.xlu0 %v4346, 96
    %v4350 = vpop.permute.xlu0 %4349
    %v4369 = vsel %vm1868, %v3994, %v3987
    %v4370 = vsel %vm1870, %v4001, %v4369
    %v4371 = vsel %vm1872, %v4008, %v4370
    %v4372 = vsel %vm1874, %v4015, %v4371
    %v4373 = vsel %vm1876, %v4022, %v4372
    %v4374 = vsel %vm1878, %v4029, %v4373
    %v4375 = vsel %vm1880, %v4036, %v4374
    %v4376 = vsel %vm1868, %v4050, %v4043
    %v4377 = vsel %vm1870, %v4057, %v4376
    %v4378 = vsel %vm1872, %v4064, %v4377
    %v4379 = vsel %vm1874, %v4071, %v4378
    %v4380 = vsel %vm1876, %v4078, %v4379
    %v4381 = vsel %vm1878, %v4085, %v4380
    %v4382 = vsel %vm1880, %v4092, %v4381
    %4383 = vrot.lane.b32.xlu0 %v4375, 100
    %v4384 = vpop.permute.xlu0 %4383
    %4385 = vrot.lane.b32.xlu0 %v4382, 100
    %v4386 = vpop.permute.xlu0 %4385
    %v4405 = vsel %vm1868, %v4106, %v4099
    %v4406 = vsel %vm1870, %v4113, %v4405
    %v4407 = vsel %vm1872, %v4120, %v4406
    %v4408 = vsel %vm1874, %v4127, %v4407
    %v4409 = vsel %vm1876, %v4134, %v4408
    %v4410 = vsel %vm1878, %v4141, %v4409
    %v4411 = vsel %vm1880, %v4148, %v4410
    %v4412 = vsel %vm1868, %v4162, %v4155
    %v4413 = vsel %vm1870, %v4169, %v4412
    %v4414 = vsel %vm1872, %v4176, %v4413
    %v4415 = vsel %vm1874, %v4183, %v4414
    %v4416 = vsel %vm1876, %v4190, %v4415
    %v4417 = vsel %vm1878, %v4197, %v4416
    %v4418 = vsel %vm1880, %v4204, %v4417
    %4419 = vrot.lane.b32.xlu0 %v4411, 104
    %v4420 = vpop.permute.xlu0 %4419
    %4421 = vrot.lane.b32.xlu0 %v4418, 104
    %v4422 = vpop.permute.xlu0 %4421
    %v4441 = vsel %vm1868, %v4218, %v4211
    %v4442 = vsel %vm1870, %v4225, %v4441
    %v4443 = vsel %vm1872, %v4232, %v4442
    %v4444 = vsel %vm1874, %v4239, %v4443
    %v4445 = vsel %vm1876, %v4246, %v4444
    %v4446 = vsel %vm1878, %v4253, %v4445
    %v4447 = vsel %vm1880, %v4260, %v4446
    %v4448 = vsel %vm1868, %v4274, %v4267
    %v4449 = vsel %vm1870, %v4281, %v4448
    %v4450 = vsel %vm1872, %v4288, %v4449
    %v4451 = vsel %vm1874, %v4295, %v4450
    %v4452 = vsel %vm1876, %v4302, %v4451
    %v4453 = vsel %vm1878, %v4309, %v4452
    %v4454 = vsel %vm1880, %v4316, %v4453
    %4455 = vrot.lane.b32.xlu0 %v4447, 108
    %v4456 = vpop.permute.xlu0 %4455
    %4457 = vrot.lane.b32.xlu0 %v4454, 108
    %v4458 = vpop.permute.xlu0 %4457
    %v4461 = vsel %vm964, %v4348, %v4384
    %v4462 = vsel %vm964, %v4350, %v4386
    %v4463 = vsel %vm1939, %v4461, %v4420
    %v4464 = vsel %vm1939, %v4462, %v4422
    %vm4465 = vcmask 97280
    %v4466 = vsel %vm4465, %v4463, %v4456
    %v4467 = vsel %vm4465, %v4464, %v4458
    %v4468 = vld [vmem:[#allocation7] sm:$0xff]
    %v4469 = vld [vmem:[#allocation7 + $0x8] sm:$0xff]
    %vm4470 = vcmask 130048
    %v4472 = vsel %vm4470, %v4466, 0
    %v4475 = vsel %vm4470, %v4467, 0
    %4477 = vmatprep.subr.mxu0 0.0
    %4478 = vmatpush1.msra.mxu0 0.0
    %4479 = vmatprep.subr.mxu0 0.0
    %4480 = vmatpush1.msra.mxu0 0.0
    %4481 = vmatprep.subr.mxu0 0.0
    %4482 = vmatpush1.msra.mxu0 0.0
    %4483 = vmatprep.subr.mxu0 0.0
    %4484 = vmatpush1.msra.mxu0 0.0
    %4485 = vmatprep.subr.mxu0 0.0
    %4486 = vmatpush1.msra.mxu0 0.0
    %4487 = vmatprep.subr.mxu0 0.0
    %4488 = vmatpush1.msra.mxu0 0.0
    %4489 = vmatprep.subr.mxu0 0.0
    %4490 = vmatpush1.msra.mxu0 0.0
    %4491 = vmatprep.subr.mxu0 0.0
    %4492 = vmatpush1.msra.mxu0 0.0
    %4493 = vmatprep.subr.mxu0 0.0
    %4494 = vmatpush1.msra.mxu0 0.0
    %4495 = vmatprep.subr.mxu0 0.0
    %4496 = vmatpush1.msra.mxu0 0.0
    %4497 = vmatprep.subr.mxu0 0.0
    %4498 = vmatpush1.msra.mxu0 0.0
    %4499 = vmatprep.subr.mxu0 0.0
    %4500 = vmatpush1.msra.mxu0 0.0
    %4501 = vmatprep.subr.mxu0 0.0
    %4502 = vmatpush1.msra.mxu0 0.0
    %4503 = vmatprep.subr.mxu0 0.0
    %4504 = vmatpush1.msra.mxu0 0.0
    %4505 = vmatprep.subr.mxu0 0.0
    %4506 = vmatpush1.msra.mxu0 %v4469
    %4507 = vmatprep.subr.mxu0 0.0
    %4508 = vmatpush1.msra.mxu0 %v4468
    %4509 = vmatprep.subr.mxu0 0.0
    %4510 = vmatpush2.msra.mxu0 0.0
    %4511 = vmatprep.subr.mxu0 0.0
    %4512 = vmatpush2.msra.mxu0 0.0
    %4513 = vmatprep.subr.mxu0 0.0
    %4514 = vmatpush2.msra.mxu0 0.0
    %4515 = vmatprep.subr.mxu0 0.0
    %4516 = vmatpush2.msra.mxu0 0.0
    %4517 = vmatprep.subr.mxu0 0.0
    %4518 = vmatpush2.msra.mxu0 0.0
    %4519 = vmatprep.subr.mxu0 0.0
    %4520 = vmatpush2.msra.mxu0 0.0
    %4521 = vmatprep.subr.mxu0 0.0
    %4522 = vmatpush2.msra.mxu0 0.0
    %4523 = vmatprep.subr.mxu0 0.0
    %4524 = vmatpush2.msra.mxu0 0.0
    %4525 = vmatprep.subr.mxu0 0.0
    %4526 = vmatpush2.msra.mxu0 0.0
    %4527 = vmatprep.subr.mxu0 0.0
    %4528 = vmatpush2.msra.mxu0 0.0
    %4529 = vmatprep.subr.mxu0 0.0
    %4530 = vmatpush2.msra.mxu0 0.0
    %4531 = vmatprep.subr.mxu0 0.0
    %4532 = vmatpush2.msra.mxu0 0.0
    %4533 = vmatprep.subr.mxu0 0.0
    %4534 = vmatpush2.msra.mxu0 0.0
    %4535 = vmatprep.subr.mxu0 0.0
    %4536 = vmatpush2.msra.mxu0 0.0
    %4537 = vmatprep.subr.mxu0 0.0
    %4538 = vmatpush2.msra.mxu0 0.0
    %4539 = vmatprep.subr.mxu0 0.0
    %4540 = vmatpush2.msra.mxu0 0.0
    %4541 = vmatprep.mubr.f32.mxu0 0.0
    %4542 = vmatmul.mubr.f32.gmra.mxu0 %v4472
    %v4543 = vpop.f32.mrf.mxu0
    %v4544 = vadd.f32 0.0, %v4543
    %v4545 = vpop.f32.mrf.mxu0
    %4546 = vmatprep.mubr.f32.mxu0 0.0
    %4547 = vmatmul.mubr.f32.gmra.mxu0 %v4475
    %v4548 = vpop.f32.mrf.mxu0
    %v4549 = vadd.f32 0.0, %v4548
    %v4550 = vpop.f32.mrf.mxu0
    %4551 = vdwg.mxu0
    %4552 = vst.msk [vmem:[#allocation8] sm:$0xff] %vm62, %v4544
    %4553 = vst.msk [vmem:[#allocation8 + $0x8] sm:$0xff] %vm62, %v4549
    // Predicated region
    $region26: #{tpu_custom_call.1} parent=1 // pred_check
      _
    $region27: #{tpu_custom_call.1} parent=1 // pred_check_branch
      %4555 = sbr.rel (0) target = $region29
    $region28: #{tpu_custom_call.1} parent=1 // pred_region
      %s4557 = ssub.s32 256, 256
      %4558 = vsyncadd [#allocation4], %s4557
      %s4559 = sshll.u32 [#allocation8], 4
      %s4560 = int_to_ptr.vmem [resolvable:$true] %s4559
      %4565 = dma.vmem_to_hbm [thread:$0]  %s4560, 256, %s3, [#allocation4], 128, 128, 8
    $region29: #{tpu_custom_call.1} parent=1 // pred_fallthru
      _
    // Predicated region
    $region30: #{tpu_custom_call.1} parent=1 // pred_check
      _
    $region31: #{tpu_custom_call.1} parent=1 // pred_check_branch
      %4567 = sbr.rel (0) target = $region33
    $region32: #{tpu_custom_call.1} parent=1 // pred_region
      %4568 = dma.done [#allocation4], 256
    $region33: #{tpu_custom_call.1} parent=1 // pred_fallthru
      _
    %4569 = vsyncpa [#allocation3], 1
    %4570 = vsyncpa [#allocation6], 1
    %4571 = vsyncpa [#allocation4], 1

</llo_original>
